<compile_context>
chip_gen: v7x
topology: tpu7x:2x2x1
jax: 0.10.0
libtpu: 0.0.40
codegen_flags: <defaults>
</compile_context>

<pallas_src>
import math
import functools
import numpy as np
import jax
import jax.numpy as jnp
from jax.experimental import pallas as pl
from jax.experimental.pallas import tpu as pltpu

ATTN_LEN = 5
NUM_HEADS = 8            # forward() hard-codes an 8-way head split via the cat(...)
# per-head source head for K/V and per-head shift (exactly as in the PyTorch forward;
# note slot 7 re-uses KEY head 6 -- that asymmetry is reproduced on purpose).
K_SRC = (0, 1, 2, 3, 4, 5, 6, 6)
V_SRC = (0, 1, 2, 3, 4, 5, 6, 7)
SHIFTS = (0, 0, 0, 0, -2, -1, 1, 2)


# ---------------------------------------------------------------------------
# Kernel body
# ---------------------------------------------------------------------------
def _mm(w, x, matmul_dtype):
    """MXU matmul with f32 accumulation (operands cast to matmul_dtype)."""
    return jnp.dot(w.astype(matmul_dtype), x.astype(matmul_dtype),
                   preferred_element_type=jnp.float32)


def _attend(q, rel_all, k, v, out_ref, attn_ref, kpad_ref, vpad_ref, *,
            num_heads, head_dim, attn_len, dilation):
    """Shared attention tail; q (D,T), rel_all (H*A,T), k/v (D,T) are f32 values."""
    D = num_heads * head_dim
    A = attn_len
    hd = head_dim
    T = q.shape[1]
    pad = (A // 2) * 2 * dilation                 # max |time offset| = 4 * dilation
    lead = ((pad + 127) // 128) * 128 if pad else 0   # 128-lane-aligned live region

    # Write projected K/V once into the zero-padded scratch slabs.  Only the two
    # halo stripes actually read by the windows are zeroed (every grid step, so the
    # kernel stays correct under megacore "parallel" sharding of the batch axis).
    if pad:
        zstripe = jnp.zeros((D, pad), jnp.float32)
        kpad_ref[:, lead - pad:lead] = zstripe
        kpad_ref[:, lead + T:lead + T + pad] = zstripe
        vpad_ref[:, lead - pad:lead] = zstripe
        vpad_ref[:, lead + T:lead + T + pad] = zstripe
    kpad_ref[:, lead:lead + T] = k
    vpad_ref[:, lead:lead + T] = v

    def kwin(row0, nrows, off):                   # shifted KEY window (ref slice)
        return kpad_ref[row0:row0 + nrows, lead + off:lead + off + T]

    def vwin(h, off):                             # shifted VALUE window (ref slice)
        r = V_SRC[h] * hd
        return vpad_ref[r:r + hd, lead + off:lead + off + T]

    # ---- phase 1: q.k logits, sharing realigned key windows where possible ----
    qk_rows = [[None] * A for _ in range(num_heads)]

    # heads 0..3: shift 0, contiguous key heads -> one (4*hd, T) window per offset
    q03 = q[0:4 * hd, :]
    for a in range(A):
        off = (a - 2) * dilation
        prod = q03 * kwin(0, 4 * hd, off)
        for h in range(4):
            qk_rows[h][a] = jnp.sum(prod[h * hd:(h + 1) * hd, :],
                                    axis=0, keepdims=True)

    # heads 4 and 5: individual windows
    for h in (4, 5):
        qh = q[h * hd:(h + 1) * hd, :]
        for a in range(A):
            off = (a + SHIFTS[h] - 2) * dilation
            qk_rows[h][a] = jnp.sum(qh * kwin(K_SRC[h] * hd, hd, off),
                                    axis=0, keepdims=True)

    # heads 6 & 7 both read KEY head 6 with overlapping offsets -> slice each once
    q6 = q[6 * hd:7 * hd, :]
    q7 = q[7 * hd:8 * hd, :]
    for j in range(-1, A):                        # offsets j*dilation, j in [-1, 4]
        ks = kwin(6 * hd, hd, j * dilation)
        if 0 <= j + 1 < A:                        # head 6: off = (a - 1) * dilation
            qk_rows[6][j + 1] = jnp.sum(q6 * ks, axis=0, keepdims=True)
        if 0 <= j < A:                            # head 7: off = a * dilation
            qk_rows[7][j] = jnp.sum(q7 * ks, axis=0, keepdims=True)

    # ---- phase 2: per-head softmax + weighted V accumulation ----
    inv_sqrt = jnp.float32(1.0 / math.sqrt(head_dim))
    neg_inf = jnp.float32(-jnp.inf)
    p_list, out_list = [], []
    for h in range(num_heads):
        qk = jnp.concatenate(qk_rows[h], axis=0)                  # (A, T)
        rel = rel_all[h * A:(h + 1) * A, :]                       # (A, T)
        # reference quirk: entries whose raw q.k dot is exactly 0 (zero-padded keys)
        # are masked to -inf (a fully-masked column gives NaN, same as the reference)
        scores = jnp.where(qk == 0.0, neg_inf, (qk + rel) * inv_sqrt)
        m = jnp.max(scores, axis=0, keepdims=True)
        e = jnp.exp(scores - m)
        p = e * (jnp.float32(1.0) / jnp.sum(e, axis=0, keepdims=True))
        p_list.append(p)

        # value windows are re-sliced from the scratch right before use (short live
        # ranges -> no list of 5 x (hd, T) slabs alive across the softmax)
        out_h = p[0:1, :] * vwin(h, (SHIFTS[h] - 2) * dilation)
        for a in range(1, A):
            out_h = out_h + p[a:a + 1, :] * vwin(h, (a + SHIFTS[h] - 2) * dilation)
        out_list.append(out_h)

    # single lane/sublane-dense full-block stores
    attn_ref[0] = jnp.concatenate(p_list, axis=0)                 # (H*A, T)
    out_ref[0] = jnp.concatenate(out_list, axis=0)                # (D, T)


def _dilated_attn_kernel_qkv(xq_ref, xk_ref, xv_ref,
                             wqr_ref, bqr_ref, wk_ref, bk_ref, wv_ref, bv_ref,
                             out_ref, attn_ref, kpad_ref, vpad_ref, *,
                             num_heads, head_dim, attn_len, dilation, matmul_dtype):
    D = num_heads * head_dim
    # Q projection with the relative-position rows folded in -> (D + H*A, T)
    qr = _mm(wqr_ref[...], xq_ref[0], matmul_dtype) + bqr_ref[...]
    k = _mm(wk_ref[...], xk_ref[0], matmul_dtype) + bk_ref[...]
    v = _mm(wv_ref[...], xv_ref[0], matmul_dtype) + bv_ref[...]
    _attend(qr[:D, :], qr[D:, :], k, v, out_ref, attn_ref, kpad_ref, vpad_ref,
            num_heads=num_heads, head_dim=head_dim, attn_len=attn_len,
            dilation=dilation)


def _dilated_attn_kernel_shared(x_ref, w_ref, b_ref,
                                out_ref, attn_ref, kpad_ref, vpad_ref, *,
                                num_heads, head_dim, attn_len, dilation,
                                matmul_dtype):
    D = num_heads * head_dim
    HA = num_heads * attn_len
    # one matmul produces q, rel, k, v -> (3D + H*A, T)
    proj = _mm(w_ref[...], x_ref[0], matmul_dtype) + b_ref[...]
    _attend(proj[:D, :], proj[D:D + HA, :],
            proj[D + HA:2 * D + HA, :], proj[2 * D + HA:, :],
            out_ref, attn_ref, kpad_ref, vpad_ref,
            num_heads=num_heads, head_dim=head_dim, attn_len=attn_len,
            dilation=dilation)


# ---------------------------------------------------------------------------
# Wrapper
# ---------------------------------------------------------------------------
def dilated_mhsa(query, key, value, Wq, bq, Wk, bk, Wv, bv, Er, *,
                 layer=0, num_heads=NUM_HEADS, attn_len=ATTN_LEN,
                 matmul_dtype=jnp.bfloat16, shared_qkv=None,
                 return_transposed=False):
    """Forward pass matching the PyTorch module.

    Returns (out, attn) with shapes (B, T, D) and (B, H, T, 1, A) unless
    return_transposed=True, in which case the kernel's lane-dense layouts
    (B, D, T) and (B, H*A, T) are returned without the extra transpose passes.
    matmul_dtype=jnp.bfloat16 (default) runs the MXU at full rate on v5e/v6e/v7x
    with f32 accumulation; pass jnp.float32 for maximum fidelity.
    """
    B, T, D = query.shape
    assert num_heads == NUM_HEADS, "forward() hard-codes an 8-way head split"
    head_dim = D // num_heads
    assert head_dim * num_heads == D
    HA = num_heads * attn_len
    dilation = 2 ** layer
    if shared_qkv is None:
        shared_qkv = (query is key) and (key is value)

    f32 = jnp.float32
    Wq32, bq32 = Wq.astype(f32), bq.astype(f32)

    # Fold the relative-position logits into the Q projection:
    #   rel = blockdiag(Er)^T (Wq x + bq) = (blockdiag(Er)^T Wq) x + blockdiag(Er)^T bq
    er_t = jnp.transpose(Er, (0, 2, 1)).astype(f32)                   # (H, A, hd)
    W_rel = jnp.einsum('had,hdm->ham', er_t,
                       Wq32.reshape(num_heads, head_dim, D),
                       precision=jax.lax.Precision.HIGHEST).reshape(HA, D)
    b_rel = jnp.einsum('had,hd->ha', er_t,
                       bq32.reshape(num_heads, head_dim),
                       precision=jax.lax.Precision.HIGHEST).reshape(HA)

    # transposed-world input (time on lanes), cast at the boundary (fuses with the
    # transpose pass -> halves kernel input HBM traffic when matmul_dtype is bf16)
    xq_t = jnp.swapaxes(query, 1, 2).astype(matmul_dtype)             # (B, D, T)

    kernel_kwargs = dict(num_heads=num_heads, head_dim=head_dim, attn_len=attn_len,
                         dilation=dilation, matmul_dtype=matmul_dtype)

    def full_spec(shape):
        n = len(shape)
        return pl.BlockSpec(shape, lambda b, _n=n: (0,) * _n)

    x_spec = pl.BlockSpec((1, D, T), lambda b: (b, 0, 0))

    if shared_qkv:
        W_all = jnp.concatenate([Wq32, W_rel, Wk.astype(f32), Wv.astype(f32)],
                                axis=0).astype(matmul_dtype)          # (3D + H*A, D)
        b_all = jnp.concatenate([bq32, b_rel, bk.astype(f32), bv.astype(f32)],
                                axis=0).reshape(-1, 1)                # f32
        kernel = functools.partial(_dilated_attn_kernel_shared, **kernel_kwargs)
        in_specs = [x_spec, full_spec((3 * D + HA, D)), full_spec((3 * D + HA, 1))]
        args = (xq_t, W_all, b_all)
        n_x = 1
    else:
        W_qr = jnp.concatenate([Wq32, W_rel], axis=0).astype(matmul_dtype)
        b_qr = jnp.concatenate([bq32, b_rel], axis=0).reshape(-1, 1)
        xk_t = jnp.swapaxes(key, 1, 2).astype(matmul_dtype)
        xv_t = jnp.swapaxes(value, 1, 2).astype(matmul_dtype)
        kernel = functools.partial(_dilated_attn_kernel_qkv, **kernel_kwargs)
        in_specs = [x_spec, x_spec, x_spec,
                    full_spec((D + HA, D)), full_spec((D + HA, 1)),
                    full_spec((D, D)), full_spec((D, 1)),
                    full_spec((D, D)), full_spec((D, 1))]
        args = (xq_t, xk_t, xv_t, W_qr, b_qr,
                Wk.astype(matmul_dtype), bk.astype(f32).reshape(-1, 1),
                Wv.astype(matmul_dtype), bv.astype(f32).reshape(-1, 1))
        n_x = 3

    pad = (attn_len // 2) * 2 * dilation
    lead = ((pad + 127) // 128) * 128 if pad else 0
    slab = (D, lead + T + pad)

    # scoped-VMEM budget sized from the actual working set (with headroom)
    b_in = np.dtype(matmul_dtype).itemsize
    est = (n_x * D * T * b_in * 2                  # inputs (double buffered)
           + (3 * D + HA) * D * b_in * 2           # resident weights
           + (D + HA) * T * 4 * 2                  # outputs (double buffered)
           + 2 * slab[0] * slab[1] * 4             # padded K/V scratch slabs
           + 8 * D * T * 4)                        # live matmul/softmax temporaries
    vmem_limit = int(min(max(est * 1.25, 32 * 1024 * 1024), 128 * 1024 * 1024))

    out_t, attn_t = pl.pallas_call(
        kernel,
        out_shape=(jax.ShapeDtypeStruct((B, D, T), jnp.float32),
                   jax.ShapeDtypeStruct((B, HA, T), jnp.float32)),
        grid_spec=pltpu.PrefetchScalarGridSpec(
            num_scalar_prefetch=0,
            grid=(B,),
            in_specs=in_specs,
            out_specs=[pl.BlockSpec((1, D, T), lambda b: (b, 0, 0)),
                       pl.BlockSpec((1, HA, T), lambda b: (b, 0, 0))],
            scratch_shapes=[pltpu.VMEM(slab, jnp.float32),   # zero-padded K slab
                            pltpu.VMEM(slab, jnp.float32)],  # zero-padded V slab
        ),
        compiler_params=pltpu.CompilerParams(
            dimension_semantics=("parallel",),
            vmem_limit_bytes=vmem_limit),
    )(*args)

    if return_transposed:
        return out_t, attn_t                        # (B, D, T), (B, H*A, T)

    # layout plumbing back to the PyTorch shapes (done by XLA outside the kernel)
    out = jnp.swapaxes(out_t, 1, 2)                                   # (B, T, D)
    attn = jnp.transpose(attn_t.reshape(B, num_heads, attn_len, T),
                         (0, 1, 3, 2))[:, :, :, None, :]              # (B, H, T, 1, A)
    return out, attn


# ---------------------------------------------------------------------------
# Pure numpy (float64) reference, mirroring the PyTorch forward exactly.
# ---------------------------------------------------------------------------
def reference_forward_np(xq, xk, xv, Wq, bq, Wk, bk, Wv, bv, Er, layer=0):
    xq, xk, xv, Wq, bq, Wk, bk, Wv, bv, Er = [
        np.asarray(a, np.float64) for a in (xq, xk, xv, Wq, bq, Wk, bk, Wv, bv, Er)]
    B, T, D = xq.shape
    H, hd, A = Er.shape
    d = 2 ** layer

    q = xq @ Wq.T + bq
    k = xk @ Wk.T + bk
    v = xv @ Wv.T + bv
    q = q.reshape(B, T, H, hd).transpose(0, 2, 1, 3)
    k = k.reshape(B, T, H, hd).transpose(0, 2, 1, 3)
    v = v.reshape(B, T, H, hd).transpose(0, 2, 1, 3)

    def shift(x, off):                     # x: (B, T, hd)
        y = np.zeros_like(x)
        if off >= 0:
            n = max(T - off, 0)
            if n:
                y[:, :n] = x[:, off:off + n]
        else:
            n = max(T + off, 0)
            if n:
                y[:, -off:-off + n] = x[:, :n]
        return y

    out = np.zeros((B, H, T, hd))
    attn_all = np.zeros((B, H, T, A))
    for h in range(H):
        qh = q[:, h]
        qk = np.zeros((B, T, A))
        vroll = np.zeros((B, T, A, hd))
        for a in range(A):
            off = (a + SHIFTS[h] - 2) * d
            qk[:, :, a] = np.sum(qh * shift(k[:, K_SRC[h]], off), axis=-1)
            vroll[:, :, a] = shift(v[:, V_SRC[h]], off)
        rel = np.einsum('btd,da->bta', qh, Er[h])
        mask = np.where(qk == 0.0, -np.inf, 0.0)
        scores = (qk + rel) / math.sqrt(hd) + mask
        m = scores.max(axis=-1, keepdims=True)
        e = np.exp(scores - m)
        p = e / e.sum(axis=-1, keepdims=True)
        attn_all[:, h] = p
        out[:, h] = np.einsum('bta,btad->btd', p, vroll)
    out = out.transpose(0, 2, 1, 3).reshape(B, T, D)
    return out, attn_all[:, :, :, None, :]


if __name__ == "__main__":
    B, T, Dm = 2, 16, 32
    H, A = NUM_HEADS, ATTN_LEN
    hd = Dm // H
    layer = 0

    root = jax.random.PRNGKey(0)
    ks = jax.random.split(root, 10)
    xq = jax.random.normal(ks[0], (B, T, Dm), jnp.float32)
    xk = jax.random.normal(ks[1], (B, T, Dm), jnp.float32)
    xv = jax.random.normal(ks[2], (B, T, Dm), jnp.float32)
    Wq = 0.1 * jax.random.normal(ks[3], (Dm, Dm), jnp.float32)
    Wk = 0.1 * jax.random.normal(ks[4], (Dm, Dm), jnp.float32)
    Wv = 0.1 * jax.random.normal(ks[5], (Dm, Dm), jnp.float32)
    bq = 0.1 * jax.random.normal(ks[6], (Dm,), jnp.float32)
    bk = 0.1 * jax.random.normal(ks[7], (Dm,), jnp.float32)
    bv = 0.1 * jax.random.normal(ks[8], (Dm,), jnp.float32)
    Er = jax.random.normal(ks[9], (H, hd, A), jnp.float32)

    out_ref_np, attn_ref_np = reference_forward_np(
        xq, xk, xv, Wq, bq, Wk, bk, Wv, bv, Er, layer=layer)

    # 1) default path: distinct q/k/v, bf16 MXU operands, f32 accumulation
    out, attn = dilated_mhsa(xq, xk, xv, Wq, bq, Wk, bk, Wv, bv, Er, layer=layer)
    out, attn = jax.block_until_ready((out, attn))
    assert out.shape == (B, T, Dm)
    assert attn.shape == (B, H, T, 1, A)
    np.testing.assert_allclose(np.asarray(out), out_ref_np, rtol=5e-2, atol=5e-2)
    np.testing.assert_allclose(np.asarray(attn), attn_ref_np, rtol=5e-2, atol=5e-2)

    # 2) f32 MXU path, tighter tolerance (semantic check)
    out32, attn32 = dilated_mhsa(xq, xk, xv, Wq, bq, Wk, bk, Wv, bv, Er,
                                 layer=layer, matmul_dtype=jnp.float32)
    out32, attn32 = jax.block_until_ready((out32, attn32))
    np.testing.assert_allclose(np.asarray(out32), out_ref_np, rtol=5e-3, atol=5e-3)
    np.testing.assert_allclose(np.asarray(attn32), attn_ref_np, rtol=5e-3, atol=5e-3)

    # 3) fused self-attention path (query is key is value -> single stacked matmul)
    out_s_ref, attn_s_ref = reference_forward_np(
        xq, xq, xq, Wq, bq, Wk, bk, Wv, bv, Er, layer=layer)
    out_s, attn_s = dilated_mhsa(xq, xq, xq, Wq, bq, Wk, bk, Wv, bv, Er, layer=layer)
    out_s, attn_s = jax.block_until_ready((out_s, attn_s))
    np.testing.assert_allclose(np.asarray(out_s), out_s_ref, rtol=5e-2, atol=5e-2)
    np.testing.assert_allclose(np.asarray(attn_s), attn_s_ref, rtol=5e-2, atol=5e-2)

    print("KERNEL_OK")
</pallas_src>

<mosaic_0001>
module attributes {stable_mosaic.version = 11 : i64} {
  func.func @_dilated_attn_kernel_qkv(%arg0: i32, %arg1: memref<1x32x16xbf16, #tpu.memory_space<vmem>>, %arg2: memref<1x32x16xbf16, #tpu.memory_space<vmem>>, %arg3: memref<1x32x16xbf16, #tpu.memory_space<vmem>>, %arg4: memref<72x32xbf16, #tpu.memory_space<vmem>>, %arg5: memref<72x1xf32, #tpu.memory_space<vmem>>, %arg6: memref<32x32xbf16, #tpu.memory_space<vmem>>, %arg7: memref<32x1xf32, #tpu.memory_space<vmem>>, %arg8: memref<32x32xbf16, #tpu.memory_space<vmem>>, %arg9: memref<32x1xf32, #tpu.memory_space<vmem>>, %arg10: memref<1x32x16xf32, #tpu.memory_space<vmem>>, %arg11: memref<1x40x16xf32, #tpu.memory_space<vmem>>, %arg12: memref<32x148xf32, #tpu.memory_space<vmem>>, %arg13: memref<32x148xf32, #tpu.memory_space<vmem>>) attributes {dimension_semantics = [#tpu.dimension_semantics<parallel>], iteration_bounds = array<i64: 2>, scalar_prefetch = 0 : i64, scratch_operands = 2 : i64, tpu.core_type = #tpu.core_type<tc>, window_params = [{transform_indices = @transform_0, window_bounds = array<i64: 1, 32, 16>}, {transform_indices = @transform_1, window_bounds = array<i64: 1, 32, 16>}, {transform_indices = @transform_2, window_bounds = array<i64: 1, 32, 16>}, {pipeline_mode = #tpu.pipeline_mode<synchronous>, transform_indices = @transform_3, window_bounds = array<i64: 72, 32>}, {pipeline_mode = #tpu.pipeline_mode<synchronous>, transform_indices = @transform_4, window_bounds = array<i64: 72, 1>}, {pipeline_mode = #tpu.pipeline_mode<synchronous>, transform_indices = @transform_5, window_bounds = array<i64: 32, 32>}, {pipeline_mode = #tpu.pipeline_mode<synchronous>, transform_indices = @transform_6, window_bounds = array<i64: 32, 1>}, {pipeline_mode = #tpu.pipeline_mode<synchronous>, transform_indices = @transform_7, window_bounds = array<i64: 32, 32>}, {pipeline_mode = #tpu.pipeline_mode<synchronous>, transform_indices = @transform_8, window_bounds = array<i64: 32, 1>}, {transform_indices = @transform_9, window_bounds = array<i64: 1, 32, 16>}, {transform_indices = @transform_10, window_bounds = array<i64: 1, 40, 16>}]} {
    %c0 = arith.constant 0 : index
    %c0_0 = arith.constant 0 : index
    %0 = vector.load %arg4[%c0, %c0_0] : memref<72x32xbf16, #tpu.memory_space<vmem>>, vector<72x32xbf16>
    %c0_1 = arith.constant 0 : index
    %c0_2 = arith.constant 0 : index
    %c0_3 = arith.constant 0 : index
    %1 = vector.load %arg1[%c0_1, %c0_2, %c0_3] : memref<1x32x16xbf16, #tpu.memory_space<vmem>>, vector<1x32x16xbf16>
    %2 = vector.shape_cast %1 : vector<1x32x16xbf16> to vector<32x16xbf16>
    %cst = arith.constant dense<0.000000e+00> : vector<72x16xf32>
    %3 = tpu.matmul %0, %2, %cst {dimension_numbers = #tpu.dot_dimension_numbers<[1], [0], [0], [1], [0, 0, 1, 1], [], []>} : vector<72x32xbf16>, vector<32x16xbf16>, vector<72x16xf32> -> vector<72x16xf32>
    %c0_4 = arith.constant 0 : index
    %c0_5 = arith.constant 0 : index
    %4 = vector.load %arg5[%c0_4, %c0_5] : memref<72x1xf32, #tpu.memory_space<vmem>>, vector<72x1xf32>
    %5 = vector.broadcast %4 : vector<72x1xf32> to vector<72x16xf32>
    %6 = arith.addf %3, %5 : vector<72x16xf32>
    %c0_6 = arith.constant 0 : index
    %c0_7 = arith.constant 0 : index
    %7 = vector.load %arg6[%c0_6, %c0_7] : memref<32x32xbf16, #tpu.memory_space<vmem>>, vector<32x32xbf16>
    %c0_8 = arith.constant 0 : index
    %c0_9 = arith.constant 0 : index
    %c0_10 = arith.constant 0 : index
    %8 = vector.load %arg2[%c0_8, %c0_9, %c0_10] : memref<1x32x16xbf16, #tpu.memory_space<vmem>>, vector<1x32x16xbf16>
    %9 = vector.shape_cast %8 : vector<1x32x16xbf16> to vector<32x16xbf16>
    %cst_11 = arith.constant dense<0.000000e+00> : vector<32x16xf32>
    %10 = tpu.matmul %7, %9, %cst_11 {dimension_numbers = #tpu.dot_dimension_numbers<[1], [0], [0], [1], [0, 0, 1, 1], [], []>} : vector<32x32xbf16>, vector<32x16xbf16>, vector<32x16xf32> -> vector<32x16xf32>
    %c0_12 = arith.constant 0 : index
    %c0_13 = arith.constant 0 : index
    %11 = vector.load %arg7[%c0_12, %c0_13] : memref<32x1xf32, #tpu.memory_space<vmem>>, vector<32x1xf32>
    %12 = vector.broadcast %11 : vector<32x1xf32> to vector<32x16xf32>
    %13 = arith.addf %10, %12 : vector<32x16xf32>
    %c0_14 = arith.constant 0 : index
    %c0_15 = arith.constant 0 : index
    %14 = vector.load %arg8[%c0_14, %c0_15] : memref<32x32xbf16, #tpu.memory_space<vmem>>, vector<32x32xbf16>
    %c0_16 = arith.constant 0 : index
    %c0_17 = arith.constant 0 : index
    %c0_18 = arith.constant 0 : index
    %15 = vector.load %arg3[%c0_16, %c0_17, %c0_18] : memref<1x32x16xbf16, #tpu.memory_space<vmem>>, vector<1x32x16xbf16>
    %16 = vector.shape_cast %15 : vector<1x32x16xbf16> to vector<32x16xbf16>
    %cst_19 = arith.constant dense<0.000000e+00> : vector<32x16xf32>
    %17 = tpu.matmul %14, %16, %cst_19 {dimension_numbers = #tpu.dot_dimension_numbers<[1], [0], [0], [1], [0, 0, 1, 1], [], []>} : vector<32x32xbf16>, vector<32x16xbf16>, vector<32x16xf32> -> vector<32x16xf32>
    %c0_20 = arith.constant 0 : index
    %c0_21 = arith.constant 0 : index
    %18 = vector.load %arg9[%c0_20, %c0_21] : memref<32x1xf32, #tpu.memory_space<vmem>>, vector<32x1xf32>
    %19 = vector.broadcast %18 : vector<32x1xf32> to vector<32x16xf32>
    %20 = arith.addf %17, %19 : vector<32x16xf32>
    %21 = vector.extract_strided_slice %6 {offsets = [0, 0], sizes = [32, 16], strides = [1, 1]} : vector<72x16xf32> to vector<32x16xf32>
    %22 = vector.extract_strided_slice %6 {offsets = [32, 0], sizes = [40, 16], strides = [1, 1]} : vector<72x16xf32> to vector<40x16xf32>
    %cst_22 = arith.constant 0.000000e+00 : f32
    %23 = vector.broadcast %cst_22 : f32 to vector<32x4xf32>
    %c0_23 = arith.constant 0 : index
    %c124 = arith.constant 124 : index
    %24 = vector.load %arg12[%c0_23, %c124] : memref<32x148xf32, #tpu.memory_space<vmem>>, vector<32x4xf32>
    tpu.vector_store %arg12[%c0_23, %c124], %23 {strides = array<i32>} : memref<32x148xf32, #tpu.memory_space<vmem>>, vector<32x4xf32>,
    %c0_24 = arith.constant 0 : index
    %c144 = arith.constant 144 : index
    %25 = vector.load %arg12[%c0_24, %c144] : memref<32x148xf32, #tpu.memory_space<vmem>>, vector<32x4xf32>
    tpu.vector_store %arg12[%c0_24, %c144], %23 {strides = array<i32>} : memref<32x148xf32, #tpu.memory_space<vmem>>, vector<32x4xf32>,
    %c0_25 = arith.constant 0 : index
    %c124_26 = arith.constant 124 : index
    %26 = vector.load %arg13[%c0_25, %c124_26] : memref<32x148xf32, #tpu.memory_space<vmem>>, vector<32x4xf32>
    tpu.vector_store %arg13[%c0_25, %c124_26], %23 {strides = array<i32>} : memref<32x148xf32, #tpu.memory_space<vmem>>, vector<32x4xf32>,
    %c0_27 = arith.constant 0 : index
    %c144_28 = arith.constant 144 : index
    %27 = vector.load %arg13[%c0_27, %c144_28] : memref<32x148xf32, #tpu.memory_space<vmem>>, vector<32x4xf32>
    tpu.vector_store %arg13[%c0_27, %c144_28], %23 {strides = array<i32>} : memref<32x148xf32, #tpu.memory_space<vmem>>, vector<32x4xf32>,
    %c0_29 = arith.constant 0 : index
    %c128 = arith.constant 128 : index
    %28 = vector.load %arg12[%c0_29, %c128] : memref<32x148xf32, #tpu.memory_space<vmem>>, vector<32x16xf32>
    tpu.vector_store %arg12[%c0_29, %c128], %13 {strides = array<i32>} : memref<32x148xf32, #tpu.memory_space<vmem>>, vector<32x16xf32>,
    %c0_30 = arith.constant 0 : index
    %c128_31 = arith.constant 128 : index
    %29 = vector.load %arg13[%c0_30, %c128_31] : memref<32x148xf32, #tpu.memory_space<vmem>>, vector<32x16xf32>
    tpu.vector_store %arg13[%c0_30, %c128_31], %20 {strides = array<i32>} : memref<32x148xf32, #tpu.memory_space<vmem>>, vector<32x16xf32>,
    %30 = vector.extract_strided_slice %21 {offsets = [0, 0], sizes = [16, 16], strides = [1, 1]} : vector<32x16xf32> to vector<16x16xf32>
    %c0_32 = arith.constant 0 : index
    %c126 = arith.constant 126 : index
    %31 = vector.load %arg12[%c0_32, %c126] : memref<32x148xf32, #tpu.memory_space<vmem>>, vector<16x16xf32>
    %32 = arith.mulf %30, %31 : vector<16x16xf32>
    %33 = vector.extract_strided_slice %32 {offsets = [0, 0], sizes = [4, 16], strides = [1, 1]} : vector<16x16xf32> to vector<4x16xf32>
    %cst_33 = arith.constant dense<0.000000e+00> : vector<16xf32>
    %34 = vector.multi_reduction <add>, %33, %cst_33 [0] : vector<4x16xf32> to vector<16xf32>
    %35 = vector.shape_cast %34 : vector<16xf32> to vector<1x16xf32>
    %36 = vector.extract_strided_slice %32 {offsets = [4, 0], sizes = [4, 16], strides = [1, 1]} : vector<16x16xf32> to vector<4x16xf32>
    %cst_34 = arith.constant dense<0.000000e+00> : vector<16xf32>
    %37 = vector.multi_reduction <add>, %36, %cst_34 [0] : vector<4x16xf32> to vector<16xf32>
    %38 = vector.shape_cast %37 : vector<16xf32> to vector<1x16xf32>
    %39 = vector.extract_strided_slice %32 {offsets = [8, 0], sizes = [4, 16], strides = [1, 1]} : vector<16x16xf32> to vector<4x16xf32>
    %cst_35 = arith.constant dense<0.000000e+00> : vector<16xf32>
    %40 = vector.multi_reduction <add>, %39, %cst_35 [0] : vector<4x16xf32> to vector<16xf32>
    %41 = vector.shape_cast %40 : vector<16xf32> to vector<1x16xf32>
    %42 = vector.extract_strided_slice %32 {offsets = [12, 0], sizes = [4, 16], strides = [1, 1]} : vector<16x16xf32> to vector<4x16xf32>
    %cst_36 = arith.constant dense<0.000000e+00> : vector<16xf32>
    %43 = vector.multi_reduction <add>, %42, %cst_36 [0] : vector<4x16xf32> to vector<16xf32>
    %44 = vector.shape_cast %43 : vector<16xf32> to vector<1x16xf32>
    %c0_37 = arith.constant 0 : index
    %c127 = arith.constant 127 : index
    %45 = vector.load %arg12[%c0_37, %c127] : memref<32x148xf32, #tpu.memory_space<vmem>>, vector<16x16xf32>
    %46 = arith.mulf %30, %45 : vector<16x16xf32>
    %47 = vector.extract_strided_slice %46 {offsets = [0, 0], sizes = [4, 16], strides = [1, 1]} : vector<16x16xf32> to vector<4x16xf32>
    %cst_38 = arith.constant dense<0.000000e+00> : vector<16xf32>
    %48 = vector.multi_reduction <add>, %47, %cst_38 [0] : vector<4x16xf32> to vector<16xf32>
    %49 = vector.shape_cast %48 : vector<16xf32> to vector<1x16xf32>
    %50 = vector.extract_strided_slice %46 {offsets = [4, 0], sizes = [4, 16], strides = [1, 1]} : vector<16x16xf32> to vector<4x16xf32>
    %cst_39 = arith.constant dense<0.000000e+00> : vector<16xf32>
    %51 = vector.multi_reduction <add>, %50, %cst_39 [0] : vector<4x16xf32> to vector<16xf32>
    %52 = vector.shape_cast %51 : vector<16xf32> to vector<1x16xf32>
    %53 = vector.extract_strided_slice %46 {offsets = [8, 0], sizes = [4, 16], strides = [1, 1]} : vector<16x16xf32> to vector<4x16xf32>
    %cst_40 = arith.constant dense<0.000000e+00> : vector<16xf32>
    %54 = vector.multi_reduction <add>, %53, %cst_40 [0] : vector<4x16xf32> to vector<16xf32>
    %55 = vector.shape_cast %54 : vector<16xf32> to vector<1x16xf32>
    %56 = vector.extract_strided_slice %46 {offsets = [12, 0], sizes = [4, 16], strides = [1, 1]} : vector<16x16xf32> to vector<4x16xf32>
    %cst_41 = arith.constant dense<0.000000e+00> : vector<16xf32>
    %57 = vector.multi_reduction <add>, %56, %cst_41 [0] : vector<4x16xf32> to vector<16xf32>
    %58 = vector.shape_cast %57 : vector<16xf32> to vector<1x16xf32>
    %c0_42 = arith.constant 0 : index
    %c128_43 = arith.constant 128 : index
    %59 = vector.load %arg12[%c0_42, %c128_43] : memref<32x148xf32, #tpu.memory_space<vmem>>, vector<16x16xf32>
    %60 = arith.mulf %30, %59 : vector<16x16xf32>
    %61 = vector.extract_strided_slice %60 {offsets = [0, 0], sizes = [4, 16], strides = [1, 1]} : vector<16x16xf32> to vector<4x16xf32>
    %cst_44 = arith.constant dense<0.000000e+00> : vector<16xf32>
    %62 = vector.multi_reduction <add>, %61, %cst_44 [0] : vector<4x16xf32> to vector<16xf32>
    %63 = vector.shape_cast %62 : vector<16xf32> to vector<1x16xf32>
    %64 = vector.extract_strided_slice %60 {offsets = [4, 0], sizes = [4, 16], strides = [1, 1]} : vector<16x16xf32> to vector<4x16xf32>
    %cst_45 = arith.constant dense<0.000000e+00> : vector<16xf32>
    %65 = vector.multi_reduction <add>, %64, %cst_45 [0] : vector<4x16xf32> to vector<16xf32>
    %66 = vector.shape_cast %65 : vector<16xf32> to vector<1x16xf32>
    %67 = vector.extract_strided_slice %60 {offsets = [8, 0], sizes = [4, 16], strides = [1, 1]} : vector<16x16xf32> to vector<4x16xf32>
    %cst_46 = arith.constant dense<0.000000e+00> : vector<16xf32>
    %68 = vector.multi_reduction <add>, %67, %cst_46 [0] : vector<4x16xf32> to vector<16xf32>
    %69 = vector.shape_cast %68 : vector<16xf32> to vector<1x16xf32>
    %70 = vector.extract_strided_slice %60 {offsets = [12, 0], sizes = [4, 16], strides = [1, 1]} : vector<16x16xf32> to vector<4x16xf32>
    %cst_47 = arith.constant dense<0.000000e+00> : vector<16xf32>
    %71 = vector.multi_reduction <add>, %70, %cst_47 [0] : vector<4x16xf32> to vector<16xf32>
    %72 = vector.shape_cast %71 : vector<16xf32> to vector<1x16xf32>
    %c0_48 = arith.constant 0 : index
    %c129 = arith.constant 129 : index
    %73 = vector.load %arg12[%c0_48, %c129] : memref<32x148xf32, #tpu.memory_space<vmem>>, vector<16x16xf32>
    %74 = arith.mulf %30, %73 : vector<16x16xf32>
    %75 = vector.extract_strided_slice %74 {offsets = [0, 0], sizes = [4, 16], strides = [1, 1]} : vector<16x16xf32> to vector<4x16xf32>
    %cst_49 = arith.constant dense<0.000000e+00> : vector<16xf32>
    %76 = vector.multi_reduction <add>, %75, %cst_49 [0] : vector<4x16xf32> to vector<16xf32>
    %77 = vector.shape_cast %76 : vector<16xf32> to vector<1x16xf32>
    %78 = vector.extract_strided_slice %74 {offsets = [4, 0], sizes = [4, 16], strides = [1, 1]} : vector<16x16xf32> to vector<4x16xf32>
    %cst_50 = arith.constant dense<0.000000e+00> : vector<16xf32>
    %79 = vector.multi_reduction <add>, %78, %cst_50 [0] : vector<4x16xf32> to vector<16xf32>
    %80 = vector.shape_cast %79 : vector<16xf32> to vector<1x16xf32>
    %81 = vector.extract_strided_slice %74 {offsets = [8, 0], sizes = [4, 16], strides = [1, 1]} : vector<16x16xf32> to vector<4x16xf32>
    %cst_51 = arith.constant dense<0.000000e+00> : vector<16xf32>
    %82 = vector.multi_reduction <add>, %81, %cst_51 [0] : vector<4x16xf32> to vector<16xf32>
    %83 = vector.shape_cast %82 : vector<16xf32> to vector<1x16xf32>
    %84 = vector.extract_strided_slice %74 {offsets = [12, 0], sizes = [4, 16], strides = [1, 1]} : vector<16x16xf32> to vector<4x16xf32>
    %cst_52 = arith.constant dense<0.000000e+00> : vector<16xf32>
    %85 = vector.multi_reduction <add>, %84, %cst_52 [0] : vector<4x16xf32> to vector<16xf32>
    %86 = vector.shape_cast %85 : vector<16xf32> to vector<1x16xf32>
    %c0_53 = arith.constant 0 : index
    %c130 = arith.constant 130 : index
    %87 = vector.load %arg12[%c0_53, %c130] : memref<32x148xf32, #tpu.memory_space<vmem>>, vector<16x16xf32>
    %88 = arith.mulf %30, %87 : vector<16x16xf32>
    %89 = vector.extract_strided_slice %88 {offsets = [0, 0], sizes = [4, 16], strides = [1, 1]} : vector<16x16xf32> to vector<4x16xf32>
    %cst_54 = arith.constant dense<0.000000e+00> : vector<16xf32>
    %90 = vector.multi_reduction <add>, %89, %cst_54 [0] : vector<4x16xf32> to vector<16xf32>
    %91 = vector.shape_cast %90 : vector<16xf32> to vector<1x16xf32>
    %92 = vector.extract_strided_slice %88 {offsets = [4, 0], sizes = [4, 16], strides = [1, 1]} : vector<16x16xf32> to vector<4x16xf32>
    %cst_55 = arith.constant dense<0.000000e+00> : vector<16xf32>
    %93 = vector.multi_reduction <add>, %92, %cst_55 [0] : vector<4x16xf32> to vector<16xf32>
    %94 = vector.shape_cast %93 : vector<16xf32> to vector<1x16xf32>
    %95 = vector.extract_strided_slice %88 {offsets = [8, 0], sizes = [4, 16], strides = [1, 1]} : vector<16x16xf32> to vector<4x16xf32>
    %cst_56 = arith.constant dense<0.000000e+00> : vector<16xf32>
    %96 = vector.multi_reduction <add>, %95, %cst_56 [0] : vector<4x16xf32> to vector<16xf32>
    %97 = vector.shape_cast %96 : vector<16xf32> to vector<1x16xf32>
    %98 = vector.extract_strided_slice %88 {offsets = [12, 0], sizes = [4, 16], strides = [1, 1]} : vector<16x16xf32> to vector<4x16xf32>
    %cst_57 = arith.constant dense<0.000000e+00> : vector<16xf32>
    %99 = vector.multi_reduction <add>, %98, %cst_57 [0] : vector<4x16xf32> to vector<16xf32>
    %100 = vector.shape_cast %99 : vector<16xf32> to vector<1x16xf32>
    %101 = vector.extract_strided_slice %21 {offsets = [16, 0], sizes = [4, 16], strides = [1, 1]} : vector<32x16xf32> to vector<4x16xf32>
    %c16 = arith.constant 16 : index
    %c124_58 = arith.constant 124 : index
    %102 = vector.load %arg12[%c16, %c124_58] : memref<32x148xf32, #tpu.memory_space<vmem>>, vector<4x16xf32>
    %103 = arith.mulf %101, %102 : vector<4x16xf32>
    %cst_59 = arith.constant dense<0.000000e+00> : vector<16xf32>
    %104 = vector.multi_reduction <add>, %103, %cst_59 [0] : vector<4x16xf32> to vector<16xf32>
    %105 = vector.shape_cast %104 : vector<16xf32> to vector<1x16xf32>
    %c16_60 = arith.constant 16 : index
    %c125 = arith.constant 125 : index
    %106 = vector.load %arg12[%c16_60, %c125] : memref<32x148xf32, #tpu.memory_space<vmem>>, vector<4x16xf32>
    %107 = arith.mulf %101, %106 : vector<4x16xf32>
    %cst_61 = arith.constant dense<0.000000e+00> : vector<16xf32>
    %108 = vector.multi_reduction <add>, %107, %cst_61 [0] : vector<4x16xf32> to vector<16xf32>
    %109 = vector.shape_cast %108 : vector<16xf32> to vector<1x16xf32>
    %c16_62 = arith.constant 16 : index
    %c126_63 = arith.constant 126 : index
    %110 = vector.load %arg12[%c16_62, %c126_63] : memref<32x148xf32, #tpu.memory_space<vmem>>, vector<4x16xf32>
    %111 = arith.mulf %101, %110 : vector<4x16xf32>
    %cst_64 = arith.constant dense<0.000000e+00> : vector<16xf32>
    %112 = vector.multi_reduction <add>, %111, %cst_64 [0] : vector<4x16xf32> to vector<16xf32>
    %113 = vector.shape_cast %112 : vector<16xf32> to vector<1x16xf32>
    %c16_65 = arith.constant 16 : index
    %c127_66 = arith.constant 127 : index
    %114 = vector.load %arg12[%c16_65, %c127_66] : memref<32x148xf32, #tpu.memory_space<vmem>>, vector<4x16xf32>
    %115 = arith.mulf %101, %114 : vector<4x16xf32>
    %cst_67 = arith.constant dense<0.000000e+00> : vector<16xf32>
    %116 = vector.multi_reduction <add>, %115, %cst_67 [0] : vector<4x16xf32> to vector<16xf32>
    %117 = vector.shape_cast %116 : vector<16xf32> to vector<1x16xf32>
    %c16_68 = arith.constant 16 : index
    %c128_69 = arith.constant 128 : index
    %118 = vector.load %arg12[%c16_68, %c128_69] : memref<32x148xf32, #tpu.memory_space<vmem>>, vector<4x16xf32>
    %119 = arith.mulf %101, %118 : vector<4x16xf32>
    %cst_70 = arith.constant dense<0.000000e+00> : vector<16xf32>
    %120 = vector.multi_reduction <add>, %119, %cst_70 [0] : vector<4x16xf32> to vector<16xf32>
    %121 = vector.shape_cast %120 : vector<16xf32> to vector<1x16xf32>
    %122 = vector.extract_strided_slice %21 {offsets = [20, 0], sizes = [4, 16], strides = [1, 1]} : vector<32x16xf32> to vector<4x16xf32>
    %c20 = arith.constant 20 : index
    %c125_71 = arith.constant 125 : index
    %123 = vector.load %arg12[%c20, %c125_71] : memref<32x148xf32, #tpu.memory_space<vmem>>, vector<4x16xf32>
    %124 = arith.mulf %122, %123 : vector<4x16xf32>
    %cst_72 = arith.constant dense<0.000000e+00> : vector<16xf32>
    %125 = vector.multi_reduction <add>, %124, %cst_72 [0] : vector<4x16xf32> to vector<16xf32>
    %126 = vector.shape_cast %125 : vector<16xf32> to vector<1x16xf32>
    %c20_73 = arith.constant 20 : index
    %c126_74 = arith.constant 126 : index
    %127 = vector.load %arg12[%c20_73, %c126_74] : memref<32x148xf32, #tpu.memory_space<vmem>>, vector<4x16xf32>
    %128 = arith.mulf %122, %127 : vector<4x16xf32>
    %cst_75 = arith.constant dense<0.000000e+00> : vector<16xf32>
    %129 = vector.multi_reduction <add>, %128, %cst_75 [0] : vector<4x16xf32> to vector<16xf32>
    %130 = vector.shape_cast %129 : vector<16xf32> to vector<1x16xf32>
    %c20_76 = arith.constant 20 : index
    %c127_77 = arith.constant 127 : index
    %131 = vector.load %arg12[%c20_76, %c127_77] : memref<32x148xf32, #tpu.memory_space<vmem>>, vector<4x16xf32>
    %132 = arith.mulf %122, %131 : vector<4x16xf32>
    %cst_78 = arith.constant dense<0.000000e+00> : vector<16xf32>
    %133 = vector.multi_reduction <add>, %132, %cst_78 [0] : vector<4x16xf32> to vector<16xf32>
    %134 = vector.shape_cast %133 : vector<16xf32> to vector<1x16xf32>
    %c20_79 = arith.constant 20 : index
    %c128_80 = arith.constant 128 : index
    %135 = vector.load %arg12[%c20_79, %c128_80] : memref<32x148xf32, #tpu.memory_space<vmem>>, vector<4x16xf32>
    %136 = arith.mulf %122, %135 : vector<4x16xf32>
    %cst_81 = arith.constant dense<0.000000e+00> : vector<16xf32>
    %137 = vector.multi_reduction <add>, %136, %cst_81 [0] : vector<4x16xf32> to vector<16xf32>
    %138 = vector.shape_cast %137 : vector<16xf32> to vector<1x16xf32>
    %c20_82 = arith.constant 20 : index
    %c129_83 = arith.constant 129 : index
    %139 = vector.load %arg12[%c20_82, %c129_83] : memref<32x148xf32, #tpu.memory_space<vmem>>, vector<4x16xf32>
    %140 = arith.mulf %122, %139 : vector<4x16xf32>
    %cst_84 = arith.constant dense<0.000000e+00> : vector<16xf32>
    %141 = vector.multi_reduction <add>, %140, %cst_84 [0] : vector<4x16xf32> to vector<16xf32>
    %142 = vector.shape_cast %141 : vector<16xf32> to vector<1x16xf32>
    %143 = vector.extract_strided_slice %21 {offsets = [24, 0], sizes = [4, 16], strides = [1, 1]} : vector<32x16xf32> to vector<4x16xf32>
    %144 = vector.extract_strided_slice %21 {offsets = [28, 0], sizes = [4, 16], strides = [1, 1]} : vector<32x16xf32> to vector<4x16xf32>
    %c24 = arith.constant 24 : index
    %c127_85 = arith.constant 127 : index
    %145 = vector.load %arg12[%c24, %c127_85] : memref<32x148xf32, #tpu.memory_space<vmem>>, vector<4x16xf32>
    %146 = arith.mulf %143, %145 : vector<4x16xf32>
    %cst_86 = arith.constant dense<0.000000e+00> : vector<16xf32>
    %147 = vector.multi_reduction <add>, %146, %cst_86 [0] : vector<4x16xf32> to vector<16xf32>
    %148 = vector.shape_cast %147 : vector<16xf32> to vector<1x16xf32>
    %c24_87 = arith.constant 24 : index
    %c128_88 = arith.constant 128 : index
    %149 = vector.load %arg12[%c24_87, %c128_88] : memref<32x148xf32, #tpu.memory_space<vmem>>, vector<4x16xf32>
    %150 = arith.mulf %143, %149 : vector<4x16xf32>
    %cst_89 = arith.constant dense<0.000000e+00> : vector<16xf32>
    %151 = vector.multi_reduction <add>, %150, %cst_89 [0] : vector<4x16xf32> to vector<16xf32>
    %152 = vector.shape_cast %151 : vector<16xf32> to vector<1x16xf32>
    %153 = arith.mulf %144, %149 : vector<4x16xf32>
    %cst_90 = arith.constant dense<0.000000e+00> : vector<16xf32>
    %154 = vector.multi_reduction <add>, %153, %cst_90 [0] : vector<4x16xf32> to vector<16xf32>
    %155 = vector.shape_cast %154 : vector<16xf32> to vector<1x16xf32>
    %c24_91 = arith.constant 24 : index
    %c129_92 = arith.constant 129 : index
    %156 = vector.load %arg12[%c24_91, %c129_92] : memref<32x148xf32, #tpu.memory_space<vmem>>, vector<4x16xf32>
    %157 = arith.mulf %143, %156 : vector<4x16xf32>
    %cst_93 = arith.constant dense<0.000000e+00> : vector<16xf32>
    %158 = vector.multi_reduction <add>, %157, %cst_93 [0] : vector<4x16xf32> to vector<16xf32>
    %159 = vector.shape_cast %158 : vector<16xf32> to vector<1x16xf32>
    %160 = arith.mulf %144, %156 : vector<4x16xf32>
    %cst_94 = arith.constant dense<0.000000e+00> : vector<16xf32>
    %161 = vector.multi_reduction <add>, %160, %cst_94 [0] : vector<4x16xf32> to vector<16xf32>
    %162 = vector.shape_cast %161 : vector<16xf32> to vector<1x16xf32>
    %c24_95 = arith.constant 24 : index
    %c130_96 = arith.constant 130 : index
    %163 = vector.load %arg12[%c24_95, %c130_96] : memref<32x148xf32, #tpu.memory_space<vmem>>, vector<4x16xf32>
    %164 = arith.mulf %143, %163 : vector<4x16xf32>
    %cst_97 = arith.constant dense<0.000000e+00> : vector<16xf32>
    %165 = vector.multi_reduction <add>, %164, %cst_97 [0] : vector<4x16xf32> to vector<16xf32>
    %166 = vector.shape_cast %165 : vector<16xf32> to vector<1x16xf32>
    %167 = arith.mulf %144, %163 : vector<4x16xf32>
    %cst_98 = arith.constant dense<0.000000e+00> : vector<16xf32>
    %168 = vector.multi_reduction <add>, %167, %cst_98 [0] : vector<4x16xf32> to vector<16xf32>
    %169 = vector.shape_cast %168 : vector<16xf32> to vector<1x16xf32>
    %c24_99 = arith.constant 24 : index
    %c131 = arith.constant 131 : index
    %170 = vector.load %arg12[%c24_99, %c131] : memref<32x148xf32, #tpu.memory_space<vmem>>, vector<4x16xf32>
    %171 = arith.mulf %143, %170 : vector<4x16xf32>
    %cst_100 = arith.constant dense<0.000000e+00> : vector<16xf32>
    %172 = vector.multi_reduction <add>, %171, %cst_100 [0] : vector<4x16xf32> to vector<16xf32>
    %173 = vector.shape_cast %172 : vector<16xf32> to vector<1x16xf32>
    %174 = arith.mulf %144, %170 : vector<4x16xf32>
    %cst_101 = arith.constant dense<0.000000e+00> : vector<16xf32>
    %175 = vector.multi_reduction <add>, %174, %cst_101 [0] : vector<4x16xf32> to vector<16xf32>
    %176 = vector.shape_cast %175 : vector<16xf32> to vector<1x16xf32>
    %c24_102 = arith.constant 24 : index
    %c132 = arith.constant 132 : index
    %177 = vector.load %arg12[%c24_102, %c132] : memref<32x148xf32, #tpu.memory_space<vmem>>, vector<4x16xf32>
    %178 = arith.mulf %144, %177 : vector<4x16xf32>
    %cst_103 = arith.constant dense<0.000000e+00> : vector<16xf32>
    %179 = vector.multi_reduction <add>, %178, %cst_103 [0] : vector<4x16xf32> to vector<16xf32>
    %180 = vector.shape_cast %179 : vector<16xf32> to vector<1x16xf32>
    %181 = tpu.concatenate %35, %49, %63, %77, %91 in 0 : vector<1x16xf32>, vector<1x16xf32>, vector<1x16xf32>, vector<1x16xf32>, vector<1x16xf32> -> vector<5x16xf32>
    %182 = vector.extract_strided_slice %22 {offsets = [0, 0], sizes = [5, 16], strides = [1, 1]} : vector<40x16xf32> to vector<5x16xf32>
    %cst_104 = arith.constant 0.000000e+00 : f32
    %183 = vector.broadcast %cst_104 : f32 to vector<5x16xf32>
    %184 = arith.cmpf oeq, %181, %183 : vector<5x16xf32>
    %185 = arith.addf %181, %182 : vector<5x16xf32>
    %cst_105 = arith.constant 5.000000e-01 : f32
    %186 = vector.broadcast %cst_105 : f32 to vector<5x16xf32>
    %187 = arith.mulf %185, %186 : vector<5x16xf32>
    %cst_106 = arith.constant 0xFF800000 : f32
    %188 = vector.broadcast %cst_106 : f32 to vector<5x16xf32>
    %189 = arith.select %184, %188, %187 : vector<5x16xi1>, vector<5x16xf32>
    %cst_107 = arith.constant dense<0xFF800000> : vector<16xf32>
    %190 = vector.multi_reduction <maximumf>, %189, %cst_107 [0] : vector<5x16xf32> to vector<16xf32>
    %191 = vector.shape_cast %190 : vector<16xf32> to vector<1x16xf32>
    %192 = vector.broadcast %191 : vector<1x16xf32> to vector<5x16xf32>
    %193 = arith.subf %189, %192 : vector<5x16xf32>
    %194 = math.exp %193 : vector<5x16xf32>
    %cst_108 = arith.constant dense<0.000000e+00> : vector<16xf32>
    %195 = vector.multi_reduction <add>, %194, %cst_108 [0] : vector<5x16xf32> to vector<16xf32>
    %196 = vector.shape_cast %195 : vector<16xf32> to vector<1x16xf32>
    %cst_109 = arith.constant 1.000000e+00 : f32
    %197 = vector.broadcast %cst_109 : f32 to vector<1x16xf32>
    %198 = arith.divf %197, %196 : vector<1x16xf32>
    %199 = vector.broadcast %198 : vector<1x16xf32> to vector<5x16xf32>
    %200 = arith.mulf %194, %199 : vector<5x16xf32>
    %201 = vector.extract_strided_slice %200 {offsets = [0, 0], sizes = [1, 16], strides = [1, 1]} : vector<5x16xf32> to vector<1x16xf32>
    %c0_110 = arith.constant 0 : index
    %c126_111 = arith.constant 126 : index
    %202 = vector.load %arg13[%c0_110, %c126_111] : memref<32x148xf32, #tpu.memory_space<vmem>>, vector<4x16xf32>
    %203 = vector.broadcast %201 : vector<1x16xf32> to vector<4x16xf32>
    %204 = arith.mulf %203, %202 : vector<4x16xf32>
    %205 = vector.extract_strided_slice %200 {offsets = [1, 0], sizes = [1, 16], strides = [1, 1]} : vector<5x16xf32> to vector<1x16xf32>
    %c0_112 = arith.constant 0 : index
    %c127_113 = arith.constant 127 : index
    %206 = vector.load %arg13[%c0_112, %c127_113] : memref<32x148xf32, #tpu.memory_space<vmem>>, vector<4x16xf32>
    %207 = vector.broadcast %205 : vector<1x16xf32> to vector<4x16xf32>
    %208 = arith.mulf %207, %206 : vector<4x16xf32>
    %209 = arith.addf %204, %208 : vector<4x16xf32>
    %210 = vector.extract_strided_slice %200 {offsets = [2, 0], sizes = [1, 16], strides = [1, 1]} : vector<5x16xf32> to vector<1x16xf32>
    %c0_114 = arith.constant 0 : index
    %c128_115 = arith.constant 128 : index
    %211 = vector.load %arg13[%c0_114, %c128_115] : memref<32x148xf32, #tpu.memory_space<vmem>>, vector<4x16xf32>
    %212 = vector.broadcast %210 : vector<1x16xf32> to vector<4x16xf32>
    %213 = arith.mulf %212, %211 : vector<4x16xf32>
    %214 = arith.addf %209, %213 : vector<4x16xf32>
    %215 = vector.extract_strided_slice %200 {offsets = [3, 0], sizes = [1, 16], strides = [1, 1]} : vector<5x16xf32> to vector<1x16xf32>
    %c0_116 = arith.constant 0 : index
    %c129_117 = arith.constant 129 : index
    %216 = vector.load %arg13[%c0_116, %c129_117] : memref<32x148xf32, #tpu.memory_space<vmem>>, vector<4x16xf32>
    %217 = vector.broadcast %215 : vector<1x16xf32> to vector<4x16xf32>
    %218 = arith.mulf %217, %216 : vector<4x16xf32>
    %219 = arith.addf %214, %218 : vector<4x16xf32>
    %220 = vector.extract_strided_slice %200 {offsets = [4, 0], sizes = [1, 16], strides = [1, 1]} : vector<5x16xf32> to vector<1x16xf32>
    %c0_118 = arith.constant 0 : index
    %c130_119 = arith.constant 130 : index
    %221 = vector.load %arg13[%c0_118, %c130_119] : memref<32x148xf32, #tpu.memory_space<vmem>>, vector<4x16xf32>
    %222 = vector.broadcast %220 : vector<1x16xf32> to vector<4x16xf32>
    %223 = arith.mulf %222, %221 : vector<4x16xf32>
    %224 = arith.addf %219, %223 : vector<4x16xf32>
    %225 = tpu.concatenate %38, %52, %66, %80, %94 in 0 : vector<1x16xf32>, vector<1x16xf32>, vector<1x16xf32>, vector<1x16xf32>, vector<1x16xf32> -> vector<5x16xf32>
    %226 = vector.extract_strided_slice %22 {offsets = [5, 0], sizes = [5, 16], strides = [1, 1]} : vector<40x16xf32> to vector<5x16xf32>
    %cst_120 = arith.constant 0.000000e+00 : f32
    %227 = vector.broadcast %cst_120 : f32 to vector<5x16xf32>
    %228 = arith.cmpf oeq, %225, %227 : vector<5x16xf32>
    %229 = arith.addf %225, %226 : vector<5x16xf32>
    %cst_121 = arith.constant 5.000000e-01 : f32
    %230 = vector.broadcast %cst_121 : f32 to vector<5x16xf32>
    %231 = arith.mulf %229, %230 : vector<5x16xf32>
    %cst_122 = arith.constant 0xFF800000 : f32
    %232 = vector.broadcast %cst_122 : f32 to vector<5x16xf32>
    %233 = arith.select %228, %232, %231 : vector<5x16xi1>, vector<5x16xf32>
    %cst_123 = arith.constant dense<0xFF800000> : vector<16xf32>
    %234 = vector.multi_reduction <maximumf>, %233, %cst_123 [0] : vector<5x16xf32> to vector<16xf32>
    %235 = vector.shape_cast %234 : vector<16xf32> to vector<1x16xf32>
    %236 = vector.broadcast %235 : vector<1x16xf32> to vector<5x16xf32>
    %237 = arith.subf %233, %236 : vector<5x16xf32>
    %238 = math.exp %237 : vector<5x16xf32>
    %cst_124 = arith.constant dense<0.000000e+00> : vector<16xf32>
    %239 = vector.multi_reduction <add>, %238, %cst_124 [0] : vector<5x16xf32> to vector<16xf32>
    %240 = vector.shape_cast %239 : vector<16xf32> to vector<1x16xf32>
    %cst_125 = arith.constant 1.000000e+00 : f32
    %241 = vector.broadcast %cst_125 : f32 to vector<1x16xf32>
    %242 = arith.divf %241, %240 : vector<1x16xf32>
    %243 = vector.broadcast %242 : vector<1x16xf32> to vector<5x16xf32>
    %244 = arith.mulf %238, %243 : vector<5x16xf32>
    %245 = vector.extract_strided_slice %244 {offsets = [0, 0], sizes = [1, 16], strides = [1, 1]} : vector<5x16xf32> to vector<1x16xf32>
    %c4 = arith.constant 4 : index
    %c126_126 = arith.constant 126 : index
    %246 = vector.load %arg13[%c4, %c126_126] : memref<32x148xf32, #tpu.memory_space<vmem>>, vector<4x16xf32>
    %247 = vector.broadcast %245 : vector<1x16xf32> to vector<4x16xf32>
    %248 = arith.mulf %247, %246 : vector<4x16xf32>
    %249 = vector.extract_strided_slice %244 {offsets = [1, 0], sizes = [1, 16], strides = [1, 1]} : vector<5x16xf32> to vector<1x16xf32>
    %c4_127 = arith.constant 4 : index
    %c127_128 = arith.constant 127 : index
    %250 = vector.load %arg13[%c4_127, %c127_128] : memref<32x148xf32, #tpu.memory_space<vmem>>, vector<4x16xf32>
    %251 = vector.broadcast %249 : vector<1x16xf32> to vector<4x16xf32>
    %252 = arith.mulf %251, %250 : vector<4x16xf32>
    %253 = arith.addf %248, %252 : vector<4x16xf32>
    %254 = vector.extract_strided_slice %244 {offsets = [2, 0], sizes = [1, 16], strides = [1, 1]} : vector<5x16xf32> to vector<1x16xf32>
    %c4_129 = arith.constant 4 : index
    %c128_130 = arith.constant 128 : index
    %255 = vector.load %arg13[%c4_129, %c128_130] : memref<32x148xf32, #tpu.memory_space<vmem>>, vector<4x16xf32>
    %256 = vector.broadcast %254 : vector<1x16xf32> to vector<4x16xf32>
    %257 = arith.mulf %256, %255 : vector<4x16xf32>
    %258 = arith.addf %253, %257 : vector<4x16xf32>
    %259 = vector.extract_strided_slice %244 {offsets = [3, 0], sizes = [1, 16], strides = [1, 1]} : vector<5x16xf32> to vector<1x16xf32>
    %c4_131 = arith.constant 4 : index
    %c129_132 = arith.constant 129 : index
    %260 = vector.load %arg13[%c4_131, %c129_132] : memref<32x148xf32, #tpu.memory_space<vmem>>, vector<4x16xf32>
    %261 = vector.broadcast %259 : vector<1x16xf32> to vector<4x16xf32>
    %262 = arith.mulf %261, %260 : vector<4x16xf32>
    %263 = arith.addf %258, %262 : vector<4x16xf32>
    %264 = vector.extract_strided_slice %244 {offsets = [4, 0], sizes = [1, 16], strides = [1, 1]} : vector<5x16xf32> to vector<1x16xf32>
    %c4_133 = arith.constant 4 : index
    %c130_134 = arith.constant 130 : index
    %265 = vector.load %arg13[%c4_133, %c130_134] : memref<32x148xf32, #tpu.memory_space<vmem>>, vector<4x16xf32>
    %266 = vector.broadcast %264 : vector<1x16xf32> to vector<4x16xf32>
    %267 = arith.mulf %266, %265 : vector<4x16xf32>
    %268 = arith.addf %263, %267 : vector<4x16xf32>
    %269 = tpu.concatenate %41, %55, %69, %83, %97 in 0 : vector<1x16xf32>, vector<1x16xf32>, vector<1x16xf32>, vector<1x16xf32>, vector<1x16xf32> -> vector<5x16xf32>
    %270 = vector.extract_strided_slice %22 {offsets = [10, 0], sizes = [5, 16], strides = [1, 1]} : vector<40x16xf32> to vector<5x16xf32>
    %cst_135 = arith.constant 0.000000e+00 : f32
    %271 = vector.broadcast %cst_135 : f32 to vector<5x16xf32>
    %272 = arith.cmpf oeq, %269, %271 : vector<5x16xf32>
    %273 = arith.addf %269, %270 : vector<5x16xf32>
    %cst_136 = arith.constant 5.000000e-01 : f32
    %274 = vector.broadcast %cst_136 : f32 to vector<5x16xf32>
    %275 = arith.mulf %273, %274 : vector<5x16xf32>
    %cst_137 = arith.constant 0xFF800000 : f32
    %276 = vector.broadcast %cst_137 : f32 to vector<5x16xf32>
    %277 = arith.select %272, %276, %275 : vector<5x16xi1>, vector<5x16xf32>
    %cst_138 = arith.constant dense<0xFF800000> : vector<16xf32>
    %278 = vector.multi_reduction <maximumf>, %277, %cst_138 [0] : vector<5x16xf32> to vector<16xf32>
    %279 = vector.shape_cast %278 : vector<16xf32> to vector<1x16xf32>
    %280 = vector.broadcast %279 : vector<1x16xf32> to vector<5x16xf32>
    %281 = arith.subf %277, %280 : vector<5x16xf32>
    %282 = math.exp %281 : vector<5x16xf32>
    %cst_139 = arith.constant dense<0.000000e+00> : vector<16xf32>
    %283 = vector.multi_reduction <add>, %282, %cst_139 [0] : vector<5x16xf32> to vector<16xf32>
    %284 = vector.shape_cast %283 : vector<16xf32> to vector<1x16xf32>
    %cst_140 = arith.constant 1.000000e+00 : f32
    %285 = vector.broadcast %cst_140 : f32 to vector<1x16xf32>
    %286 = arith.divf %285, %284 : vector<1x16xf32>
    %287 = vector.broadcast %286 : vector<1x16xf32> to vector<5x16xf32>
    %288 = arith.mulf %282, %287 : vector<5x16xf32>
    %289 = vector.extract_strided_slice %288 {offsets = [0, 0], sizes = [1, 16], strides = [1, 1]} : vector<5x16xf32> to vector<1x16xf32>
    %c8 = arith.constant 8 : index
    %c126_141 = arith.constant 126 : index
    %290 = vector.load %arg13[%c8, %c126_141] : memref<32x148xf32, #tpu.memory_space<vmem>>, vector<4x16xf32>
    %291 = vector.broadcast %289 : vector<1x16xf32> to vector<4x16xf32>
    %292 = arith.mulf %291, %290 : vector<4x16xf32>
    %293 = vector.extract_strided_slice %288 {offsets = [1, 0], sizes = [1, 16], strides = [1, 1]} : vector<5x16xf32> to vector<1x16xf32>
    %c8_142 = arith.constant 8 : index
    %c127_143 = arith.constant 127 : index
    %294 = vector.load %arg13[%c8_142, %c127_143] : memref<32x148xf32, #tpu.memory_space<vmem>>, vector<4x16xf32>
    %295 = vector.broadcast %293 : vector<1x16xf32> to vector<4x16xf32>
    %296 = arith.mulf %295, %294 : vector<4x16xf32>
    %297 = arith.addf %292, %296 : vector<4x16xf32>
    %298 = vector.extract_strided_slice %288 {offsets = [2, 0], sizes = [1, 16], strides = [1, 1]} : vector<5x16xf32> to vector<1x16xf32>
    %c8_144 = arith.constant 8 : index
    %c128_145 = arith.constant 128 : index
    %299 = vector.load %arg13[%c8_144, %c128_145] : memref<32x148xf32, #tpu.memory_space<vmem>>, vector<4x16xf32>
    %300 = vector.broadcast %298 : vector<1x16xf32> to vector<4x16xf32>
    %301 = arith.mulf %300, %299 : vector<4x16xf32>
    %302 = arith.addf %297, %301 : vector<4x16xf32>
    %303 = vector.extract_strided_slice %288 {offsets = [3, 0], sizes = [1, 16], strides = [1, 1]} : vector<5x16xf32> to vector<1x16xf32>
    %c8_146 = arith.constant 8 : index
    %c129_147 = arith.constant 129 : index
    %304 = vector.load %arg13[%c8_146, %c129_147] : memref<32x148xf32, #tpu.memory_space<vmem>>, vector<4x16xf32>
    %305 = vector.broadcast %303 : vector<1x16xf32> to vector<4x16xf32>
    %306 = arith.mulf %305, %304 : vector<4x16xf32>
    %307 = arith.addf %302, %306 : vector<4x16xf32>
    %308 = vector.extract_strided_slice %288 {offsets = [4, 0], sizes = [1, 16], strides = [1, 1]} : vector<5x16xf32> to vector<1x16xf32>
    %c8_148 = arith.constant 8 : index
    %c130_149 = arith.constant 130 : index
    %309 = vector.load %arg13[%c8_148, %c130_149] : memref<32x148xf32, #tpu.memory_space<vmem>>, vector<4x16xf32>
    %310 = vector.broadcast %308 : vector<1x16xf32> to vector<4x16xf32>
    %311 = arith.mulf %310, %309 : vector<4x16xf32>
    %312 = arith.addf %307, %311 : vector<4x16xf32>
    %313 = tpu.concatenate %44, %58, %72, %86, %100 in 0 : vector<1x16xf32>, vector<1x16xf32>, vector<1x16xf32>, vector<1x16xf32>, vector<1x16xf32> -> vector<5x16xf32>
    %314 = vector.extract_strided_slice %22 {offsets = [15, 0], sizes = [5, 16], strides = [1, 1]} : vector<40x16xf32> to vector<5x16xf32>
    %cst_150 = arith.constant 0.000000e+00 : f32
    %315 = vector.broadcast %cst_150 : f32 to vector<5x16xf32>
    %316 = arith.cmpf oeq, %313, %315 : vector<5x16xf32>
    %317 = arith.addf %313, %314 : vector<5x16xf32>
    %cst_151 = arith.constant 5.000000e-01 : f32
    %318 = vector.broadcast %cst_151 : f32 to vector<5x16xf32>
    %319 = arith.mulf %317, %318 : vector<5x16xf32>
    %cst_152 = arith.constant 0xFF800000 : f32
    %320 = vector.broadcast %cst_152 : f32 to vector<5x16xf32>
    %321 = arith.select %316, %320, %319 : vector<5x16xi1>, vector<5x16xf32>
    %cst_153 = arith.constant dense<0xFF800000> : vector<16xf32>
    %322 = vector.multi_reduction <maximumf>, %321, %cst_153 [0] : vector<5x16xf32> to vector<16xf32>
    %323 = vector.shape_cast %322 : vector<16xf32> to vector<1x16xf32>
    %324 = vector.broadcast %323 : vector<1x16xf32> to vector<5x16xf32>
    %325 = arith.subf %321, %324 : vector<5x16xf32>
    %326 = math.exp %325 : vector<5x16xf32>
    %cst_154 = arith.constant dense<0.000000e+00> : vector<16xf32>
    %327 = vector.multi_reduction <add>, %326, %cst_154 [0] : vector<5x16xf32> to vector<16xf32>
    %328 = vector.shape_cast %327 : vector<16xf32> to vector<1x16xf32>
    %cst_155 = arith.constant 1.000000e+00 : f32
    %329 = vector.broadcast %cst_155 : f32 to vector<1x16xf32>
    %330 = arith.divf %329, %328 : vector<1x16xf32>
    %331 = vector.broadcast %330 : vector<1x16xf32> to vector<5x16xf32>
    %332 = arith.mulf %326, %331 : vector<5x16xf32>
    %333 = vector.extract_strided_slice %332 {offsets = [0, 0], sizes = [1, 16], strides = [1, 1]} : vector<5x16xf32> to vector<1x16xf32>
    %c12 = arith.constant 12 : index
    %c126_156 = arith.constant 126 : index
    %334 = vector.load %arg13[%c12, %c126_156] : memref<32x148xf32, #tpu.memory_space<vmem>>, vector<4x16xf32>
    %335 = vector.broadcast %333 : vector<1x16xf32> to vector<4x16xf32>
    %336 = arith.mulf %335, %334 : vector<4x16xf32>
    %337 = vector.extract_strided_slice %332 {offsets = [1, 0], sizes = [1, 16], strides = [1, 1]} : vector<5x16xf32> to vector<1x16xf32>
    %c12_157 = arith.constant 12 : index
    %c127_158 = arith.constant 127 : index
    %338 = vector.load %arg13[%c12_157, %c127_158] : memref<32x148xf32, #tpu.memory_space<vmem>>, vector<4x16xf32>
    %339 = vector.broadcast %337 : vector<1x16xf32> to vector<4x16xf32>
    %340 = arith.mulf %339, %338 : vector<4x16xf32>
    %341 = arith.addf %336, %340 : vector<4x16xf32>
    %342 = vector.extract_strided_slice %332 {offsets = [2, 0], sizes = [1, 16], strides = [1, 1]} : vector<5x16xf32> to vector<1x16xf32>
    %c12_159 = arith.constant 12 : index
    %c128_160 = arith.constant 128 : index
    %343 = vector.load %arg13[%c12_159, %c128_160] : memref<32x148xf32, #tpu.memory_space<vmem>>, vector<4x16xf32>
    %344 = vector.broadcast %342 : vector<1x16xf32> to vector<4x16xf32>
    %345 = arith.mulf %344, %343 : vector<4x16xf32>
    %346 = arith.addf %341, %345 : vector<4x16xf32>
    %347 = vector.extract_strided_slice %332 {offsets = [3, 0], sizes = [1, 16], strides = [1, 1]} : vector<5x16xf32> to vector<1x16xf32>
    %c12_161 = arith.constant 12 : index
    %c129_162 = arith.constant 129 : index
    %348 = vector.load %arg13[%c12_161, %c129_162] : memref<32x148xf32, #tpu.memory_space<vmem>>, vector<4x16xf32>
    %349 = vector.broadcast %347 : vector<1x16xf32> to vector<4x16xf32>
    %350 = arith.mulf %349, %348 : vector<4x16xf32>
    %351 = arith.addf %346, %350 : vector<4x16xf32>
    %352 = vector.extract_strided_slice %332 {offsets = [4, 0], sizes = [1, 16], strides = [1, 1]} : vector<5x16xf32> to vector<1x16xf32>
    %c12_163 = arith.constant 12 : index
    %c130_164 = arith.constant 130 : index
    %353 = vector.load %arg13[%c12_163, %c130_164] : memref<32x148xf32, #tpu.memory_space<vmem>>, vector<4x16xf32>
    %354 = vector.broadcast %352 : vector<1x16xf32> to vector<4x16xf32>
    %355 = arith.mulf %354, %353 : vector<4x16xf32>
    %356 = arith.addf %351, %355 : vector<4x16xf32>
    %357 = tpu.concatenate %105, %109, %113, %117, %121 in 0 : vector<1x16xf32>, vector<1x16xf32>, vector<1x16xf32>, vector<1x16xf32>, vector<1x16xf32> -> vector<5x16xf32>
    %358 = vector.extract_strided_slice %22 {offsets = [20, 0], sizes = [5, 16], strides = [1, 1]} : vector<40x16xf32> to vector<5x16xf32>
    %cst_165 = arith.constant 0.000000e+00 : f32
    %359 = vector.broadcast %cst_165 : f32 to vector<5x16xf32>
    %360 = arith.cmpf oeq, %357, %359 : vector<5x16xf32>
    %361 = arith.addf %357, %358 : vector<5x16xf32>
    %cst_166 = arith.constant 5.000000e-01 : f32
    %362 = vector.broadcast %cst_166 : f32 to vector<5x16xf32>
    %363 = arith.mulf %361, %362 : vector<5x16xf32>
    %cst_167 = arith.constant 0xFF800000 : f32
    %364 = vector.broadcast %cst_167 : f32 to vector<5x16xf32>
    %365 = arith.select %360, %364, %363 : vector<5x16xi1>, vector<5x16xf32>
    %cst_168 = arith.constant dense<0xFF800000> : vector<16xf32>
    %366 = vector.multi_reduction <maximumf>, %365, %cst_168 [0] : vector<5x16xf32> to vector<16xf32>
    %367 = vector.shape_cast %366 : vector<16xf32> to vector<1x16xf32>
    %368 = vector.broadcast %367 : vector<1x16xf32> to vector<5x16xf32>
    %369 = arith.subf %365, %368 : vector<5x16xf32>
    %370 = math.exp %369 : vector<5x16xf32>
    %cst_169 = arith.constant dense<0.000000e+00> : vector<16xf32>
    %371 = vector.multi_reduction <add>, %370, %cst_169 [0] : vector<5x16xf32> to vector<16xf32>
    %372 = vector.shape_cast %371 : vector<16xf32> to vector<1x16xf32>
    %cst_170 = arith.constant 1.000000e+00 : f32
    %373 = vector.broadcast %cst_170 : f32 to vector<1x16xf32>
    %374 = arith.divf %373, %372 : vector<1x16xf32>
    %375 = vector.broadcast %374 : vector<1x16xf32> to vector<5x16xf32>
    %376 = arith.mulf %370, %375 : vector<5x16xf32>
    %377 = vector.extract_strided_slice %376 {offsets = [0, 0], sizes = [1, 16], strides = [1, 1]} : vector<5x16xf32> to vector<1x16xf32>
    %c16_171 = arith.constant 16 : index
    %c124_172 = arith.constant 124 : index
    %378 = vector.load %arg13[%c16_171, %c124_172] : memref<32x148xf32, #tpu.memory_space<vmem>>, vector<4x16xf32>
    %379 = vector.broadcast %377 : vector<1x16xf32> to vector<4x16xf32>
    %380 = arith.mulf %379, %378 : vector<4x16xf32>
    %381 = vector.extract_strided_slice %376 {offsets = [1, 0], sizes = [1, 16], strides = [1, 1]} : vector<5x16xf32> to vector<1x16xf32>
    %c16_173 = arith.constant 16 : index
    %c125_174 = arith.constant 125 : index
    %382 = vector.load %arg13[%c16_173, %c125_174] : memref<32x148xf32, #tpu.memory_space<vmem>>, vector<4x16xf32>
    %383 = vector.broadcast %381 : vector<1x16xf32> to vector<4x16xf32>
    %384 = arith.mulf %383, %382 : vector<4x16xf32>
    %385 = arith.addf %380, %384 : vector<4x16xf32>
    %386 = vector.extract_strided_slice %376 {offsets = [2, 0], sizes = [1, 16], strides = [1, 1]} : vector<5x16xf32> to vector<1x16xf32>
    %c16_175 = arith.constant 16 : index
    %c126_176 = arith.constant 126 : index
    %387 = vector.load %arg13[%c16_175, %c126_176] : memref<32x148xf32, #tpu.memory_space<vmem>>, vector<4x16xf32>
    %388 = vector.broadcast %386 : vector<1x16xf32> to vector<4x16xf32>
    %389 = arith.mulf %388, %387 : vector<4x16xf32>
    %390 = arith.addf %385, %389 : vector<4x16xf32>
    %391 = vector.extract_strided_slice %376 {offsets = [3, 0], sizes = [1, 16], strides = [1, 1]} : vector<5x16xf32> to vector<1x16xf32>
    %c16_177 = arith.constant 16 : index
    %c127_178 = arith.constant 127 : index
    %392 = vector.load %arg13[%c16_177, %c127_178] : memref<32x148xf32, #tpu.memory_space<vmem>>, vector<4x16xf32>
    %393 = vector.broadcast %391 : vector<1x16xf32> to vector<4x16xf32>
    %394 = arith.mulf %393, %392 : vector<4x16xf32>
    %395 = arith.addf %390, %394 : vector<4x16xf32>
    %396 = vector.extract_strided_slice %376 {offsets = [4, 0], sizes = [1, 16], strides = [1, 1]} : vector<5x16xf32> to vector<1x16xf32>
    %c16_179 = arith.constant 16 : index
    %c128_180 = arith.constant 128 : index
    %397 = vector.load %arg13[%c16_179, %c128_180] : memref<32x148xf32, #tpu.memory_space<vmem>>, vector<4x16xf32>
    %398 = vector.broadcast %396 : vector<1x16xf32> to vector<4x16xf32>
    %399 = arith.mulf %398, %397 : vector<4x16xf32>
    %400 = arith.addf %395, %399 : vector<4x16xf32>
    %401 = tpu.concatenate %126, %130, %134, %138, %142 in 0 : vector<1x16xf32>, vector<1x16xf32>, vector<1x16xf32>, vector<1x16xf32>, vector<1x16xf32> -> vector<5x16xf32>
    %402 = vector.extract_strided_slice %22 {offsets = [25, 0], sizes = [5, 16], strides = [1, 1]} : vector<40x16xf32> to vector<5x16xf32>
    %cst_181 = arith.constant 0.000000e+00 : f32
    %403 = vector.broadcast %cst_181 : f32 to vector<5x16xf32>
    %404 = arith.cmpf oeq, %401, %403 : vector<5x16xf32>
    %405 = arith.addf %401, %402 : vector<5x16xf32>
    %cst_182 = arith.constant 5.000000e-01 : f32
    %406 = vector.broadcast %cst_182 : f32 to vector<5x16xf32>
    %407 = arith.mulf %405, %406 : vector<5x16xf32>
    %cst_183 = arith.constant 0xFF800000 : f32
    %408 = vector.broadcast %cst_183 : f32 to vector<5x16xf32>
    %409 = arith.select %404, %408, %407 : vector<5x16xi1>, vector<5x16xf32>
    %cst_184 = arith.constant dense<0xFF800000> : vector<16xf32>
    %410 = vector.multi_reduction <maximumf>, %409, %cst_184 [0] : vector<5x16xf32> to vector<16xf32>
    %411 = vector.shape_cast %410 : vector<16xf32> to vector<1x16xf32>
    %412 = vector.broadcast %411 : vector<1x16xf32> to vector<5x16xf32>
    %413 = arith.subf %409, %412 : vector<5x16xf32>
    %414 = math.exp %413 : vector<5x16xf32>
    %cst_185 = arith.constant dense<0.000000e+00> : vector<16xf32>
    %415 = vector.multi_reduction <add>, %414, %cst_185 [0] : vector<5x16xf32> to vector<16xf32>
    %416 = vector.shape_cast %415 : vector<16xf32> to vector<1x16xf32>
    %cst_186 = arith.constant 1.000000e+00 : f32
    %417 = vector.broadcast %cst_186 : f32 to vector<1x16xf32>
    %418 = arith.divf %417, %416 : vector<1x16xf32>
    %419 = vector.broadcast %418 : vector<1x16xf32> to vector<5x16xf32>
    %420 = arith.mulf %414, %419 : vector<5x16xf32>
    %421 = vector.extract_strided_slice %420 {offsets = [0, 0], sizes = [1, 16], strides = [1, 1]} : vector<5x16xf32> to vector<1x16xf32>
    %c20_187 = arith.constant 20 : index
    %c125_188 = arith.constant 125 : index
    %422 = vector.load %arg13[%c20_187, %c125_188] : memref<32x148xf32, #tpu.memory_space<vmem>>, vector<4x16xf32>
    %423 = vector.broadcast %421 : vector<1x16xf32> to vector<4x16xf32>
    %424 = arith.mulf %423, %422 : vector<4x16xf32>
    %425 = vector.extract_strided_slice %420 {offsets = [1, 0], sizes = [1, 16], strides = [1, 1]} : vector<5x16xf32> to vector<1x16xf32>
    %c20_189 = arith.constant 20 : index
    %c126_190 = arith.constant 126 : index
    %426 = vector.load %arg13[%c20_189, %c126_190] : memref<32x148xf32, #tpu.memory_space<vmem>>, vector<4x16xf32>
    %427 = vector.broadcast %425 : vector<1x16xf32> to vector<4x16xf32>
    %428 = arith.mulf %427, %426 : vector<4x16xf32>
    %429 = arith.addf %424, %428 : vector<4x16xf32>
    %430 = vector.extract_strided_slice %420 {offsets = [2, 0], sizes = [1, 16], strides = [1, 1]} : vector<5x16xf32> to vector<1x16xf32>
    %c20_191 = arith.constant 20 : index
    %c127_192 = arith.constant 127 : index
    %431 = vector.load %arg13[%c20_191, %c127_192] : memref<32x148xf32, #tpu.memory_space<vmem>>, vector<4x16xf32>
    %432 = vector.broadcast %430 : vector<1x16xf32> to vector<4x16xf32>
    %433 = arith.mulf %432, %431 : vector<4x16xf32>
    %434 = arith.addf %429, %433 : vector<4x16xf32>
    %435 = vector.extract_strided_slice %420 {offsets = [3, 0], sizes = [1, 16], strides = [1, 1]} : vector<5x16xf32> to vector<1x16xf32>
    %c20_193 = arith.constant 20 : index
    %c128_194 = arith.constant 128 : index
    %436 = vector.load %arg13[%c20_193, %c128_194] : memref<32x148xf32, #tpu.memory_space<vmem>>, vector<4x16xf32>
    %437 = vector.broadcast %435 : vector<1x16xf32> to vector<4x16xf32>
    %438 = arith.mulf %437, %436 : vector<4x16xf32>
    %439 = arith.addf %434, %438 : vector<4x16xf32>
    %440 = vector.extract_strided_slice %420 {offsets = [4, 0], sizes = [1, 16], strides = [1, 1]} : vector<5x16xf32> to vector<1x16xf32>
    %c20_195 = arith.constant 20 : index
    %c129_196 = arith.constant 129 : index
    %441 = vector.load %arg13[%c20_195, %c129_196] : memref<32x148xf32, #tpu.memory_space<vmem>>, vector<4x16xf32>
    %442 = vector.broadcast %440 : vector<1x16xf32> to vector<4x16xf32>
    %443 = arith.mulf %442, %441 : vector<4x16xf32>
    %444 = arith.addf %439, %443 : vector<4x16xf32>
    %445 = tpu.concatenate %148, %152, %159, %166, %173 in 0 : vector<1x16xf32>, vector<1x16xf32>, vector<1x16xf32>, vector<1x16xf32>, vector<1x16xf32> -> vector<5x16xf32>
    %446 = vector.extract_strided_slice %22 {offsets = [30, 0], sizes = [5, 16], strides = [1, 1]} : vector<40x16xf32> to vector<5x16xf32>
    %cst_197 = arith.constant 0.000000e+00 : f32
    %447 = vector.broadcast %cst_197 : f32 to vector<5x16xf32>
    %448 = arith.cmpf oeq, %445, %447 : vector<5x16xf32>
    %449 = arith.addf %445, %446 : vector<5x16xf32>
    %cst_198 = arith.constant 5.000000e-01 : f32
    %450 = vector.broadcast %cst_198 : f32 to vector<5x16xf32>
    %451 = arith.mulf %449, %450 : vector<5x16xf32>
    %cst_199 = arith.constant 0xFF800000 : f32
    %452 = vector.broadcast %cst_199 : f32 to vector<5x16xf32>
    %453 = arith.select %448, %452, %451 : vector<5x16xi1>, vector<5x16xf32>
    %cst_200 = arith.constant dense<0xFF800000> : vector<16xf32>
    %454 = vector.multi_reduction <maximumf>, %453, %cst_200 [0] : vector<5x16xf32> to vector<16xf32>
    %455 = vector.shape_cast %454 : vector<16xf32> to vector<1x16xf32>
    %456 = vector.broadcast %455 : vector<1x16xf32> to vector<5x16xf32>
    %457 = arith.subf %453, %456 : vector<5x16xf32>
    %458 = math.exp %457 : vector<5x16xf32>
    %cst_201 = arith.constant dense<0.000000e+00> : vector<16xf32>
    %459 = vector.multi_reduction <add>, %458, %cst_201 [0] : vector<5x16xf32> to vector<16xf32>
    %460 = vector.shape_cast %459 : vector<16xf32> to vector<1x16xf32>
    %cst_202 = arith.constant 1.000000e+00 : f32
    %461 = vector.broadcast %cst_202 : f32 to vector<1x16xf32>
    %462 = arith.divf %461, %460 : vector<1x16xf32>
    %463 = vector.broadcast %462 : vector<1x16xf32> to vector<5x16xf32>
    %464 = arith.mulf %458, %463 : vector<5x16xf32>
    %465 = vector.extract_strided_slice %464 {offsets = [0, 0], sizes = [1, 16], strides = [1, 1]} : vector<5x16xf32> to vector<1x16xf32>
    %c24_203 = arith.constant 24 : index
    %c127_204 = arith.constant 127 : index
    %466 = vector.load %arg13[%c24_203, %c127_204] : memref<32x148xf32, #tpu.memory_space<vmem>>, vector<4x16xf32>
    %467 = vector.broadcast %465 : vector<1x16xf32> to vector<4x16xf32>
    %468 = arith.mulf %467, %466 : vector<4x16xf32>
    %469 = vector.extract_strided_slice %464 {offsets = [1, 0], sizes = [1, 16], strides = [1, 1]} : vector<5x16xf32> to vector<1x16xf32>
    %c24_205 = arith.constant 24 : index
    %c128_206 = arith.constant 128 : index
    %470 = vector.load %arg13[%c24_205, %c128_206] : memref<32x148xf32, #tpu.memory_space<vmem>>, vector<4x16xf32>
    %471 = vector.broadcast %469 : vector<1x16xf32> to vector<4x16xf32>
    %472 = arith.mulf %471, %470 : vector<4x16xf32>
    %473 = arith.addf %468, %472 : vector<4x16xf32>
    %474 = vector.extract_strided_slice %464 {offsets = [2, 0], sizes = [1, 16], strides = [1, 1]} : vector<5x16xf32> to vector<1x16xf32>
    %c24_207 = arith.constant 24 : index
    %c129_208 = arith.constant 129 : index
    %475 = vector.load %arg13[%c24_207, %c129_208] : memref<32x148xf32, #tpu.memory_space<vmem>>, vector<4x16xf32>
    %476 = vector.broadcast %474 : vector<1x16xf32> to vector<4x16xf32>
    %477 = arith.mulf %476, %475 : vector<4x16xf32>
    %478 = arith.addf %473, %477 : vector<4x16xf32>
    %479 = vector.extract_strided_slice %464 {offsets = [3, 0], sizes = [1, 16], strides = [1, 1]} : vector<5x16xf32> to vector<1x16xf32>
    %c24_209 = arith.constant 24 : index
    %c130_210 = arith.constant 130 : index
    %480 = vector.load %arg13[%c24_209, %c130_210] : memref<32x148xf32, #tpu.memory_space<vmem>>, vector<4x16xf32>
    %481 = vector.broadcast %479 : vector<1x16xf32> to vector<4x16xf32>
    %482 = arith.mulf %481, %480 : vector<4x16xf32>
    %483 = arith.addf %478, %482 : vector<4x16xf32>
    %484 = vector.extract_strided_slice %464 {offsets = [4, 0], sizes = [1, 16], strides = [1, 1]} : vector<5x16xf32> to vector<1x16xf32>
    %c24_211 = arith.constant 24 : index
    %c131_212 = arith.constant 131 : index
    %485 = vector.load %arg13[%c24_211, %c131_212] : memref<32x148xf32, #tpu.memory_space<vmem>>, vector<4x16xf32>
    %486 = vector.broadcast %484 : vector<1x16xf32> to vector<4x16xf32>
    %487 = arith.mulf %486, %485 : vector<4x16xf32>
    %488 = arith.addf %483, %487 : vector<4x16xf32>
    %489 = tpu.concatenate %155, %162, %169, %176, %180 in 0 : vector<1x16xf32>, vector<1x16xf32>, vector<1x16xf32>, vector<1x16xf32>, vector<1x16xf32> -> vector<5x16xf32>
    %490 = vector.extract_strided_slice %22 {offsets = [35, 0], sizes = [5, 16], strides = [1, 1]} : vector<40x16xf32> to vector<5x16xf32>
    %cst_213 = arith.constant 0.000000e+00 : f32
    %491 = vector.broadcast %cst_213 : f32 to vector<5x16xf32>
    %492 = arith.cmpf oeq, %489, %491 : vector<5x16xf32>
    %493 = arith.addf %489, %490 : vector<5x16xf32>
    %cst_214 = arith.constant 5.000000e-01 : f32
    %494 = vector.broadcast %cst_214 : f32 to vector<5x16xf32>
    %495 = arith.mulf %493, %494 : vector<5x16xf32>
    %cst_215 = arith.constant 0xFF800000 : f32
    %496 = vector.broadcast %cst_215 : f32 to vector<5x16xf32>
    %497 = arith.select %492, %496, %495 : vector<5x16xi1>, vector<5x16xf32>
    %cst_216 = arith.constant dense<0xFF800000> : vector<16xf32>
    %498 = vector.multi_reduction <maximumf>, %497, %cst_216 [0] : vector<5x16xf32> to vector<16xf32>
    %499 = vector.shape_cast %498 : vector<16xf32> to vector<1x16xf32>
    %500 = vector.broadcast %499 : vector<1x16xf32> to vector<5x16xf32>
    %501 = arith.subf %497, %500 : vector<5x16xf32>
    %502 = math.exp %501 : vector<5x16xf32>
    %cst_217 = arith.constant dense<0.000000e+00> : vector<16xf32>
    %503 = vector.multi_reduction <add>, %502, %cst_217 [0] : vector<5x16xf32> to vector<16xf32>
    %504 = vector.shape_cast %503 : vector<16xf32> to vector<1x16xf32>
    %cst_218 = arith.constant 1.000000e+00 : f32
    %505 = vector.broadcast %cst_218 : f32 to vector<1x16xf32>
    %506 = arith.divf %505, %504 : vector<1x16xf32>
    %507 = vector.broadcast %506 : vector<1x16xf32> to vector<5x16xf32>
    %508 = arith.mulf %502, %507 : vector<5x16xf32>
    %509 = vector.extract_strided_slice %508 {offsets = [0, 0], sizes = [1, 16], strides = [1, 1]} : vector<5x16xf32> to vector<1x16xf32>
    %c28 = arith.constant 28 : index
    %c128_219 = arith.constant 128 : index
    %510 = vector.load %arg13[%c28, %c128_219] : memref<32x148xf32, #tpu.memory_space<vmem>>, vector<4x16xf32>
    %511 = vector.broadcast %509 : vector<1x16xf32> to vector<4x16xf32>
    %512 = arith.mulf %511, %510 : vector<4x16xf32>
    %513 = vector.extract_strided_slice %508 {offsets = [1, 0], sizes = [1, 16], strides = [1, 1]} : vector<5x16xf32> to vector<1x16xf32>
    %c28_220 = arith.constant 28 : index
    %c129_221 = arith.constant 129 : index
    %514 = vector.load %arg13[%c28_220, %c129_221] : memref<32x148xf32, #tpu.memory_space<vmem>>, vector<4x16xf32>
    %515 = vector.broadcast %513 : vector<1x16xf32> to vector<4x16xf32>
    %516 = arith.mulf %515, %514 : vector<4x16xf32>
    %517 = arith.addf %512, %516 : vector<4x16xf32>
    %518 = vector.extract_strided_slice %508 {offsets = [2, 0], sizes = [1, 16], strides = [1, 1]} : vector<5x16xf32> to vector<1x16xf32>
    %c28_222 = arith.constant 28 : index
    %c130_223 = arith.constant 130 : index
    %519 = vector.load %arg13[%c28_222, %c130_223] : memref<32x148xf32, #tpu.memory_space<vmem>>, vector<4x16xf32>
    %520 = vector.broadcast %518 : vector<1x16xf32> to vector<4x16xf32>
    %521 = arith.mulf %520, %519 : vector<4x16xf32>
    %522 = arith.addf %517, %521 : vector<4x16xf32>
    %523 = vector.extract_strided_slice %508 {offsets = [3, 0], sizes = [1, 16], strides = [1, 1]} : vector<5x16xf32> to vector<1x16xf32>
    %c28_224 = arith.constant 28 : index
    %c131_225 = arith.constant 131 : index
    %524 = vector.load %arg13[%c28_224, %c131_225] : memref<32x148xf32, #tpu.memory_space<vmem>>, vector<4x16xf32>
    %525 = vector.broadcast %523 : vector<1x16xf32> to vector<4x16xf32>
    %526 = arith.mulf %525, %524 : vector<4x16xf32>
    %527 = arith.addf %522, %526 : vector<4x16xf32>
    %528 = vector.extract_strided_slice %508 {offsets = [4, 0], sizes = [1, 16], strides = [1, 1]} : vector<5x16xf32> to vector<1x16xf32>
    %c28_226 = arith.constant 28 : index
    %c132_227 = arith.constant 132 : index
    %529 = vector.load %arg13[%c28_226, %c132_227] : memref<32x148xf32, #tpu.memory_space<vmem>>, vector<4x16xf32>
    %530 = vector.broadcast %528 : vector<1x16xf32> to vector<4x16xf32>
    %531 = arith.mulf %530, %529 : vector<4x16xf32>
    %532 = arith.addf %527, %531 : vector<4x16xf32>
    %533 = tpu.concatenate %200, %244, %288, %332, %376, %420, %464, %508 in 0 : vector<5x16xf32>, vector<5x16xf32>, vector<5x16xf32>, vector<5x16xf32>, vector<5x16xf32>, vector<5x16xf32>, vector<5x16xf32>, vector<5x16xf32> -> vector<40x16xf32>
    %c0_228 = arith.constant 0 : index
    %c0_229 = arith.constant 0 : index
    %c0_230 = arith.constant 0 : index
    %534 = vector.load %arg11[%c0_228, %c0_229, %c0_230] : memref<1x40x16xf32, #tpu.memory_space<vmem>>, vector<1x40x16xf32>
    %535 = vector.shape_cast %534 : vector<1x40x16xf32> to vector<40x16xf32>
    %536 = vector.shape_cast %533 : vector<40x16xf32> to vector<1x40x16xf32>
    tpu.vector_store %arg11[%c0_228, %c0_229, %c0_230], %536 {strides = array<i32>} : memref<1x40x16xf32, #tpu.memory_space<vmem>>, vector<1x40x16xf32>,
    %537 = tpu.concatenate %224, %268, %312, %356, %400, %444, %488, %532 in 0 : vector<4x16xf32>, vector<4x16xf32>, vector<4x16xf32>, vector<4x16xf32>, vector<4x16xf32>, vector<4x16xf32>, vector<4x16xf32>, vector<4x16xf32> -> vector<32x16xf32>
    %c0_231 = arith.constant 0 : index
    %c0_232 = arith.constant 0 : index
    %c0_233 = arith.constant 0 : index
    %538 = vector.load %arg10[%c0_231, %c0_232, %c0_233] : memref<1x32x16xf32, #tpu.memory_space<vmem>>, vector<1x32x16xf32>
    %539 = vector.shape_cast %538 : vector<1x32x16xf32> to vector<32x16xf32>
    %540 = vector.shape_cast %537 : vector<32x16xf32> to vector<1x32x16xf32>
    tpu.vector_store %arg10[%c0_231, %c0_232, %c0_233], %540 {strides = array<i32>} : memref<1x32x16xf32, #tpu.memory_space<vmem>>, vector<1x32x16xf32>,
    return
  }
  func.func @transform_0(%arg0: i32) -> (i32, i32, i32) {
    %c0_i32 = arith.constant 0 : i32
    %c0_i32_0 = arith.constant 0 : i32
    %c0_i32_1 = arith.constant 0 : i32
    return %arg0, %c0_i32, %c0_i32_0 : i32, i32, i32
  }
  func.func @transform_1(%arg0: i32) -> (i32, i32, i32) {
    %c0_i32 = arith.constant 0 : i32
    %c0_i32_0 = arith.constant 0 : i32
    %c0_i32_1 = arith.constant 0 : i32
    return %arg0, %c0_i32, %c0_i32_0 : i32, i32, i32
  }
  func.func @transform_2(%arg0: i32) -> (i32, i32, i32) {
    %c0_i32 = arith.constant 0 : i32
    %c0_i32_0 = arith.constant 0 : i32
    %c0_i32_1 = arith.constant 0 : i32
    return %arg0, %c0_i32, %c0_i32_0 : i32, i32, i32
  }
  func.func @transform_3(%arg0: i32) -> (i32, i32) {
    %c0_i32 = arith.constant 0 : i32
    %c0_i32_0 = arith.constant 0 : i32
    %c0_i32_1 = arith.constant 0 : i32
    return %c0_i32, %c0_i32_0 : i32, i32
  }
  func.func @transform_4(%arg0: i32) -> (i32, i32) {
    %c0_i32 = arith.constant 0 : i32
    %c0_i32_0 = arith.constant 0 : i32
    %c0_i32_1 = arith.constant 0 : i32
    return %c0_i32, %c0_i32_0 : i32, i32
  }
  func.func @transform_5(%arg0: i32) -> (i32, i32) {
    %c0_i32 = arith.constant 0 : i32
    %c0_i32_0 = arith.constant 0 : i32
    %c0_i32_1 = arith.constant 0 : i32
    return %c0_i32, %c0_i32_0 : i32, i32
  }
  func.func @transform_6(%arg0: i32) -> (i32, i32) {
    %c0_i32 = arith.constant 0 : i32
    %c0_i32_0 = arith.constant 0 : i32
    %c0_i32_1 = arith.constant 0 : i32
    return %c0_i32, %c0_i32_0 : i32, i32
  }
  func.func @transform_7(%arg0: i32) -> (i32, i32) {
    %c0_i32 = arith.constant 0 : i32
    %c0_i32_0 = arith.constant 0 : i32
    %c0_i32_1 = arith.constant 0 : i32
    return %c0_i32, %c0_i32_0 : i32, i32
  }
  func.func @transform_8(%arg0: i32) -> (i32, i32) {
    %c0_i32 = arith.constant 0 : i32
    %c0_i32_0 = arith.constant 0 : i32
    %c0_i32_1 = arith.constant 0 : i32
    return %c0_i32, %c0_i32_0 : i32, i32
  }
  func.func @transform_9(%arg0: i32) -> (i32, i32, i32) {
    %c0_i32 = arith.constant 0 : i32
    %c0_i32_0 = arith.constant 0 : i32
    %c0_i32_1 = arith.constant 0 : i32
    return %arg0, %c0_i32, %c0_i32_0 : i32, i32, i32
  }
  func.func @transform_10(%arg0: i32) -> (i32, i32, i32) {
    %c0_i32 = arith.constant 0 : i32
    %c0_i32_0 = arith.constant 0 : i32
    %c0_i32_1 = arith.constant 0 : i32
    return %arg0, %c0_i32, %c0_i32_0 : i32, i32, i32
  }
}

</mosaic_0001>

<llo_original>
// kernel: tpu_custom_call.1
$region0: #{tpu_custom_call.1}
  #allocation0 [shape = 'u32[]', space=smem, size = 0x4, offset = 0x4, fixed_abs, tag = 'smem constant byte address 0x4 - core index']
  #allocation1 [shape = 'u32[144,128]{1,0:T(1,128)}', space=vmem, size = 0x12000, scoped, tag = 'internal scratch']
  #allocation2 [shape = 'f32[32,148]{1,0:T(8,128)}', space=vmem, size = 0x8000, scoped, tag = 'scratch operand']
  #allocation3 [shape = 'f32[32,148]{1,0:T(8,128)}', space=vmem, size = 0x8000, scoped, tag = 'scratch operand']
  %s0 = inlined_call_operand.vmem [shape: bf16[2,32,16], index: 0, kind: input, shape index: {}]
  %s1 = inlined_call_operand.vmem [shape: bf16[2,32,16], index: 1, kind: input, shape index: {}]
  %s2 = inlined_call_operand.vmem [shape: bf16[2,32,16], index: 2, kind: input, shape index: {}]
  %s3 = inlined_call_operand.vmem [shape: bf16[72,32], index: 3, kind: input, shape index: {}]
  %s4 = inlined_call_operand.vmem [shape: f32[72,1], index: 4, kind: input, shape index: {}]
  %s5 = inlined_call_operand.vmem [shape: bf16[32,32], index: 5, kind: input, shape index: {}]
  %s6 = inlined_call_operand.vmem [shape: f32[32,1], index: 6, kind: input, shape index: {}]
  %s7 = inlined_call_operand.vmem [shape: bf16[32,32], index: 7, kind: input, shape index: {}]
  %s8 = inlined_call_operand.vmem [shape: f32[32,1], index: 8, kind: input, shape index: {}]
  %s9 = inlined_call_operand.vmem [shape: f32[2,32,16], index: 9, kind: output, shape index: {0}]
  %s10 = inlined_call_operand.vmem [shape: f32[2,40,16], index: 10, kind: output, shape index: {1}]
  %11 = xla_tuple %s9, %s10
  %s12 = sld [smem:[#allocation0]]
  $region77: #{tpu_custom_call.1} parent=0
    _
  %s14 = ssub.s32 1, %s12
  %s15 = scalar_select 0, %s14, %s12
  loop: start=0, step=1, limit=4
  $region2: #{tpu_custom_call.1} parent=0 // loop_pre_header
    _
  $region3: #{tpu_custom_call.1} parent=0 // loop_header
    %s17 = sphi 0, %s21
    %p18 = scmp.ge.s32.totalorder %s17, 4
    %s27 = sphi 0, %s29
    %s30 = sphi 0, %s27
    %s31 = sphi 0, %s30
    %s47 = sphi 0, %s31
    %s53 = sphi 0, %s55
    %s56 = sphi 0, %s53
    %s57 = sphi 0, %s56
    %s73 = sphi 0, %s57
    %s79 = sphi 0, %s81
    %s82 = sphi 0, %s79
    %s83 = sphi 0, %s82
    %s99 = sphi 0, %s83
    %s103 = sphi 0, %s103
    %s105 = sphi 0, %s103
    %s106 = sphi 0, %s105
    %s120 = sphi 0, %s106
    %s124 = sphi 0, %s124
    %s126 = sphi 0, %s124
    %s127 = sphi 0, %s126
    %s141 = sphi 0, %s127
    %s145 = sphi 0, %s145
    %s147 = sphi 0, %s145
    %s148 = sphi 0, %s147
    %s162 = sphi 0, %s148
    %s166 = sphi 0, %s166
    %s168 = sphi 0, %s166
    %s169 = sphi 0, %s168
    %s183 = sphi 0, %s169
    %s187 = sphi 0, %s187
    %s189 = sphi 0, %s187
    %s190 = sphi 0, %s189
    %s204 = sphi 0, %s190
    %s208 = sphi 0, %s208
    %s210 = sphi 0, %s208
    %s211 = sphi 0, %s210
    %s225 = sphi 0, %s211
    %s231 = sphi 0, %s233
    %s234 = sphi 0, %s231
    %s235 = sphi 0, %s234
    %s251 = sphi 0, %s235
    %s257 = sphi 0, %s259
    %s260 = sphi 0, %s257
    %s261 = sphi 0, %s260
    %s277 = sphi 0, %s261
  $region4: #{tpu_custom_call.1} parent=0 // loop_header_branch
    %20 = sbr.rel (%p18) target = $region8
  $region5: #{tpu_custom_call.1} parent=0 // loop_body
    %s22 = ssub.s32 %s17, 1
    %s23 = ssub.s32 %s17, 2
    %s24 = sadd.s32 %s17, 1
    %s25 = ssub.s32 %s17, %s24
    %p26 = scmp.eq.s32.totalorder %s25, 0
    %s28 = sadd.s32 %s27, 1
    %s29 = scalar_select %p26, %s27, %s28
    %p32 = pneg %p26
    %p33 = scmp.eq.s32.totalorder %s17, 1
    %p34 = por %p32, %p33
    %p35 = scmp.ne.s32.totalorder %s27, %s30
    %p36 = scmp.eq.s32.totalorder %s17, 0
    %p37 = por %p35, %p36
    %p38 = scmp.ne.s32.totalorder %s27, %s30
    %p39 = scmp.eq.s32.totalorder %s22, 1
    %p40 = por %p38, %p39
    %p41 = scmp.ne.s32.totalorder %s30, %s31
    %p42 = scmp.eq.s32.totalorder %s22, 0
    %p43 = por %p41, %p42
    %p44 = scmp.ne.s32.totalorder %s30, %s31
    %p45 = scmp.eq.s32.totalorder %s23, 1
    %p46 = por %p44, %p45
    %p48 = scmp.ne.s32.totalorder %s31, %s47
    %p49 = scmp.eq.s32.totalorder %s23, 0
    %p50 = por %p48, %p49
    %s51 = ssub.s32 %s17, %s24
    %p52 = scmp.eq.s32.totalorder %s51, 0
    %s54 = sadd.s32 %s53, 1
    %s55 = scalar_select %p52, %s53, %s54
    %p58 = pneg %p52
    %p59 = scmp.eq.s32.totalorder %s17, 1
    %p60 = por %p58, %p59
    %p61 = scmp.ne.s32.totalorder %s53, %s56
    %p62 = scmp.eq.s32.totalorder %s17, 0
    %p63 = por %p61, %p62
    %p64 = scmp.ne.s32.totalorder %s53, %s56
    %p65 = scmp.eq.s32.totalorder %s22, 1
    %p66 = por %p64, %p65
    %p67 = scmp.ne.s32.totalorder %s56, %s57
    %p68 = scmp.eq.s32.totalorder %s22, 0
    %p69 = por %p67, %p68
    %p70 = scmp.ne.s32.totalorder %s56, %s57
    %p71 = scmp.eq.s32.totalorder %s23, 1
    %p72 = por %p70, %p71
    %p74 = scmp.ne.s32.totalorder %s57, %s73
    %p75 = scmp.eq.s32.totalorder %s23, 0
    %p76 = por %p74, %p75
    %s77 = ssub.s32 %s17, %s24
    %p78 = scmp.eq.s32.totalorder %s77, 0
    %s80 = sadd.s32 %s79, 1
    %s81 = scalar_select %p78, %s79, %s80
    %p84 = pneg %p78
    %p85 = scmp.eq.s32.totalorder %s17, 1
    %p86 = por %p84, %p85
    %p87 = scmp.ne.s32.totalorder %s79, %s82
    %p88 = scmp.eq.s32.totalorder %s17, 0
    %p89 = por %p87, %p88
    %p90 = scmp.ne.s32.totalorder %s79, %s82
    %p91 = scmp.eq.s32.totalorder %s22, 1
    %p92 = por %p90, %p91
    %p93 = scmp.ne.s32.totalorder %s82, %s83
    %p94 = scmp.eq.s32.totalorder %s22, 0
    %p95 = por %p93, %p94
    %p96 = scmp.ne.s32.totalorder %s82, %s83
    %p97 = scmp.eq.s32.totalorder %s23, 1
    %p98 = por %p96, %p97
    %p100 = scmp.ne.s32.totalorder %s83, %s99
    %p101 = scmp.eq.s32.totalorder %s23, 0
    %p102 = por %p100, %p101
    %s104 = sadd.s32 %s103, 1
    %p107 = scmp.eq.s32.totalorder %s17, 1
    %p108 = scmp.ne.s32.totalorder %s103, %s105
    %p109 = scmp.eq.s32.totalorder %s17, 0
    %p110 = por %p108, %p109
    %p111 = scmp.ne.s32.totalorder %s103, %s105
    %p112 = scmp.eq.s32.totalorder %s22, 1
    %p113 = por %p111, %p112
    %p114 = scmp.ne.s32.totalorder %s105, %s106
    %p115 = scmp.eq.s32.totalorder %s22, 0
    %p116 = por %p114, %p115
    %p117 = scmp.ne.s32.totalorder %s105, %s106
    %p118 = scmp.eq.s32.totalorder %s23, 1
    %p119 = por %p117, %p118
    %p121 = scmp.ne.s32.totalorder %s106, %s120
    %p122 = scmp.eq.s32.totalorder %s23, 0
    %p123 = por %p121, %p122
    %s125 = sadd.s32 %s124, 1
    %p128 = scmp.eq.s32.totalorder %s17, 1
    %p129 = scmp.ne.s32.totalorder %s124, %s126
    %p130 = scmp.eq.s32.totalorder %s17, 0
    %p131 = por %p129, %p130
    %p132 = scmp.ne.s32.totalorder %s124, %s126
    %p133 = scmp.eq.s32.totalorder %s22, 1
    %p134 = por %p132, %p133
    %p135 = scmp.ne.s32.totalorder %s126, %s127
    %p136 = scmp.eq.s32.totalorder %s22, 0
    %p137 = por %p135, %p136
    %p138 = scmp.ne.s32.totalorder %s126, %s127
    %p139 = scmp.eq.s32.totalorder %s23, 1
    %p140 = por %p138, %p139
    %p142 = scmp.ne.s32.totalorder %s127, %s141
    %p143 = scmp.eq.s32.totalorder %s23, 0
    %p144 = por %p142, %p143
    %s146 = sadd.s32 %s145, 1
    %p149 = scmp.eq.s32.totalorder %s17, 1
    %p150 = scmp.ne.s32.totalorder %s145, %s147
    %p151 = scmp.eq.s32.totalorder %s17, 0
    %p152 = por %p150, %p151
    %p153 = scmp.ne.s32.totalorder %s145, %s147
    %p154 = scmp.eq.s32.totalorder %s22, 1
    %p155 = por %p153, %p154
    %p156 = scmp.ne.s32.totalorder %s147, %s148
    %p157 = scmp.eq.s32.totalorder %s22, 0
    %p158 = por %p156, %p157
    %p159 = scmp.ne.s32.totalorder %s147, %s148
    %p160 = scmp.eq.s32.totalorder %s23, 1
    %p161 = por %p159, %p160
    %p163 = scmp.ne.s32.totalorder %s148, %s162
    %p164 = scmp.eq.s32.totalorder %s23, 0
    %p165 = por %p163, %p164
    %s167 = sadd.s32 %s166, 1
    %p170 = scmp.eq.s32.totalorder %s17, 1
    %p171 = scmp.ne.s32.totalorder %s166, %s168
    %p172 = scmp.eq.s32.totalorder %s17, 0
    %p173 = por %p171, %p172
    %p174 = scmp.ne.s32.totalorder %s166, %s168
    %p175 = scmp.eq.s32.totalorder %s22, 1
    %p176 = por %p174, %p175
    %p177 = scmp.ne.s32.totalorder %s168, %s169
    %p178 = scmp.eq.s32.totalorder %s22, 0
    %p179 = por %p177, %p178
    %p180 = scmp.ne.s32.totalorder %s168, %s169
    %p181 = scmp.eq.s32.totalorder %s23, 1
    %p182 = por %p180, %p181
    %p184 = scmp.ne.s32.totalorder %s169, %s183
    %p185 = scmp.eq.s32.totalorder %s23, 0
    %p186 = por %p184, %p185
    %s188 = sadd.s32 %s187, 1
    %p191 = scmp.eq.s32.totalorder %s17, 1
    %p192 = scmp.ne.s32.totalorder %s187, %s189
    %p193 = scmp.eq.s32.totalorder %s17, 0
    %p194 = por %p192, %p193
    %p195 = scmp.ne.s32.totalorder %s187, %s189
    %p196 = scmp.eq.s32.totalorder %s22, 1
    %p197 = por %p195, %p196
    %p198 = scmp.ne.s32.totalorder %s189, %s190
    %p199 = scmp.eq.s32.totalorder %s22, 0
    %p200 = por %p198, %p199
    %p201 = scmp.ne.s32.totalorder %s189, %s190
    %p202 = scmp.eq.s32.totalorder %s23, 1
    %p203 = por %p201, %p202
    %p205 = scmp.ne.s32.totalorder %s190, %s204
    %p206 = scmp.eq.s32.totalorder %s23, 0
    %p207 = por %p205, %p206
    %s209 = sadd.s32 %s208, 1
    %p212 = scmp.eq.s32.totalorder %s17, 1
    %p213 = scmp.ne.s32.totalorder %s208, %s210
    %p214 = scmp.eq.s32.totalorder %s17, 0
    %p215 = por %p213, %p214
    %p216 = scmp.ne.s32.totalorder %s208, %s210
    %p217 = scmp.eq.s32.totalorder %s22, 1
    %p218 = por %p216, %p217
    %p219 = scmp.ne.s32.totalorder %s210, %s211
    %p220 = scmp.eq.s32.totalorder %s22, 0
    %p221 = por %p219, %p220
    %p222 = scmp.ne.s32.totalorder %s210, %s211
    %p223 = scmp.eq.s32.totalorder %s23, 1
    %p224 = por %p222, %p223
    %p226 = scmp.ne.s32.totalorder %s211, %s225
    %p227 = scmp.eq.s32.totalorder %s23, 0
    %p228 = por %p226, %p227
    %s229 = ssub.s32 %s17, %s24
    %p230 = scmp.eq.s32.totalorder %s229, 0
    %s232 = sadd.s32 %s231, 1
    %s233 = scalar_select %p230, %s231, %s232
    %p236 = pneg %p230
    %p237 = scmp.eq.s32.totalorder %s17, 1
    %p238 = por %p236, %p237
    %p239 = scmp.ne.s32.totalorder %s231, %s234
    %p240 = scmp.eq.s32.totalorder %s17, 0
    %p241 = por %p239, %p240
    %p242 = scmp.ne.s32.totalorder %s231, %s234
    %p243 = scmp.eq.s32.totalorder %s22, 1
    %p244 = por %p242, %p243
    %p245 = scmp.ne.s32.totalorder %s234, %s235
    %p246 = scmp.eq.s32.totalorder %s22, 0
    %p247 = por %p245, %p246
    %p248 = scmp.ne.s32.totalorder %s234, %s235
    %p249 = scmp.eq.s32.totalorder %s23, 1
    %p250 = por %p248, %p249
    %p252 = scmp.ne.s32.totalorder %s235, %s251
    %p253 = scmp.eq.s32.totalorder %s23, 0
    %p254 = por %p252, %p253
    %s255 = ssub.s32 %s17, %s24
    %p256 = scmp.eq.s32.totalorder %s255, 0
    %s258 = sadd.s32 %s257, 1
    %s259 = scalar_select %p256, %s257, %s258
    %p262 = pneg %p256
    %p263 = scmp.eq.s32.totalorder %s17, 1
    %p264 = por %p262, %p263
    %p265 = scmp.ne.s32.totalorder %s257, %s260
    %p266 = scmp.eq.s32.totalorder %s17, 0
    %p267 = por %p265, %p266
    %p268 = scmp.ne.s32.totalorder %s257, %s260
    %p269 = scmp.eq.s32.totalorder %s22, 1
    %p270 = por %p268, %p269
    %p271 = scmp.ne.s32.totalorder %s260, %s261
    %p272 = scmp.eq.s32.totalorder %s22, 0
    %p273 = por %p271, %p272
    %p274 = scmp.ne.s32.totalorder %s260, %s261
    %p275 = scmp.eq.s32.totalorder %s23, 1
    %p276 = por %p274, %p275
    %p278 = scmp.ne.s32.totalorder %s261, %s277
    %p279 = scmp.eq.s32.totalorder %s23, 0
    %p280 = por %p278, %p279
    %p281 = scmp.le.s32.totalorder 1, %s17
    %p282 = scmp.lt.s32.totalorder %s17, 3
    %p283 = pnand %p281, %p282
    %p284 = pneg %p283
    // Predicated region
    $region9: #{tpu_custom_call.1} parent=5 // pred_check
      _
    $region10: #{tpu_custom_call.1} parent=5 // pred_check_branch
      %286 = sbr.rel (%p283) target = $region12
    $region11: #{tpu_custom_call.1} parent=5 // pred_region
      %s287 = ssub.s32 %s17, 1
      // Predicated region
      $region13: #{tpu_custom_call.1} parent=11 // pred_check
        %p288 = pneg %p116
      $region14: #{tpu_custom_call.1} parent=11 // pred_check_branch
        %290 = sbr.rel (%p288) target = $region16
      $region15: #{tpu_custom_call.1} parent=11 // pred_region
        _
      $region16: #{tpu_custom_call.1} parent=11 // pred_fallthru
        _
      // Predicated region
      $region17: #{tpu_custom_call.1} parent=11 // pred_check
        %p291 = pneg %p137
      $region18: #{tpu_custom_call.1} parent=11 // pred_check_branch
        %293 = sbr.rel (%p291) target = $region20
      $region19: #{tpu_custom_call.1} parent=11 // pred_region
        _
      $region20: #{tpu_custom_call.1} parent=11 // pred_fallthru
        _
      // Predicated region
      $region21: #{tpu_custom_call.1} parent=11 // pred_check
        %p294 = pneg %p158
      $region22: #{tpu_custom_call.1} parent=11 // pred_check_branch
        %296 = sbr.rel (%p294) target = $region24
      $region23: #{tpu_custom_call.1} parent=11 // pred_region
        _
      $region24: #{tpu_custom_call.1} parent=11 // pred_fallthru
        _
      // Predicated region
      $region25: #{tpu_custom_call.1} parent=11 // pred_check
        %p297 = pneg %p179
      $region26: #{tpu_custom_call.1} parent=11 // pred_check_branch
        %299 = sbr.rel (%p297) target = $region28
      $region27: #{tpu_custom_call.1} parent=11 // pred_region
        _
      $region28: #{tpu_custom_call.1} parent=11 // pred_fallthru
        _
      // Predicated region
      $region29: #{tpu_custom_call.1} parent=11 // pred_check
        %p300 = pneg %p200
      $region30: #{tpu_custom_call.1} parent=11 // pred_check_branch
        %302 = sbr.rel (%p300) target = $region32
      $region31: #{tpu_custom_call.1} parent=11 // pred_region
        _
      $region32: #{tpu_custom_call.1} parent=11 // pred_fallthru
        _
      // Predicated region
      $region33: #{tpu_custom_call.1} parent=11 // pred_check
        %p303 = pneg %p221
      $region34: #{tpu_custom_call.1} parent=11 // pred_check_branch
        %305 = sbr.rel (%p303) target = $region36
      $region35: #{tpu_custom_call.1} parent=11 // pred_region
        _
      $region36: #{tpu_custom_call.1} parent=11 // pred_fallthru
        _
    $region12: #{tpu_custom_call.1} parent=5 // pred_fallthru
      _
    %p306 = scmp.lt.s32.totalorder %s17, 2
    // Predicated region
    $region37: #{tpu_custom_call.1} parent=5 // pred_check
      %p307 = pneg %p306
    $region38: #{tpu_custom_call.1} parent=5 // pred_check_branch
      %309 = sbr.rel (%p307) target = $region40
    $region39: #{tpu_custom_call.1} parent=5 // pred_region
      // Predicated region
      $region41: #{tpu_custom_call.1} parent=39 // pred_check
        %p310 = pneg %p37
      $region42: #{tpu_custom_call.1} parent=39 // pred_check_branch
        %312 = sbr.rel (%p310) target = $region44
      $region43: #{tpu_custom_call.1} parent=39 // pred_region
        %p313 = scmp.lt.s32.totalorder %s17, 1
        %s314 = scalar_select %p313, %s17, 1
        %s315 = smul.addr %s314, 4
        %s316 = smul.addr %s315, 4
        %s317 = scalar_lea.vmem %s0, %s316
      $region44: #{tpu_custom_call.1} parent=39 // pred_fallthru
        _
      // Predicated region
      $region45: #{tpu_custom_call.1} parent=39 // pred_check
        %p318 = pneg %p63
      $region46: #{tpu_custom_call.1} parent=39 // pred_check_branch
        %320 = sbr.rel (%p318) target = $region48
      $region47: #{tpu_custom_call.1} parent=39 // pred_region
        %p321 = scmp.lt.s32.totalorder %s17, 1
        %s322 = scalar_select %p321, %s17, 1
        %s323 = smul.addr %s322, 4
        %s324 = smul.addr %s323, 4
        %s325 = scalar_lea.vmem %s1, %s324
      $region48: #{tpu_custom_call.1} parent=39 // pred_fallthru
        _
      // Predicated region
      $region49: #{tpu_custom_call.1} parent=39 // pred_check
        %p326 = pneg %p89
      $region50: #{tpu_custom_call.1} parent=39 // pred_check_branch
        %328 = sbr.rel (%p326) target = $region52
      $region51: #{tpu_custom_call.1} parent=39 // pred_region
        %p329 = scmp.lt.s32.totalorder %s17, 1
        %s330 = scalar_select %p329, %s17, 1
        %s331 = smul.addr %s330, 4
        %s332 = smul.addr %s331, 4
        %s333 = scalar_lea.vmem %s2, %s332
      $region52: #{tpu_custom_call.1} parent=39 // pred_fallthru
        _
    $region40: #{tpu_custom_call.1} parent=5 // pred_fallthru
      _
    %p334 = scmp.le.s32.totalorder 1, %s17
    %p335 = scmp.lt.s32.totalorder %s17, 3
    %p336 = pnand %p334, %p335
    %p337 = pneg %p336
    // Predicated region
    $region53: #{tpu_custom_call.1} parent=5 // pred_check
      _
    $region54: #{tpu_custom_call.1} parent=5 // pred_check_branch
      %339 = sbr.rel (%p336) target = $region56
    $region55: #{tpu_custom_call.1} parent=5 // pred_region
      %s340 = ssub.s32 %s17, 1
      %p341 = scmp.lt.s32.totalorder %s22, 1
      %s342 = scalar_select %p341, %s22, 1
      %s343 = smul.addr %s342, 4
      %s344 = smul.addr %s343, 4
      %s345 = scalar_lea.vmem %s0, %s344
      %p346 = pneg %p43
      %p347 = pneg %p40
      %p348 = scmp.lt.s32.totalorder %s22, 1
      %s349 = scalar_select %p348, %s22, 1
      %s350 = smul.addr %s349, 4
      %s351 = smul.addr %s350, 4
      %s352 = scalar_lea.vmem %s1, %s351
      %p353 = pneg %p69
      %p354 = pneg %p66
      %p355 = scmp.lt.s32.totalorder %s22, 1
      %s356 = scalar_select %p355, %s22, 1
      %s357 = smul.addr %s356, 4
      %s358 = smul.addr %s357, 4
      %s359 = scalar_lea.vmem %s2, %s358
      %p360 = pneg %p95
      %p361 = pneg %p92
      %p362 = pneg %p116
      %p363 = pneg %p113
      %p364 = pneg %p137
      %p365 = pneg %p134
      %p366 = pneg %p158
      %p367 = pneg %p155
      %p368 = pneg %p179
      %p369 = pneg %p176
      %p370 = pneg %p200
      %p371 = pneg %p197
      %p372 = pneg %p221
      %p373 = pneg %p218
      %p374 = pneg %p247
      %p375 = pneg %p244
      %p376 = scmp.lt.s32.totalorder %s22, 1
      %s377 = scalar_select %p376, %s22, 1
      %s378 = smul.addr %s377, 4
      %s379 = smul.addr %s378, 8
      %s380 = scalar_lea.vmem %s9, %s379
      %p381 = pneg %p273
      %p382 = pneg %p270
      %p383 = scmp.lt.s32.totalorder %s22, 1
      %s384 = scalar_select %p383, %s22, 1
      %s385 = smul.addr %s384, 5
      %s386 = smul.addr %s385, 8
      %s387 = scalar_lea.vmem %s10, %s386
      %p388 = scmp.lt.s32.totalorder %s22, 1
      %s389 = scalar_select %p388, %s22, 1
      %s390 = smul.addr %s389, 4
      %s391 = smul.addr %s390, 4
      %s392 = scalar_lea.vmem %s0, %s391
      %p393 = scmp.lt.s32.totalorder %s22, 1
      %s394 = scalar_select %p393, %s22, 1
      %s395 = smul.addr %s394, 4
      %s396 = smul.addr %s395, 4
      %s397 = scalar_lea.vmem %s1, %s396
      %p398 = scmp.lt.s32.totalorder %s22, 1
      %s399 = scalar_select %p398, %s22, 1
      %s400 = smul.addr %s399, 4
      %s401 = smul.addr %s400, 4
      %s402 = scalar_lea.vmem %s2, %s401
      %p403 = scmp.lt.s32.totalorder %s22, 1
      %s404 = scalar_select %p403, %s22, 1
      %s405 = smul.addr %s404, 4
      %s406 = smul.addr %s405, 8
      %s407 = scalar_lea.vmem %s9, %s406
      %p408 = scmp.lt.s32.totalorder %s22, 1
      %s409 = scalar_select %p408, %s22, 1
      %s410 = smul.addr %s409, 5
      %s411 = smul.addr %s410, 8
      %s412 = scalar_lea.vmem %s10, %s411
      %v414 = vld [vmem:[%s3] sm:$0xf]
      %v415 = vld [vmem:[%s3 + $0x4] sm:$0xf]
      %v416 = vld [vmem:[%s3 + $0x8] sm:$0xf]
      %v417 = vld [vmem:[%s3 + $0xc] sm:$0xf]
      %v418 = vld [vmem:[%s3 + $0x10] sm:$0xf]
      %v419 = vld [vmem:[%s3 + $0x14] sm:$0xf]
      %v420 = vld [vmem:[%s3 + $0x18] sm:$0xf]
      %v421 = vld [vmem:[%s3 + $0x1c] sm:$0xf]
      %v422 = vld [vmem:[%s3 + $0x20] sm:$0xf]
      %v423 = vld [vmem:[%s392] sm:$0xf]
      %v424 = vld [vmem:[%s392 + $0x4] sm:$0xf]
      %v425 = vld [vmem:[%s392 + $0x8] sm:$0xf]
      %v426 = vld [vmem:[%s392 + $0xc] sm:$0xf]
      %v427 = vld [vmem:[%s4] sm:$0xff]
      %v428 = vld [vmem:[%s4 + $0x8] sm:$0xff]
      %v429 = vld [vmem:[%s4 + $0x10] sm:$0xff]
      %v430 = vld [vmem:[%s4 + $0x18] sm:$0xff]
      %v431 = vld [vmem:[%s4 + $0x20] sm:$0xff]
      %v432 = vld [vmem:[%s4 + $0x28] sm:$0xff]
      %v433 = vld [vmem:[%s4 + $0x30] sm:$0xff]
      %v434 = vld [vmem:[%s4 + $0x38] sm:$0xff]
      %v435 = vld [vmem:[%s4 + $0x40] sm:$0xff]
      %437 = vset.pattern.permute.xlu0 0
      %438 = vperm.xlu0 %437, %v427
      %v439 = vpop.permute.xlu0 %438
      %442 = vset.pattern.permute.xlu0 0
      %443 = vperm.xlu0 %442, %v428
      %v444 = vpop.permute.xlu0 %443
      %447 = vset.pattern.permute.xlu0 0
      %448 = vperm.xlu0 %447, %v429
      %v449 = vpop.permute.xlu0 %448
      %452 = vset.pattern.permute.xlu0 0
      %453 = vperm.xlu0 %452, %v430
      %v454 = vpop.permute.xlu0 %453
      %457 = vset.pattern.permute.xlu0 0
      %458 = vperm.xlu0 %457, %v431
      %v459 = vpop.permute.xlu0 %458
      %462 = vset.pattern.permute.xlu0 0
      %463 = vperm.xlu0 %462, %v432
      %v464 = vpop.permute.xlu0 %463
      %467 = vset.pattern.permute.xlu0 0
      %468 = vperm.xlu0 %467, %v433
      %v469 = vpop.permute.xlu0 %468
      %472 = vset.pattern.permute.xlu0 0
      %473 = vperm.xlu0 %472, %v434
      %v474 = vpop.permute.xlu0 %473
      %477 = vset.pattern.permute.xlu0 0
      %478 = vperm.xlu0 %477, %v435
      %v479 = vpop.permute.xlu0 %478
      %v490 = vunpack.c.l.b16 %v414
      %v491 = vunpack.c.l.b16 %v415
      %v492 = vunpack.c.l.b16 %v416
      %v493 = vunpack.c.l.b16 %v417
      %v494 = vunpack.c.l.b16 %v418
      %v495 = vunpack.c.l.b16 %v419
      %v496 = vunpack.c.l.b16 %v420
      %v497 = vunpack.c.l.b16 %v421
      %v498 = vunpack.c.l.b16 %v422
      %v499 = vpack.c.b16 %v491, %v490
      %v500 = vpack.c.b16 %v493, %v492
      %v501 = vpack.c.b16 %v495, %v494
      %v502 = vpack.c.b16 %v497, %v496
      %v503 = vpack.c.b16 %v498, %v498
      %v508 = vunpack.c.l.b16 %v423
      %v509 = vunpack.c.l.b16 %v424
      %v510 = vunpack.c.l.b16 %v425
      %v511 = vunpack.c.l.b16 %v426
      %v512 = vpack.c.b16 %v509, %v508
      %v513 = vpack.c.b16 %v511, %v510
      %vm516 = vcmask 261120
      %v518 = vsel %vm516, %v499, 0
      %v521 = vsel %vm516, %v500, 0
      %v524 = vsel %vm516, %v501, 0
      %v527 = vsel %vm516, %v502, 0
      %v530 = vsel %vm516, %v503, 0
      %532 = vmatprep.subr.bf16.mxu0 0
      %533 = vmatpush1.bf16.msra.mxu0 %v512
      %534 = vmatprep.subr.bf16.mxu0 0
      %535 = vmatpush1.bf16.msra.mxu0 %v513
      %536 = vmatprep.subr.bf16.mxu0 0
      %537 = vmatpush1.bf16.msra.mxu0 0
      %538 = vmatprep.subr.bf16.mxu0 0
      %539 = vmatpush1.bf16.msra.mxu0 0
      %540 = vmatprep.subr.bf16.mxu0 0
      %541 = vmatpush1.bf16.msra.mxu0 0
      %542 = vmatprep.subr.bf16.mxu0 0
      %543 = vmatpush1.bf16.msra.mxu0 0
      %544 = vmatprep.subr.bf16.mxu0 0
      %545 = vmatpush1.bf16.msra.mxu0 0
      %546 = vmatprep.subr.bf16.mxu0 0
      %547 = vmatpush1.bf16.msra.mxu0 0
      %548 = vmatprep.subr.bf16.mxu0 0
      %549 = vmatpush1.bf16.msra.mxu0 0
      %550 = vmatprep.subr.bf16.mxu0 0
      %551 = vmatpush1.bf16.msra.mxu0 0
      %552 = vmatprep.subr.bf16.mxu0 0
      %553 = vmatpush1.bf16.msra.mxu0 0
      %554 = vmatprep.subr.bf16.mxu0 0
      %555 = vmatpush1.bf16.msra.mxu0 0
      %556 = vmatprep.subr.bf16.mxu0 0
      %557 = vmatpush1.bf16.msra.mxu0 0
      %558 = vmatprep.subr.bf16.mxu0 0
      %559 = vmatpush1.bf16.msra.mxu0 0
      %560 = vmatprep.subr.bf16.mxu0 0
      %561 = vmatpush1.bf16.msra.mxu0 0
      %562 = vmatprep.subr.bf16.mxu0 0
      %563 = vmatpush1.bf16.msra.mxu0 0
      %564 = vmatprep.mubr.bf16.mxu0 0
      %565 = vmatmul.mubr.bf16.gmra.mrb[0].mxu0 %v518
      %v566 = vpop.f32.mrb[0].mxu0
      %v567 = vadd.f32 %v439, %v566
      %v568 = vpop.f32.mrb[0].mxu0
      %v569 = vpop.f32.mrb[0].mxu0
      %v570 = vadd.f32 %v444, %v569
      %v571 = vpop.f32.mrb[0].mxu0
      %572 = vmatprep.mubr.bf16.mxu0 0
      %573 = vmatmul.mubr.bf16.gmra.mrb[0].mxu0 %v521
      %v574 = vpop.f32.mrb[0].mxu0
      %v575 = vadd.f32 %v449, %v574
      %v576 = vpop.f32.mrb[0].mxu0
      %v577 = vpop.f32.mrb[0].mxu0
      %v578 = vadd.f32 %v454, %v577
      %v579 = vpop.f32.mrb[0].mxu0
      %580 = vmatprep.mubr.bf16.mxu0 0
      %581 = vmatmul.mubr.bf16.gmra.mrb[0].mxu0 %v524
      %v582 = vpop.f32.mrb[0].mxu0
      %v583 = vadd.f32 %v459, %v582
      %v584 = vpop.f32.mrb[0].mxu0
      %v585 = vpop.f32.mrb[0].mxu0
      %v586 = vadd.f32 %v464, %v585
      %v587 = vpop.f32.mrb[0].mxu0
      %588 = vmatprep.mubr.bf16.mxu0 0
      %589 = vmatmul.mubr.bf16.gmra.mrb[0].mxu0 %v527
      %v590 = vpop.f32.mrb[0].mxu0
      %v591 = vadd.f32 %v469, %v590
      %v592 = vpop.f32.mrb[0].mxu0
      %v593 = vpop.f32.mrb[0].mxu0
      %v594 = vadd.f32 %v474, %v593
      %v595 = vpop.f32.mrb[0].mxu0
      %596 = vmatprep.mubr.bf16.mxu0 0
      %597 = vmatmul.mubr.bf16.gmra.mrb[0].mxu0 %v530
      %v598 = vpop.f32.mrb[0].mxu0
      %v599 = vadd.f32 %v479, %v598
      %v600 = vpop.f32.mrb[0].mxu0
      %v601 = vpop.f32.mrb[0].mxu0
      %v602 = vpop.f32.mrb[0].mxu0
      %603 = vdwg.mxu0
      %v604 = vld [vmem:[%s5] sm:$0xf]
      %v605 = vld [vmem:[%s5 + $0x4] sm:$0xf]
      %v606 = vld [vmem:[%s5 + $0x8] sm:$0xf]
      %v607 = vld [vmem:[%s5 + $0xc] sm:$0xf]
      %v608 = vld [vmem:[%s397] sm:$0xf]
      %v609 = vld [vmem:[%s397 + $0x4] sm:$0xf]
      %v610 = vld [vmem:[%s397 + $0x8] sm:$0xf]
      %v611 = vld [vmem:[%s397 + $0xc] sm:$0xf]
      %v612 = vld [vmem:[%s6] sm:$0xff]
      %v613 = vld [vmem:[%s6 + $0x8] sm:$0xff]
      %v614 = vld [vmem:[%s6 + $0x10] sm:$0xff]
      %v615 = vld [vmem:[%s6 + $0x18] sm:$0xff]
      %617 = vset.pattern.permute.xlu0 0
      %618 = vperm.xlu0 %617, %v612
      %v619 = vpop.permute.xlu0 %618
      %622 = vset.pattern.permute.xlu0 0
      %623 = vperm.xlu0 %622, %v613
      %v624 = vpop.permute.xlu0 %623
      %627 = vset.pattern.permute.xlu0 0
      %628 = vperm.xlu0 %627, %v614
      %v629 = vpop.permute.xlu0 %628
      %632 = vset.pattern.permute.xlu0 0
      %633 = vperm.xlu0 %632, %v615
      %v634 = vpop.permute.xlu0 %633
      %v640 = vunpack.c.l.b16 %v604
      %v641 = vunpack.c.l.b16 %v605
      %v642 = vunpack.c.l.b16 %v606
      %v643 = vunpack.c.l.b16 %v607
      %v644 = vpack.c.b16 %v641, %v640
      %v645 = vpack.c.b16 %v643, %v642
      %v650 = vunpack.c.l.b16 %v608
      %v651 = vunpack.c.l.b16 %v609
      %v652 = vunpack.c.l.b16 %v610
      %v653 = vunpack.c.l.b16 %v611
      %v654 = vpack.c.b16 %v651, %v650
      %v655 = vpack.c.b16 %v653, %v652
      %v659 = vsel %vm516, %v644, 0
      %v662 = vsel %vm516, %v645, 0
      %664 = vmatprep.subr.bf16.mxu0 0
      %665 = vmatpush1.bf16.msra.mxu0 %v654
      %666 = vmatprep.subr.bf16.mxu0 0
      %667 = vmatpush1.bf16.msra.mxu0 %v655
      %668 = vmatprep.subr.bf16.mxu0 0
      %669 = vmatpush1.bf16.msra.mxu0 0
      %670 = vmatprep.subr.bf16.mxu0 0
      %671 = vmatpush1.bf16.msra.mxu0 0
      %672 = vmatprep.subr.bf16.mxu0 0
      %673 = vmatpush1.bf16.msra.mxu0 0
      %674 = vmatprep.subr.bf16.mxu0 0
      %675 = vmatpush1.bf16.msra.mxu0 0
      %676 = vmatprep.subr.bf16.mxu0 0
      %677 = vmatpush1.bf16.msra.mxu0 0
      %678 = vmatprep.subr.bf16.mxu0 0
      %679 = vmatpush1.bf16.msra.mxu0 0
      %680 = vmatprep.subr.bf16.mxu0 0
      %681 = vmatpush1.bf16.msra.mxu0 0
      %682 = vmatprep.subr.bf16.mxu0 0
      %683 = vmatpush1.bf16.msra.mxu0 0
      %684 = vmatprep.subr.bf16.mxu0 0
      %685 = vmatpush1.bf16.msra.mxu0 0
      %686 = vmatprep.subr.bf16.mxu0 0
      %687 = vmatpush1.bf16.msra.mxu0 0
      %688 = vmatprep.subr.bf16.mxu0 0
      %689 = vmatpush1.bf16.msra.mxu0 0
      %690 = vmatprep.subr.bf16.mxu0 0
      %691 = vmatpush1.bf16.msra.mxu0 0
      %692 = vmatprep.subr.bf16.mxu0 0
      %693 = vmatpush1.bf16.msra.mxu0 0
      %694 = vmatprep.subr.bf16.mxu0 0
      %695 = vmatpush1.bf16.msra.mxu0 0
      %696 = vmatprep.mubr.bf16.mxu0 0
      %697 = vmatmul.mubr.bf16.gmra.mrb[0].mxu0 %v659
      %v698 = vpop.f32.mrb[0].mxu0
      %v699 = vadd.f32 %v619, %v698
      %v700 = vpop.f32.mrb[0].mxu0
      %v701 = vpop.f32.mrb[0].mxu0
      %v702 = vadd.f32 %v624, %v701
      %v703 = vpop.f32.mrb[0].mxu0
      %704 = vmatprep.mubr.bf16.mxu0 0
      %705 = vmatmul.mubr.bf16.gmra.mrb[0].mxu0 %v662
      %v706 = vpop.f32.mrb[0].mxu0
      %v707 = vadd.f32 %v629, %v706
      %v708 = vpop.f32.mrb[0].mxu0
      %v709 = vpop.f32.mrb[0].mxu0
      %v710 = vadd.f32 %v634, %v709
      %v711 = vpop.f32.mrb[0].mxu0
      %712 = vdwg.mxu0
      %v713 = vld [vmem:[%s7] sm:$0xf]
      %v714 = vld [vmem:[%s7 + $0x4] sm:$0xf]
      %v715 = vld [vmem:[%s7 + $0x8] sm:$0xf]
      %v716 = vld [vmem:[%s7 + $0xc] sm:$0xf]
      %v717 = vld [vmem:[%s402] sm:$0xf]
      %v718 = vld [vmem:[%s402 + $0x4] sm:$0xf]
      %v719 = vld [vmem:[%s402 + $0x8] sm:$0xf]
      %v720 = vld [vmem:[%s402 + $0xc] sm:$0xf]
      %v721 = vld [vmem:[%s8] sm:$0xff]
      %v722 = vld [vmem:[%s8 + $0x8] sm:$0xff]
      %v723 = vld [vmem:[%s8 + $0x10] sm:$0xff]
      %v724 = vld [vmem:[%s8 + $0x18] sm:$0xff]
      %726 = vset.pattern.permute.xlu0 0
      %727 = vperm.xlu0 %726, %v721
      %v728 = vpop.permute.xlu0 %727
      %731 = vset.pattern.permute.xlu0 0
      %732 = vperm.xlu0 %731, %v722
      %v733 = vpop.permute.xlu0 %732
      %736 = vset.pattern.permute.xlu0 0
      %737 = vperm.xlu0 %736, %v723
      %v738 = vpop.permute.xlu0 %737
      %741 = vset.pattern.permute.xlu0 0
      %742 = vperm.xlu0 %741, %v724
      %v743 = vpop.permute.xlu0 %742
      %v749 = vunpack.c.l.b16 %v713
      %v750 = vunpack.c.l.b16 %v714
      %v751 = vunpack.c.l.b16 %v715
      %v752 = vunpack.c.l.b16 %v716
      %v753 = vpack.c.b16 %v750, %v749
      %v754 = vpack.c.b16 %v752, %v751
      %v759 = vunpack.c.l.b16 %v717
      %v760 = vunpack.c.l.b16 %v718
      %v761 = vunpack.c.l.b16 %v719
      %v762 = vunpack.c.l.b16 %v720
      %v763 = vpack.c.b16 %v760, %v759
      %v764 = vpack.c.b16 %v762, %v761
      %v768 = vsel %vm516, %v753, 0
      %v771 = vsel %vm516, %v754, 0
      %773 = vmatprep.subr.bf16.mxu0 0
      %774 = vmatpush1.bf16.msra.mxu0 %v763
      %775 = vmatprep.subr.bf16.mxu0 0
      %776 = vmatpush1.bf16.msra.mxu0 %v764
      %777 = vmatprep.subr.bf16.mxu0 0
      %778 = vmatpush1.bf16.msra.mxu0 0
      %779 = vmatprep.subr.bf16.mxu0 0
      %780 = vmatpush1.bf16.msra.mxu0 0
      %781 = vmatprep.subr.bf16.mxu0 0
      %782 = vmatpush1.bf16.msra.mxu0 0
      %783 = vmatprep.subr.bf16.mxu0 0
      %784 = vmatpush1.bf16.msra.mxu0 0
      %785 = vmatprep.subr.bf16.mxu0 0
      %786 = vmatpush1.bf16.msra.mxu0 0
      %787 = vmatprep.subr.bf16.mxu0 0
      %788 = vmatpush1.bf16.msra.mxu0 0
      %789 = vmatprep.subr.bf16.mxu0 0
      %790 = vmatpush1.bf16.msra.mxu0 0
      %791 = vmatprep.subr.bf16.mxu0 0
      %792 = vmatpush1.bf16.msra.mxu0 0
      %793 = vmatprep.subr.bf16.mxu0 0
      %794 = vmatpush1.bf16.msra.mxu0 0
      %795 = vmatprep.subr.bf16.mxu0 0
      %796 = vmatpush1.bf16.msra.mxu0 0
      %797 = vmatprep.subr.bf16.mxu0 0
      %798 = vmatpush1.bf16.msra.mxu0 0
      %799 = vmatprep.subr.bf16.mxu0 0
      %800 = vmatpush1.bf16.msra.mxu0 0
      %801 = vmatprep.subr.bf16.mxu0 0
      %802 = vmatpush1.bf16.msra.mxu0 0
      %803 = vmatprep.subr.bf16.mxu0 0
      %804 = vmatpush1.bf16.msra.mxu0 0
      %805 = vmatprep.mubr.bf16.mxu0 0
      %806 = vmatmul.mubr.bf16.gmra.mrb[0].mxu0 %v768
      %v807 = vpop.f32.mrb[0].mxu0
      %v808 = vadd.f32 %v728, %v807
      %v809 = vpop.f32.mrb[0].mxu0
      %v810 = vpop.f32.mrb[0].mxu0
      %v811 = vadd.f32 %v733, %v810
      %v812 = vpop.f32.mrb[0].mxu0
      %813 = vmatprep.mubr.bf16.mxu0 0
      %814 = vmatmul.mubr.bf16.gmra.mrb[0].mxu0 %v771
      %v815 = vpop.f32.mrb[0].mxu0
      %v816 = vadd.f32 %v738, %v815
      %v817 = vpop.f32.mrb[0].mxu0
      %v818 = vpop.f32.mrb[0].mxu0
      %v819 = vadd.f32 %v743, %v818
      %v820 = vpop.f32.mrb[0].mxu0
      %821 = vdwg.mxu0
      %vm822 = vcmask 1048544
      %823 = vst.msk [vmem:[#allocation2] sm:$0xff] %vm822, 0.0
      %824 = vst.msk [vmem:[#allocation2 + $0x10] sm:$0xff] %vm822, 0.0
      %825 = vst.msk [vmem:[#allocation2 + $0x20] sm:$0xff] %vm822, 0.0
      %826 = vst.msk [vmem:[#allocation2 + $0x30] sm:$0xff] %vm822, 0.0
      %vm827 = vcmask 162944
      %828 = vst.msk [vmem:[#allocation2 + $0x8] sm:$0xff] %vm827, 0.0
      %829 = vst.msk [vmem:[#allocation2 + $0x18] sm:$0xff] %vm827, 0.0
      %830 = vst.msk [vmem:[#allocation2 + $0x28] sm:$0xff] %vm827, 0.0
      %831 = vst.msk [vmem:[#allocation2 + $0x38] sm:$0xff] %vm827, 0.0
      %832 = vst.msk [vmem:[#allocation3] sm:$0xff] %vm822, 0.0
      %833 = vst.msk [vmem:[#allocation3 + $0x10] sm:$0xff] %vm822, 0.0
      %834 = vst.msk [vmem:[#allocation3 + $0x20] sm:$0xff] %vm822, 0.0
      %835 = vst.msk [vmem:[#allocation3 + $0x30] sm:$0xff] %vm822, 0.0
      %836 = vst.msk [vmem:[#allocation3 + $0x8] sm:$0xff] %vm827, 0.0
      %837 = vst.msk [vmem:[#allocation3 + $0x18] sm:$0xff] %vm827, 0.0
      %838 = vst.msk [vmem:[#allocation3 + $0x28] sm:$0xff] %vm827, 0.0
      %839 = vst.msk [vmem:[#allocation3 + $0x38] sm:$0xff] %vm827, 0.0
      %vm840 = vcmask 130048
      %841 = vst.msk [vmem:[#allocation2 + $0x8] sm:$0xff] %vm840, %v699
      %842 = vst.msk [vmem:[#allocation2 + $0x18] sm:$0xff] %vm840, %v702
      %843 = vst.msk [vmem:[#allocation2 + $0x28] sm:$0xff] %vm840, %v707
      %844 = vst.msk [vmem:[#allocation2 + $0x38] sm:$0xff] %vm840, %v710
      %845 = vst.msk [vmem:[#allocation3 + $0x8] sm:$0xff] %vm840, %v808
      %846 = vst.msk [vmem:[#allocation3 + $0x18] sm:$0xff] %vm840, %v811
      %847 = vst.msk [vmem:[#allocation3 + $0x28] sm:$0xff] %vm840, %v816
      %848 = vst.msk [vmem:[#allocation3 + $0x38] sm:$0xff] %vm840, %v819
      %v849 = vld [vmem:[#allocation2] sm:$0xff]
      %v850 = vld [vmem:[#allocation2 + $0x8] sm:$0xff]
      %v851 = vld [vmem:[#allocation2 + $0x10] sm:$0xff]
      %v852 = vld [vmem:[#allocation2 + $0x18] sm:$0xff]
      %857 = vrot.lane.b32.xlu0 %v849, 2
      %v858 = vpop.permute.xlu0 %857
      %859 = vrot.lane.b32.xlu0 %v850, 2
      %v860 = vpop.permute.xlu0 %859
      %861 = vrot.lane.b32.xlu0 %v851, 2
      %v862 = vpop.permute.xlu0 %861
      %863 = vrot.lane.b32.xlu0 %v852, 2
      %v864 = vpop.permute.xlu0 %863
      %vm865 = vcmask 15360
      %v866 = vsel %vm865, %v858, %v860
      %v867 = vsel %vm865, %v862, %v864
      %v870 = vmul.f32 %v567, %v866
      %v871 = vmul.f32 %v570, %v867
      %vm872 = vcmask 125952
      %v873 = vsel %vm872, %v870, 0.0
      %v874 = vrot.slane %v873, 4
      %v875 = vadd.f32 %v873, %v874
      %v876 = vrot.slane %v875, 2
      %v877 = vadd.f32 %v875, %v876
      %v878 = vrot.slane %v877, 1
      %v879 = vadd.f32 %v877, %v878
      %v881 = vrot.slane %v870, 4
      %v883 = vsel %vm872, %v881, 0.0
      %v884 = vrot.slane %v883, 4
      %v885 = vadd.f32 %v883, %v884
      %v886 = vrot.slane %v885, 2
      %v887 = vadd.f32 %v885, %v886
      %v888 = vrot.slane %v887, 1
      %v889 = vadd.f32 %v887, %v888
      %v890 = vsel %vm872, %v871, 0.0
      %v891 = vrot.slane %v890, 4
      %v892 = vadd.f32 %v890, %v891
      %v893 = vrot.slane %v892, 2
      %v894 = vadd.f32 %v892, %v893
      %v895 = vrot.slane %v894, 1
      %v896 = vadd.f32 %v894, %v895
      %v898 = vrot.slane %v871, 4
      %v900 = vsel %vm872, %v898, 0.0
      %v901 = vrot.slane %v900, 4
      %v902 = vadd.f32 %v900, %v901
      %v903 = vrot.slane %v902, 2
      %v904 = vadd.f32 %v902, %v903
      %v905 = vrot.slane %v904, 1
      %v906 = vadd.f32 %v904, %v905
      %907 = vrot.lane.b32.xlu0 %v849, 1
      %v908 = vpop.permute.xlu0 %907
      %909 = vrot.lane.b32.xlu0 %v850, 1
      %v910 = vpop.permute.xlu0 %909
      %911 = vrot.lane.b32.xlu0 %v851, 1
      %v912 = vpop.permute.xlu0 %911
      %913 = vrot.lane.b32.xlu0 %v852, 1
      %v914 = vpop.permute.xlu0 %913
      %vm915 = vcmask 7168
      %v916 = vsel %vm915, %v908, %v910
      %v917 = vsel %vm915, %v912, %v914
      %v920 = vmul.f32 %v567, %v916
      %v921 = vmul.f32 %v570, %v917
      %v922 = vsel %vm872, %v920, 0.0
      %v923 = vrot.slane %v922, 4
      %v924 = vadd.f32 %v922, %v923
      %v925 = vrot.slane %v924, 2
      %v926 = vadd.f32 %v924, %v925
      %v927 = vrot.slane %v926, 1
      %v928 = vadd.f32 %v926, %v927
      %v930 = vrot.slane %v920, 4
      %v932 = vsel %vm872, %v930, 0.0
      %v933 = vrot.slane %v932, 4
      %v934 = vadd.f32 %v932, %v933
      %v935 = vrot.slane %v934, 2
      %v936 = vadd.f32 %v934, %v935
      %v937 = vrot.slane %v936, 1
      %v938 = vadd.f32 %v936, %v937
      %v939 = vsel %vm872, %v921, 0.0
      %v940 = vrot.slane %v939, 4
      %v941 = vadd.f32 %v939, %v940
      %v942 = vrot.slane %v941, 2
      %v943 = vadd.f32 %v941, %v942
      %v944 = vrot.slane %v943, 1
      %v945 = vadd.f32 %v943, %v944
      %v947 = vrot.slane %v921, 4
      %v949 = vsel %vm872, %v947, 0.0
      %v950 = vrot.slane %v949, 4
      %v951 = vadd.f32 %v949, %v950
      %v952 = vrot.slane %v951, 2
      %v953 = vadd.f32 %v951, %v952
      %v954 = vrot.slane %v953, 1
      %v955 = vadd.f32 %v953, %v954
      %v956 = vmul.f32 %v567, %v850
      %v957 = vmul.f32 %v570, %v852
      %v958 = vsel %vm872, %v956, 0.0
      %v959 = vrot.slane %v958, 4
      %v960 = vadd.f32 %v958, %v959
      %v961 = vrot.slane %v960, 2
      %v962 = vadd.f32 %v960, %v961
      %v963 = vrot.slane %v962, 1
      %v964 = vadd.f32 %v962, %v963
      %v966 = vrot.slane %v956, 4
      %v968 = vsel %vm872, %v966, 0.0
      %v969 = vrot.slane %v968, 4
      %v970 = vadd.f32 %v968, %v969
      %v971 = vrot.slane %v970, 2
      %v972 = vadd.f32 %v970, %v971
      %v973 = vrot.slane %v972, 1
      %v974 = vadd.f32 %v972, %v973
      %v975 = vsel %vm872, %v957, 0.0
      %v976 = vrot.slane %v975, 4
      %v977 = vadd.f32 %v975, %v976
      %v978 = vrot.slane %v977, 2
      %v979 = vadd.f32 %v977, %v978
      %v980 = vrot.slane %v979, 1
      %v981 = vadd.f32 %v979, %v980
      %v983 = vrot.slane %v957, 4
      %v985 = vsel %vm872, %v983, 0.0
      %v986 = vrot.slane %v985, 4
      %v987 = vadd.f32 %v985, %v986
      %v988 = vrot.slane %v987, 2
      %v989 = vadd.f32 %v987, %v988
      %v990 = vrot.slane %v989, 1
      %v991 = vadd.f32 %v989, %v990
      %992 = vrot.lane.b32.xlu0 %v850, 127
      %v993 = vpop.permute.xlu0 %992
      %994 = vrot.lane.b32.xlu0 %v852, 127
      %v995 = vpop.permute.xlu0 %994
      %v998 = vmul.f32 %v567, %v993
      %v999 = vmul.f32 %v570, %v995
      %v1000 = vsel %vm872, %v998, 0.0
      %v1001 = vrot.slane %v1000, 4
      %v1002 = vadd.f32 %v1000, %v1001
      %v1003 = vrot.slane %v1002, 2
      %v1004 = vadd.f32 %v1002, %v1003
      %v1005 = vrot.slane %v1004, 1
      %v1006 = vadd.f32 %v1004, %v1005
      %v1008 = vrot.slane %v998, 4
      %v1010 = vsel %vm872, %v1008, 0.0
      %v1011 = vrot.slane %v1010, 4
      %v1012 = vadd.f32 %v1010, %v1011
      %v1013 = vrot.slane %v1012, 2
      %v1014 = vadd.f32 %v1012, %v1013
      %v1015 = vrot.slane %v1014, 1
      %v1016 = vadd.f32 %v1014, %v1015
      %v1017 = vsel %vm872, %v999, 0.0
      %v1018 = vrot.slane %v1017, 4
      %v1019 = vadd.f32 %v1017, %v1018
      %v1020 = vrot.slane %v1019, 2
      %v1021 = vadd.f32 %v1019, %v1020
      %v1022 = vrot.slane %v1021, 1
      %v1023 = vadd.f32 %v1021, %v1022
      %v1025 = vrot.slane %v999, 4
      %v1027 = vsel %vm872, %v1025, 0.0
      %v1028 = vrot.slane %v1027, 4
      %v1029 = vadd.f32 %v1027, %v1028
      %v1030 = vrot.slane %v1029, 2
      %v1031 = vadd.f32 %v1029, %v1030
      %v1032 = vrot.slane %v1031, 1
      %v1033 = vadd.f32 %v1031, %v1032
      %1034 = vrot.lane.b32.xlu0 %v850, 126
      %v1035 = vpop.permute.xlu0 %1034
      %1036 = vrot.lane.b32.xlu0 %v852, 126
      %v1037 = vpop.permute.xlu0 %1036
      %v1040 = vmul.f32 %v567, %v1035
      %v1041 = vmul.f32 %v570, %v1037
      %v1042 = vsel %vm872, %v1040, 0.0
      %v1043 = vrot.slane %v1042, 4
      %v1044 = vadd.f32 %v1042, %v1043
      %v1045 = vrot.slane %v1044, 2
      %v1046 = vadd.f32 %v1044, %v1045
      %v1047 = vrot.slane %v1046, 1
      %v1048 = vadd.f32 %v1046, %v1047
      %v1050 = vrot.slane %v1040, 4
      %v1052 = vsel %vm872, %v1050, 0.0
      %v1053 = vrot.slane %v1052, 4
      %v1054 = vadd.f32 %v1052, %v1053
      %v1055 = vrot.slane %v1054, 2
      %v1056 = vadd.f32 %v1054, %v1055
      %v1057 = vrot.slane %v1056, 1
      %v1058 = vadd.f32 %v1056, %v1057
      %v1059 = vsel %vm872, %v1041, 0.0
      %v1060 = vrot.slane %v1059, 4
      %v1061 = vadd.f32 %v1059, %v1060
      %v1062 = vrot.slane %v1061, 2
      %v1063 = vadd.f32 %v1061, %v1062
      %v1064 = vrot.slane %v1063, 1
      %v1065 = vadd.f32 %v1063, %v1064
      %v1067 = vrot.slane %v1041, 4
      %v1069 = vsel %vm872, %v1067, 0.0
      %v1070 = vrot.slane %v1069, 4
      %v1071 = vadd.f32 %v1069, %v1070
      %v1072 = vrot.slane %v1071, 2
      %v1073 = vadd.f32 %v1071, %v1072
      %v1074 = vrot.slane %v1073, 1
      %v1075 = vadd.f32 %v1073, %v1074
      %v1076 = vld [vmem:[#allocation2 + $0x20] sm:$0xf]
      %v1077 = vld [vmem:[#allocation2 + $0x28] sm:$0xf]
      %1080 = vrot.lane.b32.xlu0 %v1076, 4
      %v1081 = vpop.permute.xlu0 %1080
      %1082 = vrot.lane.b32.xlu0 %v1077, 4
      %v1083 = vpop.permute.xlu0 %1082
      %vm1084 = vcmask 31744
      %v1085 = vsel %vm1084, %v1081, %v1083
      %v1087 = vmul.f32 %v575, %v1085
      %v1088 = vsel %vm872, %v1087, 0.0
      %v1089 = vrot.slane %v1088, 4
      %v1090 = vadd.f32 %v1088, %v1089
      %v1091 = vrot.slane %v1090, 2
      %v1092 = vadd.f32 %v1090, %v1091
      %v1093 = vrot.slane %v1092, 1
      %v1094 = vadd.f32 %v1092, %v1093
      %1095 = vrot.lane.b32.xlu0 %v1076, 3
      %v1096 = vpop.permute.xlu0 %1095
      %1097 = vrot.lane.b32.xlu0 %v1077, 3
      %v1098 = vpop.permute.xlu0 %1097
      %vm1099 = vcmask 23552
      %v1100 = vsel %vm1099, %v1096, %v1098
      %v1102 = vmul.f32 %v575, %v1100
      %v1103 = vsel %vm872, %v1102, 0.0
      %v1104 = vrot.slane %v1103, 4
      %v1105 = vadd.f32 %v1103, %v1104
      %v1106 = vrot.slane %v1105, 2
      %v1107 = vadd.f32 %v1105, %v1106
      %v1108 = vrot.slane %v1107, 1
      %v1109 = vadd.f32 %v1107, %v1108
      %1110 = vrot.lane.b32.xlu0 %v1076, 2
      %v1111 = vpop.permute.xlu0 %1110
      %1112 = vrot.lane.b32.xlu0 %v1077, 2
      %v1113 = vpop.permute.xlu0 %1112
      %v1114 = vsel %vm865, %v1111, %v1113
      %v1116 = vmul.f32 %v575, %v1114
      %v1117 = vsel %vm872, %v1116, 0.0
      %v1118 = vrot.slane %v1117, 4
      %v1119 = vadd.f32 %v1117, %v1118
      %v1120 = vrot.slane %v1119, 2
      %v1121 = vadd.f32 %v1119, %v1120
      %v1122 = vrot.slane %v1121, 1
      %v1123 = vadd.f32 %v1121, %v1122
      %1124 = vrot.lane.b32.xlu0 %v1076, 1
      %v1125 = vpop.permute.xlu0 %1124
      %1126 = vrot.lane.b32.xlu0 %v1077, 1
      %v1127 = vpop.permute.xlu0 %1126
      %v1128 = vsel %vm915, %v1125, %v1127
      %v1130 = vmul.f32 %v575, %v1128
      %v1131 = vsel %vm872, %v1130, 0.0
      %v1132 = vrot.slane %v1131, 4
      %v1133 = vadd.f32 %v1131, %v1132
      %v1134 = vrot.slane %v1133, 2
      %v1135 = vadd.f32 %v1133, %v1134
      %v1136 = vrot.slane %v1135, 1
      %v1137 = vadd.f32 %v1135, %v1136
      %v1138 = vmul.f32 %v575, %v1077
      %v1139 = vsel %vm872, %v1138, 0.0
      %v1140 = vrot.slane %v1139, 4
      %v1141 = vadd.f32 %v1139, %v1140
      %v1142 = vrot.slane %v1141, 2
      %v1143 = vadd.f32 %v1141, %v1142
      %v1144 = vrot.slane %v1143, 1
      %v1145 = vadd.f32 %v1143, %v1144
      %v1146 = vld [vmem:[#allocation2 + $0x20] sm:$0xf0]
      %v1147 = vld [vmem:[#allocation2 + $0x28] sm:$0xf0]
      %1150 = vrot.lane.b32.xlu0 %v1146, 3
      %v1151 = vpop.permute.xlu0 %1150
      %1152 = vrot.lane.b32.xlu0 %v1147, 3
      %v1153 = vpop.permute.xlu0 %1152
      %v1154 = vsel %vm1099, %v1151, %v1153
      %v1156 = vmul.f32 %v575, %v1154
      %v1158 = vrot.slane %v1156, 4
      %v1160 = vsel %vm872, %v1158, 0.0
      %v1161 = vrot.slane %v1160, 4
      %v1162 = vadd.f32 %v1160, %v1161
      %v1163 = vrot.slane %v1162, 2
      %v1164 = vadd.f32 %v1162, %v1163
      %v1165 = vrot.slane %v1164, 1
      %v1166 = vadd.f32 %v1164, %v1165
      %1167 = vrot.lane.b32.xlu0 %v1146, 2
      %v1168 = vpop.permute.xlu0 %1167
      %1169 = vrot.lane.b32.xlu0 %v1147, 2
      %v1170 = vpop.permute.xlu0 %1169
      %v1171 = vsel %vm865, %v1168, %v1170
      %v1173 = vmul.f32 %v575, %v1171
      %v1175 = vrot.slane %v1173, 4
      %v1177 = vsel %vm872, %v1175, 0.0
      %v1178 = vrot.slane %v1177, 4
      %v1179 = vadd.f32 %v1177, %v1178
      %v1180 = vrot.slane %v1179, 2
      %v1181 = vadd.f32 %v1179, %v1180
      %v1182 = vrot.slane %v1181, 1
      %v1183 = vadd.f32 %v1181, %v1182
      %1184 = vrot.lane.b32.xlu0 %v1146, 1
      %v1185 = vpop.permute.xlu0 %1184
      %1186 = vrot.lane.b32.xlu0 %v1147, 1
      %v1187 = vpop.permute.xlu0 %1186
      %v1188 = vsel %vm915, %v1185, %v1187
      %v1190 = vmul.f32 %v575, %v1188
      %v1192 = vrot.slane %v1190, 4
      %v1194 = vsel %vm872, %v1192, 0.0
      %v1195 = vrot.slane %v1194, 4
      %v1196 = vadd.f32 %v1194, %v1195
      %v1197 = vrot.slane %v1196, 2
      %v1198 = vadd.f32 %v1196, %v1197
      %v1199 = vrot.slane %v1198, 1
      %v1200 = vadd.f32 %v1198, %v1199
      %v1201 = vmul.f32 %v575, %v1147
      %v1203 = vrot.slane %v1201, 4
      %v1205 = vsel %vm872, %v1203, 0.0
      %v1206 = vrot.slane %v1205, 4
      %v1207 = vadd.f32 %v1205, %v1206
      %v1208 = vrot.slane %v1207, 2
      %v1209 = vadd.f32 %v1207, %v1208
      %v1210 = vrot.slane %v1209, 1
      %v1211 = vadd.f32 %v1209, %v1210
      %1212 = vrot.lane.b32.xlu0 %v1147, 127
      %v1213 = vpop.permute.xlu0 %1212
      %v1215 = vmul.f32 %v575, %v1213
      %v1217 = vrot.slane %v1215, 4
      %v1219 = vsel %vm872, %v1217, 0.0
      %v1220 = vrot.slane %v1219, 4
      %v1221 = vadd.f32 %v1219, %v1220
      %v1222 = vrot.slane %v1221, 2
      %v1223 = vadd.f32 %v1221, %v1222
      %v1224 = vrot.slane %v1223, 1
      %v1225 = vadd.f32 %v1223, %v1224
      %v1226 = vld [vmem:[#allocation2 + $0x30] sm:$0xf]
      %v1227 = vld [vmem:[#allocation2 + $0x38] sm:$0xf]
      %1230 = vrot.lane.b32.xlu0 %v1226, 1
      %v1231 = vpop.permute.xlu0 %1230
      %1232 = vrot.lane.b32.xlu0 %v1227, 1
      %v1233 = vpop.permute.xlu0 %1232
      %v1234 = vsel %vm915, %v1231, %v1233
      %v1236 = vmul.f32 %v578, %v1234
      %v1237 = vsel %vm872, %v1236, 0.0
      %v1238 = vrot.slane %v1237, 4
      %v1239 = vadd.f32 %v1237, %v1238
      %v1240 = vrot.slane %v1239, 2
      %v1241 = vadd.f32 %v1239, %v1240
      %v1242 = vrot.slane %v1241, 1
      %v1243 = vadd.f32 %v1241, %v1242
      %v1244 = vmul.f32 %v578, %v1227
      %v1245 = vsel %vm872, %v1244, 0.0
      %v1246 = vrot.slane %v1245, 4
      %v1247 = vadd.f32 %v1245, %v1246
      %v1248 = vrot.slane %v1247, 2
      %v1249 = vadd.f32 %v1247, %v1248
      %v1250 = vrot.slane %v1249, 1
      %v1251 = vadd.f32 %v1249, %v1250
      %v1252 = vrot.slane %v1227, 4
      %v1254 = vmul.f32 %v578, %v1252
      %v1256 = vrot.slane %v1254, 4
      %v1258 = vsel %vm872, %v1256, 0.0
      %v1259 = vrot.slane %v1258, 4
      %v1260 = vadd.f32 %v1258, %v1259
      %v1261 = vrot.slane %v1260, 2
      %v1262 = vadd.f32 %v1260, %v1261
      %v1263 = vrot.slane %v1262, 1
      %v1264 = vadd.f32 %v1262, %v1263
      %1265 = vrot.lane.b32.xlu0 %v1227, 127
      %v1266 = vpop.permute.xlu0 %1265
      %v1268 = vmul.f32 %v578, %v1266
      %v1269 = vsel %vm872, %v1268, 0.0
      %v1270 = vrot.slane %v1269, 4
      %v1271 = vadd.f32 %v1269, %v1270
      %v1272 = vrot.slane %v1271, 2
      %v1273 = vadd.f32 %v1271, %v1272
      %v1274 = vrot.slane %v1273, 1
      %v1275 = vadd.f32 %v1273, %v1274
      %1276 = vrot.lane.b32.xlu0 %v1252, 127
      %v1277 = vpop.permute.xlu0 %1276
      %v1279 = vmul.f32 %v578, %v1277
      %v1281 = vrot.slane %v1279, 4
      %v1283 = vsel %vm872, %v1281, 0.0
      %v1284 = vrot.slane %v1283, 4
      %v1285 = vadd.f32 %v1283, %v1284
      %v1286 = vrot.slane %v1285, 2
      %v1287 = vadd.f32 %v1285, %v1286
      %v1288 = vrot.slane %v1287, 1
      %v1289 = vadd.f32 %v1287, %v1288
      %1290 = vrot.lane.b32.xlu0 %v1227, 126
      %v1291 = vpop.permute.xlu0 %1290
      %v1293 = vmul.f32 %v578, %v1291
      %v1294 = vsel %vm872, %v1293, 0.0
      %v1295 = vrot.slane %v1294, 4
      %v1296 = vadd.f32 %v1294, %v1295
      %v1297 = vrot.slane %v1296, 2
      %v1298 = vadd.f32 %v1296, %v1297
      %v1299 = vrot.slane %v1298, 1
      %v1300 = vadd.f32 %v1298, %v1299
      %1301 = vrot.lane.b32.xlu0 %v1252, 126
      %v1302 = vpop.permute.xlu0 %1301
      %v1304 = vmul.f32 %v578, %v1302
      %v1306 = vrot.slane %v1304, 4
      %v1308 = vsel %vm872, %v1306, 0.0
      %v1309 = vrot.slane %v1308, 4
      %v1310 = vadd.f32 %v1308, %v1309
      %v1311 = vrot.slane %v1310, 2
      %v1312 = vadd.f32 %v1310, %v1311
      %v1313 = vrot.slane %v1312, 1
      %v1314 = vadd.f32 %v1312, %v1313
      %1315 = vrot.lane.b32.xlu0 %v1227, 125
      %v1316 = vpop.permute.xlu0 %1315
      %v1318 = vmul.f32 %v578, %v1316
      %v1319 = vsel %vm872, %v1318, 0.0
      %v1320 = vrot.slane %v1319, 4
      %v1321 = vadd.f32 %v1319, %v1320
      %v1322 = vrot.slane %v1321, 2
      %v1323 = vadd.f32 %v1321, %v1322
      %v1324 = vrot.slane %v1323, 1
      %v1325 = vadd.f32 %v1323, %v1324
      %1326 = vrot.lane.b32.xlu0 %v1252, 125
      %v1327 = vpop.permute.xlu0 %1326
      %v1329 = vmul.f32 %v578, %v1327
      %v1331 = vrot.slane %v1329, 4
      %v1333 = vsel %vm872, %v1331, 0.0
      %v1334 = vrot.slane %v1333, 4
      %v1335 = vadd.f32 %v1333, %v1334
      %v1336 = vrot.slane %v1335, 2
      %v1337 = vadd.f32 %v1335, %v1336
      %v1338 = vrot.slane %v1337, 1
      %v1339 = vadd.f32 %v1337, %v1338
      %1340 = vrot.lane.b32.xlu0 %v1252, 124
      %v1341 = vpop.permute.xlu0 %1340
      %v1343 = vmul.f32 %v578, %v1341
      %v1345 = vrot.slane %v1343, 4
      %v1347 = vsel %vm872, %v1345, 0.0
      %v1348 = vrot.slane %v1347, 4
      %v1349 = vadd.f32 %v1347, %v1348
      %v1350 = vrot.slane %v1349, 2
      %v1351 = vadd.f32 %v1349, %v1350
      %v1352 = vrot.slane %v1351, 1
      %v1353 = vadd.f32 %v1351, %v1352
      %vm1354 = vcmask 1040384
      %v1355 = vsel %vm1354, %v879, %v928
      %vm1356 = vcmask 1041408
      %v1357 = vsel %vm1356, %v1355, %v964
      %vm1358 = vcmask 1042432
      %v1359 = vsel %vm1358, %v1357, %v1006
      %vm1360 = vcmask 1043456
      %v1361 = vsel %vm1360, %v1359, %v1048
      %vm1362 = vcmp.eq.f32.partialorder %v1361, 0.0
      %v1363 = vadd.f32 %v1361, %v583
      %v1364 = vmul.f32 %v1363, 0.5
      %v1365 = vsel %vm1362, -inf, %v1364
      %vm1366 = vcmask 126976
      %v1367 = vsel %vm1366, %v1365, -inf
      %v1368 = vrot.slane %v1367, 4
      %v1369 = vmax.f32 %v1367, %v1368
      %v1370 = vrot.slane %v1369, 2
      %v1371 = vmax.f32 %v1369, %v1370
      %v1372 = vrot.slane %v1371, 1
      %v1373 = vmax.f32 %v1371, %v1372
      %v1374 = vsub.f32 %v1365, %v1373
      %v1375 = vmul.f32 %v1374, 1.442695
      %v1376 = vpow.pop %v1375
      %v1377 = vsel %vm1366, %v1376, 0.0
      %v1378 = vrot.slane %v1377, 4
      %v1379 = vadd.f32 %v1377, %v1378
      %v1380 = vrot.slane %v1379, 2
      %v1381 = vadd.f32 %v1379, %v1380
      %v1382 = vrot.slane %v1381, 1
      %v1383 = vadd.f32 %v1381, %v1382
      %v1384 = vrcp.pop %v1383
      %v1385 = vmul.f32 1.0, %v1384
      %v1386 = vmul.f32 %v1376, %v1385
      %v1387 = vld [vmem:[#allocation3] sm:$0xf]
      %v1388 = vld [vmem:[#allocation3 + $0x8] sm:$0xf]
      %v1389 = vlaneseq
      %v1390 = vshrl.u32 %v1389, 7
      %v1391 = vsub.s32 0, %v1390
      %v1392 = vrot.slane %v1386, %v1391
      %1395 = vrot.lane.b32.xlu0 %v1387, 2
      %v1396 = vpop.permute.xlu0 %1395
      %1397 = vrot.lane.b32.xlu0 %v1388, 2
      %v1398 = vpop.permute.xlu0 %1397
      %v1399 = vsel %vm865, %v1396, %v1398
      %v1401 = vmul.f32 %v1392, %v1399
      %v1402 = vlaneseq
      %v1403 = vshrl.u32 %v1402, 7
      %v1404 = vsub.s32 1, %v1403
      %v1405 = vrot.slane %v1386, %v1404
      %1406 = vrot.lane.b32.xlu0 %v1387, 1
      %v1407 = vpop.permute.xlu0 %1406
      %1408 = vrot.lane.b32.xlu0 %v1388, 1
      %v1409 = vpop.permute.xlu0 %1408
      %v1410 = vsel %vm915, %v1407, %v1409
      %v1412 = vmul.f32 %v1405, %v1410
      %v1413 = vadd.f32 %v1401, %v1412
      %v1414 = vlaneseq
      %v1415 = vshrl.u32 %v1414, 7
      %v1416 = vsub.s32 2, %v1415
      %v1417 = vrot.slane %v1386, %v1416
      %v1418 = vmul.f32 %v1417, %v1388
      %v1419 = vadd.f32 %v1413, %v1418
      %v1420 = vlaneseq
      %v1421 = vshrl.u32 %v1420, 7
      %v1422 = vsub.s32 3, %v1421
      %v1423 = vrot.slane %v1386, %v1422
      %1424 = vrot.lane.b32.xlu0 %v1388, 127
      %v1425 = vpop.permute.xlu0 %1424
      %v1427 = vmul.f32 %v1423, %v1425
      %v1428 = vadd.f32 %v1419, %v1427
      %v1429 = vlaneseq
      %v1430 = vshrl.u32 %v1429, 7
      %v1431 = vsub.s32 4, %v1430
      %v1432 = vrot.slane %v1386, %v1431
      %1433 = vrot.lane.b32.xlu0 %v1388, 126
      %v1434 = vpop.permute.xlu0 %1433
      %v1436 = vmul.f32 %v1432, %v1434
      %v1437 = vadd.f32 %v1428, %v1436
      %v1438 = vsel %vm1354, %v889, %v938
      %v1439 = vsel %vm1356, %v1438, %v974
      %v1440 = vsel %vm1358, %v1439, %v1016
      %v1441 = vsel %vm1360, %v1440, %v1058
      %vm1442 = vcmp.eq.f32.partialorder %v1441, 0.0
      %v1445 = vrot.slane %v583, 5
      %v1446 = vrot.slane %v586, 5
      %v1447 = vsel %vm1358, %v1445, %v1446
      %v1449 = vadd.f32 %v1441, %v1447
      %v1450 = vmul.f32 %v1449, 0.5
      %v1451 = vsel %vm1442, -inf, %v1450
      %v1452 = vsel %vm1366, %v1451, -inf
      %v1453 = vrot.slane %v1452, 4
      %v1454 = vmax.f32 %v1452, %v1453
      %v1455 = vrot.slane %v1454, 2
      %v1456 = vmax.f32 %v1454, %v1455
      %v1457 = vrot.slane %v1456, 1
      %v1458 = vmax.f32 %v1456, %v1457
      %v1459 = vsub.f32 %v1451, %v1458
      %v1460 = vmul.f32 %v1459, 1.442695
      %v1461 = vpow.pop %v1460
      %v1462 = vsel %vm1366, %v1461, 0.0
      %v1463 = vrot.slane %v1462, 4
      %v1464 = vadd.f32 %v1462, %v1463
      %v1465 = vrot.slane %v1464, 2
      %v1466 = vadd.f32 %v1464, %v1465
      %v1467 = vrot.slane %v1466, 1
      %v1468 = vadd.f32 %v1466, %v1467
      %v1469 = vrcp.pop %v1468
      %v1470 = vmul.f32 1.0, %v1469
      %v1471 = vmul.f32 %v1461, %v1470
      %v1472 = vld [vmem:[#allocation3] sm:$0xf0]
      %v1473 = vld [vmem:[#allocation3 + $0x8] sm:$0xf0]
      %v1474 = vlaneseq
      %v1475 = vshrl.u32 %v1474, 7
      %v1476 = vsub.s32 0, %v1475
      %v1477 = vrot.slane %v1471, %v1476
      %v1480 = vrot.slane %v1472, 4
      %v1481 = vrot.slane %v1473, 4
      %1482 = vrot.lane.b32.xlu0 %v1480, 2
      %v1483 = vpop.permute.xlu0 %1482
      %1484 = vrot.lane.b32.xlu0 %v1481, 2
      %v1485 = vpop.permute.xlu0 %1484
      %v1486 = vsel %vm865, %v1483, %v1485
      %v1488 = vmul.f32 %v1477, %v1486
      %v1489 = vlaneseq
      %v1490 = vshrl.u32 %v1489, 7
      %v1491 = vsub.s32 1, %v1490
      %v1492 = vrot.slane %v1471, %v1491
      %1493 = vrot.lane.b32.xlu0 %v1480, 1
      %v1494 = vpop.permute.xlu0 %1493
      %1495 = vrot.lane.b32.xlu0 %v1481, 1
      %v1496 = vpop.permute.xlu0 %1495
      %v1497 = vsel %vm915, %v1494, %v1496
      %v1499 = vmul.f32 %v1492, %v1497
      %v1500 = vadd.f32 %v1488, %v1499
      %v1501 = vlaneseq
      %v1502 = vshrl.u32 %v1501, 7
      %v1503 = vsub.s32 2, %v1502
      %v1504 = vrot.slane %v1471, %v1503
      %v1505 = vmul.f32 %v1504, %v1473
      %v1507 = vrot.slane %v1505, 4
      %v1509 = vadd.f32 %v1500, %v1507
      %v1510 = vlaneseq
      %v1511 = vshrl.u32 %v1510, 7
      %v1512 = vsub.s32 3, %v1511
      %v1513 = vrot.slane %v1471, %v1512
      %1514 = vrot.lane.b32.xlu0 %v1481, 127
      %v1515 = vpop.permute.xlu0 %1514
      %v1517 = vmul.f32 %v1513, %v1515
      %v1518 = vadd.f32 %v1509, %v1517
      %v1519 = vlaneseq
      %v1520 = vshrl.u32 %v1519, 7
      %v1521 = vsub.s32 4, %v1520
      %v1522 = vrot.slane %v1471, %v1521
      %1523 = vrot.lane.b32.xlu0 %v1481, 126
      %v1524 = vpop.permute.xlu0 %1523
      %v1526 = vmul.f32 %v1522, %v1524
      %v1527 = vadd.f32 %v1518, %v1526
      %v1528 = vsel %vm1354, %v896, %v945
      %v1529 = vsel %vm1356, %v1528, %v981
      %v1530 = vsel %vm1358, %v1529, %v1023
      %v1531 = vsel %vm1360, %v1530, %v1065
      %vm1532 = vcmp.eq.f32.partialorder %v1531, 0.0
      %v1533 = vrot.slane %v586, 2
      %v1535 = vadd.f32 %v1531, %v1533
      %v1536 = vmul.f32 %v1535, 0.5
      %v1537 = vsel %vm1532, -inf, %v1536
      %v1538 = vsel %vm1366, %v1537, -inf
      %v1539 = vrot.slane %v1538, 4
      %v1540 = vmax.f32 %v1538, %v1539
      %v1541 = vrot.slane %v1540, 2
      %v1542 = vmax.f32 %v1540, %v1541
      %v1543 = vrot.slane %v1542, 1
      %v1544 = vmax.f32 %v1542, %v1543
      %v1545 = vsub.f32 %v1537, %v1544
      %v1546 = vmul.f32 %v1545, 1.442695
      %v1547 = vpow.pop %v1546
      %v1548 = vsel %vm1366, %v1547, 0.0
      %v1549 = vrot.slane %v1548, 4
      %v1550 = vadd.f32 %v1548, %v1549
      %v1551 = vrot.slane %v1550, 2
      %v1552 = vadd.f32 %v1550, %v1551
      %v1553 = vrot.slane %v1552, 1
      %v1554 = vadd.f32 %v1552, %v1553
      %v1555 = vrcp.pop %v1554
      %v1556 = vmul.f32 1.0, %v1555
      %v1557 = vmul.f32 %v1547, %v1556
      %v1558 = vld [vmem:[#allocation3 + $0x10] sm:$0xf]
      %v1559 = vld [vmem:[#allocation3 + $0x18] sm:$0xf]
      %v1560 = vlaneseq
      %v1561 = vshrl.u32 %v1560, 7
      %v1562 = vsub.s32 0, %v1561
      %v1563 = vrot.slane %v1557, %v1562
      %1566 = vrot.lane.b32.xlu0 %v1558, 2
      %v1567 = vpop.permute.xlu0 %1566
      %1568 = vrot.lane.b32.xlu0 %v1559, 2
      %v1569 = vpop.permute.xlu0 %1568
      %v1570 = vsel %vm865, %v1567, %v1569
      %v1572 = vmul.f32 %v1563, %v1570
      %v1573 = vlaneseq
      %v1574 = vshrl.u32 %v1573, 7
      %v1575 = vsub.s32 1, %v1574
      %v1576 = vrot.slane %v1557, %v1575
      %1577 = vrot.lane.b32.xlu0 %v1558, 1
      %v1578 = vpop.permute.xlu0 %1577
      %1579 = vrot.lane.b32.xlu0 %v1559, 1
      %v1580 = vpop.permute.xlu0 %1579
      %v1581 = vsel %vm915, %v1578, %v1580
      %v1583 = vmul.f32 %v1576, %v1581
      %v1584 = vadd.f32 %v1572, %v1583
      %v1585 = vlaneseq
      %v1586 = vshrl.u32 %v1585, 7
      %v1587 = vsub.s32 2, %v1586
      %v1588 = vrot.slane %v1557, %v1587
      %v1589 = vmul.f32 %v1588, %v1559
      %v1590 = vadd.f32 %v1584, %v1589
      %v1591 = vlaneseq
      %v1592 = vshrl.u32 %v1591, 7
      %v1593 = vsub.s32 3, %v1592
      %v1594 = vrot.slane %v1557, %v1593
      %1595 = vrot.lane.b32.xlu0 %v1559, 127
      %v1596 = vpop.permute.xlu0 %1595
      %v1598 = vmul.f32 %v1594, %v1596
      %v1599 = vadd.f32 %v1590, %v1598
      %v1600 = vlaneseq
      %v1601 = vshrl.u32 %v1600, 7
      %v1602 = vsub.s32 4, %v1601
      %v1603 = vrot.slane %v1557, %v1602
      %1604 = vrot.lane.b32.xlu0 %v1559, 126
      %v1605 = vpop.permute.xlu0 %1604
      %v1607 = vmul.f32 %v1603, %v1605
      %v1608 = vadd.f32 %v1599, %v1607
      %v1609 = vsel %vm1354, %v906, %v955
      %v1610 = vsel %vm1356, %v1609, %v991
      %v1611 = vsel %vm1358, %v1610, %v1033
      %v1612 = vsel %vm1360, %v1611, %v1075
      %vm1613 = vcmp.eq.f32.partialorder %v1612, 0.0
      %v1615 = vrot.slane %v586, 7
      %v1616 = vrot.slane %v591, 7
      %v1617 = vsel %vm1354, %v1615, %v1616
      %v1619 = vadd.f32 %v1612, %v1617
      %v1620 = vmul.f32 %v1619, 0.5
      %v1621 = vsel %vm1613, -inf, %v1620
      %v1622 = vsel %vm1366, %v1621, -inf
      %v1623 = vrot.slane %v1622, 4
      %v1624 = vmax.f32 %v1622, %v1623
      %v1625 = vrot.slane %v1624, 2
      %v1626 = vmax.f32 %v1624, %v1625
      %v1627 = vrot.slane %v1626, 1
      %v1628 = vmax.f32 %v1626, %v1627
      %v1629 = vsub.f32 %v1621, %v1628
      %v1630 = vmul.f32 %v1629, 1.442695
      %v1631 = vpow.pop %v1630
      %v1632 = vsel %vm1366, %v1631, 0.0
      %v1633 = vrot.slane %v1632, 4
      %v1634 = vadd.f32 %v1632, %v1633
      %v1635 = vrot.slane %v1634, 2
      %v1636 = vadd.f32 %v1634, %v1635
      %v1637 = vrot.slane %v1636, 1
      %v1638 = vadd.f32 %v1636, %v1637
      %v1639 = vrcp.pop %v1638
      %v1640 = vmul.f32 1.0, %v1639
      %v1641 = vmul.f32 %v1631, %v1640
      %v1642 = vld [vmem:[#allocation3 + $0x10] sm:$0xf0]
      %v1643 = vld [vmem:[#allocation3 + $0x18] sm:$0xf0]
      %v1644 = vlaneseq
      %v1645 = vshrl.u32 %v1644, 7
      %v1646 = vsub.s32 0, %v1645
      %v1647 = vrot.slane %v1641, %v1646
      %v1650 = vrot.slane %v1642, 4
      %v1651 = vrot.slane %v1643, 4
      %1652 = vrot.lane.b32.xlu0 %v1650, 2
      %v1653 = vpop.permute.xlu0 %1652
      %1654 = vrot.lane.b32.xlu0 %v1651, 2
      %v1655 = vpop.permute.xlu0 %1654
      %v1656 = vsel %vm865, %v1653, %v1655
      %v1658 = vmul.f32 %v1647, %v1656
      %v1659 = vlaneseq
      %v1660 = vshrl.u32 %v1659, 7
      %v1661 = vsub.s32 1, %v1660
      %v1662 = vrot.slane %v1641, %v1661
      %1663 = vrot.lane.b32.xlu0 %v1650, 1
      %v1664 = vpop.permute.xlu0 %1663
      %1665 = vrot.lane.b32.xlu0 %v1651, 1
      %v1666 = vpop.permute.xlu0 %1665
      %v1667 = vsel %vm915, %v1664, %v1666
      %v1669 = vmul.f32 %v1662, %v1667
      %v1670 = vadd.f32 %v1658, %v1669
      %v1671 = vlaneseq
      %v1672 = vshrl.u32 %v1671, 7
      %v1673 = vsub.s32 2, %v1672
      %v1674 = vrot.slane %v1641, %v1673
      %v1675 = vmul.f32 %v1674, %v1643
      %v1677 = vrot.slane %v1675, 4
      %v1679 = vadd.f32 %v1670, %v1677
      %v1680 = vlaneseq
      %v1681 = vshrl.u32 %v1680, 7
      %v1682 = vsub.s32 3, %v1681
      %v1683 = vrot.slane %v1641, %v1682
      %1684 = vrot.lane.b32.xlu0 %v1651, 127
      %v1685 = vpop.permute.xlu0 %1684
      %v1687 = vmul.f32 %v1683, %v1685
      %v1688 = vadd.f32 %v1679, %v1687
      %v1689 = vlaneseq
      %v1690 = vshrl.u32 %v1689, 7
      %v1691 = vsub.s32 4, %v1690
      %v1692 = vrot.slane %v1641, %v1691
      %1693 = vrot.lane.b32.xlu0 %v1651, 126
      %v1694 = vpop.permute.xlu0 %1693
      %v1696 = vmul.f32 %v1692, %v1694
      %v1697 = vadd.f32 %v1688, %v1696
      %v1698 = vsel %vm1354, %v1094, %v1109
      %v1699 = vsel %vm1356, %v1698, %v1123
      %v1700 = vsel %vm1358, %v1699, %v1137
      %v1701 = vsel %vm1360, %v1700, %v1145
      %vm1702 = vcmp.eq.f32.partialorder %v1701, 0.0
      %v1704 = vrot.slane %v591, 4
      %v1705 = vrot.slane %v594, 4
      %v1706 = vsel %vm1360, %v1704, %v1705
      %v1708 = vadd.f32 %v1701, %v1706
      %v1709 = vmul.f32 %v1708, 0.5
      %v1710 = vsel %vm1702, -inf, %v1709
      %v1711 = vsel %vm1366, %v1710, -inf
      %v1712 = vrot.slane %v1711, 4
      %v1713 = vmax.f32 %v1711, %v1712
      %v1714 = vrot.slane %v1713, 2
      %v1715 = vmax.f32 %v1713, %v1714
      %v1716 = vrot.slane %v1715, 1
      %v1717 = vmax.f32 %v1715, %v1716
      %v1718 = vsub.f32 %v1710, %v1717
      %v1719 = vmul.f32 %v1718, 1.442695
      %v1720 = vpow.pop %v1719
      %v1721 = vsel %vm1366, %v1720, 0.0
      %v1722 = vrot.slane %v1721, 4
      %v1723 = vadd.f32 %v1721, %v1722
      %v1724 = vrot.slane %v1723, 2
      %v1725 = vadd.f32 %v1723, %v1724
      %v1726 = vrot.slane %v1725, 1
      %v1727 = vadd.f32 %v1725, %v1726
      %v1728 = vrcp.pop %v1727
      %v1729 = vmul.f32 1.0, %v1728
      %v1730 = vmul.f32 %v1720, %v1729
      %v1731 = vld [vmem:[#allocation3 + $0x20] sm:$0xf]
      %v1732 = vld [vmem:[#allocation3 + $0x28] sm:$0xf]
      %v1733 = vlaneseq
      %v1734 = vshrl.u32 %v1733, 7
      %v1735 = vsub.s32 0, %v1734
      %v1736 = vrot.slane %v1730, %v1735
      %1739 = vrot.lane.b32.xlu0 %v1731, 4
      %v1740 = vpop.permute.xlu0 %1739
      %1741 = vrot.lane.b32.xlu0 %v1732, 4
      %v1742 = vpop.permute.xlu0 %1741
      %v1743 = vsel %vm1084, %v1740, %v1742
      %v1745 = vmul.f32 %v1736, %v1743
      %v1746 = vlaneseq
      %v1747 = vshrl.u32 %v1746, 7
      %v1748 = vsub.s32 1, %v1747
      %v1749 = vrot.slane %v1730, %v1748
      %1750 = vrot.lane.b32.xlu0 %v1731, 3
      %v1751 = vpop.permute.xlu0 %1750
      %1752 = vrot.lane.b32.xlu0 %v1732, 3
      %v1753 = vpop.permute.xlu0 %1752
      %v1754 = vsel %vm1099, %v1751, %v1753
      %v1756 = vmul.f32 %v1749, %v1754
      %v1757 = vadd.f32 %v1745, %v1756
      %v1758 = vlaneseq
      %v1759 = vshrl.u32 %v1758, 7
      %v1760 = vsub.s32 2, %v1759
      %v1761 = vrot.slane %v1730, %v1760
      %1762 = vrot.lane.b32.xlu0 %v1731, 2
      %v1763 = vpop.permute.xlu0 %1762
      %1764 = vrot.lane.b32.xlu0 %v1732, 2
      %v1765 = vpop.permute.xlu0 %1764
      %v1766 = vsel %vm865, %v1763, %v1765
      %v1768 = vmul.f32 %v1761, %v1766
      %v1769 = vadd.f32 %v1757, %v1768
      %v1770 = vlaneseq
      %v1771 = vshrl.u32 %v1770, 7
      %v1772 = vsub.s32 3, %v1771
      %v1773 = vrot.slane %v1730, %v1772
      %1774 = vrot.lane.b32.xlu0 %v1731, 1
      %v1775 = vpop.permute.xlu0 %1774
      %1776 = vrot.lane.b32.xlu0 %v1732, 1
      %v1777 = vpop.permute.xlu0 %1776
      %v1778 = vsel %vm915, %v1775, %v1777
      %v1780 = vmul.f32 %v1773, %v1778
      %v1781 = vadd.f32 %v1769, %v1780
      %v1782 = vlaneseq
      %v1783 = vshrl.u32 %v1782, 7
      %v1784 = vsub.s32 4, %v1783
      %v1785 = vrot.slane %v1730, %v1784
      %v1786 = vmul.f32 %v1785, %v1732
      %v1787 = vadd.f32 %v1781, %v1786
      %v1788 = vsel %vm1354, %v1166, %v1183
      %v1789 = vsel %vm1356, %v1788, %v1200
      %v1790 = vsel %vm1358, %v1789, %v1211
      %v1791 = vsel %vm1360, %v1790, %v1225
      %vm1792 = vcmp.eq.f32.partialorder %v1791, 0.0
      %v1793 = vrot.slane %v594, 1
      %v1795 = vadd.f32 %v1791, %v1793
      %v1796 = vmul.f32 %v1795, 0.5
      %v1797 = vsel %vm1792, -inf, %v1796
      %v1798 = vsel %vm1366, %v1797, -inf
      %v1799 = vrot.slane %v1798, 4
      %v1800 = vmax.f32 %v1798, %v1799
      %v1801 = vrot.slane %v1800, 2
      %v1802 = vmax.f32 %v1800, %v1801
      %v1803 = vrot.slane %v1802, 1
      %v1804 = vmax.f32 %v1802, %v1803
      %v1805 = vsub.f32 %v1797, %v1804
      %v1806 = vmul.f32 %v1805, 1.442695
      %v1807 = vpow.pop %v1806
      %v1808 = vsel %vm1366, %v1807, 0.0
      %v1809 = vrot.slane %v1808, 4
      %v1810 = vadd.f32 %v1808, %v1809
      %v1811 = vrot.slane %v1810, 2
      %v1812 = vadd.f32 %v1810, %v1811
      %v1813 = vrot.slane %v1812, 1
      %v1814 = vadd.f32 %v1812, %v1813
      %v1815 = vrcp.pop %v1814
      %v1816 = vmul.f32 1.0, %v1815
      %v1817 = vmul.f32 %v1807, %v1816
      %v1818 = vld [vmem:[#allocation3 + $0x20] sm:$0xf0]
      %v1819 = vld [vmem:[#allocation3 + $0x28] sm:$0xf0]
      %v1820 = vlaneseq
      %v1821 = vshrl.u32 %v1820, 7
      %v1822 = vsub.s32 0, %v1821
      %v1823 = vrot.slane %v1817, %v1822
      %v1826 = vrot.slane %v1818, 4
      %v1827 = vrot.slane %v1819, 4
      %1828 = vrot.lane.b32.xlu0 %v1826, 3
      %v1829 = vpop.permute.xlu0 %1828
      %1830 = vrot.lane.b32.xlu0 %v1827, 3
      %v1831 = vpop.permute.xlu0 %1830
      %v1832 = vsel %vm1099, %v1829, %v1831
      %v1834 = vmul.f32 %v1823, %v1832
      %v1835 = vlaneseq
      %v1836 = vshrl.u32 %v1835, 7
      %v1837 = vsub.s32 1, %v1836
      %v1838 = vrot.slane %v1817, %v1837
      %1839 = vrot.lane.b32.xlu0 %v1826, 2
      %v1840 = vpop.permute.xlu0 %1839
      %1841 = vrot.lane.b32.xlu0 %v1827, 2
      %v1842 = vpop.permute.xlu0 %1841
      %v1843 = vsel %vm865, %v1840, %v1842
      %v1845 = vmul.f32 %v1838, %v1843
      %v1846 = vadd.f32 %v1834, %v1845
      %v1847 = vlaneseq
      %v1848 = vshrl.u32 %v1847, 7
      %v1849 = vsub.s32 2, %v1848
      %v1850 = vrot.slane %v1817, %v1849
      %1851 = vrot.lane.b32.xlu0 %v1826, 1
      %v1852 = vpop.permute.xlu0 %1851
      %1853 = vrot.lane.b32.xlu0 %v1827, 1
      %v1854 = vpop.permute.xlu0 %1853
      %v1855 = vsel %vm915, %v1852, %v1854
      %v1857 = vmul.f32 %v1850, %v1855
      %v1858 = vadd.f32 %v1846, %v1857
      %v1859 = vlaneseq
      %v1860 = vshrl.u32 %v1859, 7
      %v1861 = vsub.s32 3, %v1860
      %v1862 = vrot.slane %v1817, %v1861
      %v1863 = vmul.f32 %v1862, %v1819
      %v1865 = vrot.slane %v1863, 4
      %v1867 = vadd.f32 %v1858, %v1865
      %v1868 = vlaneseq
      %v1869 = vshrl.u32 %v1868, 7
      %v1870 = vsub.s32 4, %v1869
      %v1871 = vrot.slane %v1817, %v1870
      %1872 = vrot.lane.b32.xlu0 %v1827, 127
      %v1873 = vpop.permute.xlu0 %1872
      %v1875 = vmul.f32 %v1871, %v1873
      %v1876 = vadd.f32 %v1867, %v1875
      %v1877 = vsel %vm1354, %v1243, %v1251
      %v1878 = vsel %vm1356, %v1877, %v1275
      %v1879 = vsel %vm1358, %v1878, %v1300
      %v1880 = vsel %vm1360, %v1879, %v1325
      %vm1881 = vcmp.eq.f32.partialorder %v1880, 0.0
      %v1883 = vrot.slane %v594, 6
      %v1884 = vrot.slane %v599, 6
      %v1885 = vsel %vm1356, %v1883, %v1884
      %v1887 = vadd.f32 %v1880, %v1885
      %v1888 = vmul.f32 %v1887, 0.5
      %v1889 = vsel %vm1881, -inf, %v1888
      %v1890 = vsel %vm1366, %v1889, -inf
      %v1891 = vrot.slane %v1890, 4
      %v1892 = vmax.f32 %v1890, %v1891
      %v1893 = vrot.slane %v1892, 2
      %v1894 = vmax.f32 %v1892, %v1893
      %v1895 = vrot.slane %v1894, 1
      %v1896 = vmax.f32 %v1894, %v1895
      %v1897 = vsub.f32 %v1889, %v1896
      %v1898 = vmul.f32 %v1897, 1.442695
      %v1899 = vpow.pop %v1898
      %v1900 = vsel %vm1366, %v1899, 0.0
      %v1901 = vrot.slane %v1900, 4
      %v1902 = vadd.f32 %v1900, %v1901
      %v1903 = vrot.slane %v1902, 2
      %v1904 = vadd.f32 %v1902, %v1903
      %v1905 = vrot.slane %v1904, 1
      %v1906 = vadd.f32 %v1904, %v1905
      %v1907 = vrcp.pop %v1906
      %v1908 = vmul.f32 1.0, %v1907
      %v1909 = vmul.f32 %v1899, %v1908
      %v1910 = vld [vmem:[#allocation3 + $0x30] sm:$0xf]
      %v1911 = vld [vmem:[#allocation3 + $0x38] sm:$0xf]
      %v1912 = vlaneseq
      %v1913 = vshrl.u32 %v1912, 7
      %v1914 = vsub.s32 0, %v1913
      %v1915 = vrot.slane %v1909, %v1914
      %1918 = vrot.lane.b32.xlu0 %v1910, 1
      %v1919 = vpop.permute.xlu0 %1918
      %1920 = vrot.lane.b32.xlu0 %v1911, 1
      %v1921 = vpop.permute.xlu0 %1920
      %v1922 = vsel %vm915, %v1919, %v1921
      %v1924 = vmul.f32 %v1915, %v1922
      %v1925 = vlaneseq
      %v1926 = vshrl.u32 %v1925, 7
      %v1927 = vsub.s32 1, %v1926
      %v1928 = vrot.slane %v1909, %v1927
      %v1929 = vmul.f32 %v1928, %v1911
      %v1930 = vadd.f32 %v1924, %v1929
      %v1931 = vlaneseq
      %v1932 = vshrl.u32 %v1931, 7
      %v1933 = vsub.s32 2, %v1932
      %v1934 = vrot.slane %v1909, %v1933
      %1935 = vrot.lane.b32.xlu0 %v1911, 127
      %v1936 = vpop.permute.xlu0 %1935
      %v1938 = vmul.f32 %v1934, %v1936
      %v1939 = vadd.f32 %v1930, %v1938
      %v1940 = vlaneseq
      %v1941 = vshrl.u32 %v1940, 7
      %v1942 = vsub.s32 3, %v1941
      %v1943 = vrot.slane %v1909, %v1942
      %1944 = vrot.lane.b32.xlu0 %v1911, 126
      %v1945 = vpop.permute.xlu0 %1944
      %v1947 = vmul.f32 %v1943, %v1945
      %v1948 = vadd.f32 %v1939, %v1947
      %v1949 = vlaneseq
      %v1950 = vshrl.u32 %v1949, 7
      %v1951 = vsub.s32 4, %v1950
      %v1952 = vrot.slane %v1909, %v1951
      %1953 = vrot.lane.b32.xlu0 %v1911, 125
      %v1954 = vpop.permute.xlu0 %1953
      %v1956 = vmul.f32 %v1952, %v1954
      %v1957 = vadd.f32 %v1948, %v1956
      %v1958 = vsel %vm1354, %v1264, %v1289
      %v1959 = vsel %vm1356, %v1958, %v1314
      %v1960 = vsel %vm1358, %v1959, %v1339
      %v1961 = vsel %vm1360, %v1960, %v1353
      %vm1962 = vcmp.eq.f32.partialorder %v1961, 0.0
      %v1963 = vrot.slane %v599, 3
      %v1965 = vadd.f32 %v1961, %v1963
      %v1966 = vmul.f32 %v1965, 0.5
      %v1967 = vsel %vm1962, -inf, %v1966
      %v1968 = vsel %vm1366, %v1967, -inf
      %v1969 = vrot.slane %v1968, 4
      %v1970 = vmax.f32 %v1968, %v1969
      %v1971 = vrot.slane %v1970, 2
      %v1972 = vmax.f32 %v1970, %v1971
      %v1973 = vrot.slane %v1972, 1
      %v1974 = vmax.f32 %v1972, %v1973
      %v1975 = vsub.f32 %v1967, %v1974
      %v1976 = vmul.f32 %v1975, 1.442695
      %v1977 = vpow.pop %v1976
      %v1978 = vsel %vm1366, %v1977, 0.0
      %v1979 = vrot.slane %v1978, 4
      %v1980 = vadd.f32 %v1978, %v1979
      %v1981 = vrot.slane %v1980, 2
      %v1982 = vadd.f32 %v1980, %v1981
      %v1983 = vrot.slane %v1982, 1
      %v1984 = vadd.f32 %v1982, %v1983
      %v1985 = vrcp.pop %v1984
      %v1986 = vmul.f32 1.0, %v1985
      %v1987 = vmul.f32 %v1977, %v1986
      %v1988 = vld [vmem:[#allocation3 + $0x38] sm:$0xf0]
      %v1989 = vlaneseq
      %v1990 = vshrl.u32 %v1989, 7
      %v1991 = vsub.s32 0, %v1990
      %v1992 = vrot.slane %v1987, %v1991
      %v1993 = vmul.f32 %v1992, %v1988
      %v1994 = vlaneseq
      %v1995 = vshrl.u32 %v1994, 7
      %v1996 = vsub.s32 1, %v1995
      %v1997 = vrot.slane %v1987, %v1996
      %v1999 = vrot.slane %v1988, 4
      %2000 = vrot.lane.b32.xlu0 %v1999, 127
      %v2001 = vpop.permute.xlu0 %2000
      %v2003 = vmul.f32 %v1997, %v2001
      %v2005 = vrot.slane %v2003, 4
      %v2007 = vadd.f32 %v1993, %v2005
      %v2008 = vlaneseq
      %v2009 = vshrl.u32 %v2008, 7
      %v2010 = vsub.s32 2, %v2009
      %v2011 = vrot.slane %v1987, %v2010
      %2012 = vrot.lane.b32.xlu0 %v1999, 126
      %v2013 = vpop.permute.xlu0 %2012
      %v2015 = vmul.f32 %v2011, %v2013
      %v2017 = vrot.slane %v2015, 4
      %v2019 = vadd.f32 %v2007, %v2017
      %v2020 = vlaneseq
      %v2021 = vshrl.u32 %v2020, 7
      %v2022 = vsub.s32 3, %v2021
      %v2023 = vrot.slane %v1987, %v2022
      %2024 = vrot.lane.b32.xlu0 %v1999, 125
      %v2025 = vpop.permute.xlu0 %2024
      %v2027 = vmul.f32 %v2023, %v2025
      %v2029 = vrot.slane %v2027, 4
      %v2031 = vadd.f32 %v2019, %v2029
      %v2032 = vlaneseq
      %v2033 = vshrl.u32 %v2032, 7
      %v2034 = vsub.s32 4, %v2033
      %v2035 = vrot.slane %v1987, %v2034
      %2036 = vrot.lane.b32.xlu0 %v1999, 124
      %v2037 = vpop.permute.xlu0 %2036
      %v2039 = vmul.f32 %v2035, %v2037
      %v2041 = vrot.slane %v2039, 4
      %v2043 = vadd.f32 %v2031, %v2041
      %v2045 = vrot.slane %v1471, 3
      %v2048 = vrot.slane %v1557, 6
      %v2051 = vrot.slane %v1641, 1
      %v2054 = vrot.slane %v1730, 4
      %v2057 = vrot.slane %v1817, 7
      %v2060 = vrot.slane %v1909, 2
      %v2063 = vrot.slane %v1987, 5
      %vm2065 = vcmask 1044480
      %v2066 = vsel %vm2065, %v1386, %v2045
      %v2067 = vsel %vm1356, %v2045, %v2048
      %vm2068 = vcmask 1046528
      %v2069 = vsel %vm2068, %v2067, %v2051
      %v2070 = vsel %vm1360, %v2051, %v2054
      %v2071 = vsel %vm1354, %v2054, %v2057
      %vm2072 = vcmask 1045504
      %v2073 = vsel %vm2072, %v2071, %v2060
      %v2074 = vsel %vm1358, %v2060, %v2063
      %2075 = vst.msk [vmem:[%s412] sm:$0xff] %vm840, %v2066
      %2076 = vst.msk [vmem:[%s412 + $0x8] sm:$0xff] %vm840, %v2069
      %2077 = vst.msk [vmem:[%s412 + $0x10] sm:$0xff] %vm840, %v2070
      %2078 = vst.msk [vmem:[%s412 + $0x18] sm:$0xff] %vm840, %v2073
      %2079 = vst.msk [vmem:[%s412 + $0x20] sm:$0xff] %vm840, %v2074
      %v2081 = vrot.slane %v1527, 4
      %v2084 = vrot.slane %v1697, 4
      %v2087 = vrot.slane %v1876, 4
      %v2089 = vsel %vm1360, %v1437, %v2081
      %v2090 = vsel %vm1360, %v1608, %v2084
      %v2091 = vsel %vm1360, %v1787, %v2087
      %v2092 = vsel %vm1360, %v1957, %v2043
      %2093 = vst.msk [vmem:[%s407] sm:$0xff] %vm840, %v2089
      %2094 = vst.msk [vmem:[%s407 + $0x8] sm:$0xff] %vm840, %v2090
      %2095 = vst.msk [vmem:[%s407 + $0x10] sm:$0xff] %vm840, %v2091
      %2096 = vst.msk [vmem:[%s407 + $0x18] sm:$0xff] %vm840, %v2092
      %p2097 = scmp.lt.s32.totalorder %s22, 1
      %s2098 = scalar_select %p2097, %s22, 1
      %s2099 = smul.addr %s2098, 4
      %s2100 = smul.addr %s2099, 8
      %s2101 = scalar_lea.vmem %s9, %s2100
      %p2102 = scmp.lt.s32.totalorder %s22, 1
      %s2103 = scalar_select %p2102, %s22, 1
      %s2104 = smul.addr %s2103, 5
      %s2105 = smul.addr %s2104, 8
      %s2106 = scalar_lea.vmem %s10, %s2105
      // Predicated region
      $region57: #{tpu_custom_call.1} parent=55 // pred_check
        %p2107 = pneg %p244
      $region58: #{tpu_custom_call.1} parent=55 // pred_check_branch
        %2109 = sbr.rel (%p2107) target = $region60
      $region59: #{tpu_custom_call.1} parent=55 // pred_region
        _
      $region60: #{tpu_custom_call.1} parent=55 // pred_fallthru
        _
      // Predicated region
      $region61: #{tpu_custom_call.1} parent=55 // pred_check
        %p2110 = pneg %p270
      $region62: #{tpu_custom_call.1} parent=55 // pred_check_branch
        %2112 = sbr.rel (%p2110) target = $region64
      $region63: #{tpu_custom_call.1} parent=55 // pred_region
        _
      $region64: #{tpu_custom_call.1} parent=55 // pred_fallthru
        _
    $region56: #{tpu_custom_call.1} parent=5 // pred_fallthru
      _
    %p2113 = scmp.le.s32.totalorder 2, %s17
    // Predicated region
    $region65: #{tpu_custom_call.1} parent=5 // pred_check
      %p2114 = pneg %p2113
    $region66: #{tpu_custom_call.1} parent=5 // pred_check_branch
      %2116 = sbr.rel (%p2114) target = $region68
    $region67: #{tpu_custom_call.1} parent=5 // pred_region
      %s2117 = ssub.s32 %s17, 2
      // Predicated region
      $region69: #{tpu_custom_call.1} parent=67 // pred_check
        %p2118 = pneg %p250
      $region70: #{tpu_custom_call.1} parent=67 // pred_check_branch
        %2120 = sbr.rel (%p2118) target = $region72
      $region71: #{tpu_custom_call.1} parent=67 // pred_region
        %p2121 = scmp.lt.s32.totalorder %s23, 1
        %s2122 = scalar_select %p2121, %s23, 1
        %s2123 = smul.addr %s2122, 4
        %s2124 = smul.addr %s2123, 8
        %s2125 = scalar_lea.vmem %s9, %s2124
      $region72: #{tpu_custom_call.1} parent=67 // pred_fallthru
        _
      // Predicated region
      $region73: #{tpu_custom_call.1} parent=67 // pred_check
        %p2126 = pneg %p276
      $region74: #{tpu_custom_call.1} parent=67 // pred_check_branch
        %2128 = sbr.rel (%p2126) target = $region76
      $region75: #{tpu_custom_call.1} parent=67 // pred_region
        %p2129 = scmp.lt.s32.totalorder %s23, 1
        %s2130 = scalar_select %p2129, %s23, 1
        %s2131 = smul.addr %s2130, 5
        %s2132 = smul.addr %s2131, 8
        %s2133 = scalar_lea.vmem %s10, %s2132
      $region76: #{tpu_custom_call.1} parent=67 // pred_fallthru
        _
    $region68: #{tpu_custom_call.1} parent=5 // pred_fallthru
      _
  $region6: #{tpu_custom_call.1} parent=0 // loop_footer
    %s21 = sadd.s32 1, %s17
  $region7: #{tpu_custom_call.1} parent=0 // loop_footer_branch
    %16 = sbr.rel target = $region3
  $region8: #{tpu_custom_call.1} parent=0 // loop_exit
    _

</llo_original>
